<compile_context>
chip_gen: v7x
topology: tpu7x:2x2x1
jax: 0.10.0
libtpu: 0.0.40
codegen_flags: <defaults>
</compile_context>

<pallas_src>
import jax
import jax.numpy as jnp
from jax import lax
from jax.experimental import pallas as pl
from jax.experimental.pallas import tpu as pltpu


def graphite_encoder_kernel(a_ref, s1_ref, w2_ref, out_ref):
    # a_ref  : (BB, n_pad, n_pad) -- zero-padded A_hat = A + I for BB graphs
    # s1_ref : (n_pad, hidden)    -- precomputed H0 @ W1 (zero-padded rows), shared
    # w2_ref : (hidden, 2L)       -- gc2 weight, shared
    # out_ref: (BB, n_pad, 2L)    -- [means | stddevs] lane-contiguous
    bb, n_pad, _ = a_ref.shape
    two_l = out_ref.shape[-1]
    latent_dim = two_l // 2

    a = a_ref[...]                                  # (BB, n_pad, n_pad)
    # Sublane-aligned flatten (n_pad % 8 == 0): batch folded into the M dimension.
    a_flat = a.reshape(bb * n_pad, n_pad)

    # gc1 over all BB graphs at once: relu(A_hat @ S1)
    h1 = jnp.dot(a_flat, s1_ref[...], preferred_element_type=jnp.float32)
    h1 = jnp.maximum(h1, 0.0).astype(a.dtype)

    # first half of gc2, still flattened: S2 = H1 @ W2
    s2 = jnp.dot(h1, w2_ref[...], preferred_element_type=jnp.float32)
    s2 = s2.astype(a.dtype).reshape(bb, n_pad, two_l)

    # second half of gc2 needs per-graph structure: H2_b = A_hat_b @ S2_b
    h2 = jnp.einsum("bij,bjk->bik", a, s2, preferred_element_type=jnp.float32)

    # Masked exp on the stddev half; one full-width store per block of graphs.
    col = lax.broadcasted_iota(jnp.int32, h2.shape, 2)
    is_std = col >= latent_dim
    out = jnp.where(is_std, jnp.exp(jnp.where(is_std, h2, 0.0)), h2)
    out_ref[...] = out.astype(out_ref.dtype)


def graphite_encoder(A, H0, W1, W2, *, block_graphs=32, compute_dtype=jnp.float32):
    """A: (n, n) or (B, n, n). Returns (means, stddevs) matching the input rank."""
    squeeze = A.ndim == 2
    if squeeze:
        A = A[None]
    B, n, _ = A.shape
    hidden_dim = W1.shape[1]
    latent2 = W2.shape[1]
    assert latent2 % 2 == 0
    latent_dim = latent2 // 2

    # --- blocking / padding ---------------------------------------------------
    bb = int(max(1, min(block_graphs, B)))           # graphs per grid step
    num_blocks = int(pl.cdiv(B, bb))
    if num_blocks > 1 and num_blocks % 2 == 1:
        num_blocks += 1                              # even parallel axis (v7x, 2 TCs)
    b_pad = num_blocks * bb
    n_pad = int(pl.cdiv(n, 8)) * 8                   # sublane-tile aligned rows
    # VMEM note: the double-buffered A block is 2*bb*n_pad^2*4 bytes; at n=20 even
    # bb=512 is <3 MiB, far under the default scoped limit on all generations.

    # Parameter-only product folded outside the kernel; A_hat built once here.
    S1 = jnp.dot(H0, W1)                                           # (n, hidden)
    A_hat = A.astype(jnp.float32) + jnp.eye(n, dtype=jnp.float32)  # (B, n, n)

    A_hat_p = (
        jnp.zeros((b_pad, n_pad, n_pad), compute_dtype)
        .at[:B, :n, :n].set(A_hat.astype(compute_dtype))
    )
    S1_p = (
        jnp.zeros((n_pad, hidden_dim), compute_dtype)
        .at[:n, :].set(S1.astype(compute_dtype))
    )
    W2_p = W2.astype(compute_dtype)

    out = pl.pallas_call(
        graphite_encoder_kernel,
        out_shape=jax.ShapeDtypeStruct((b_pad, n_pad, latent2), jnp.float32),
        grid=(num_blocks,),
        in_specs=[
            pl.BlockSpec((bb, n_pad, n_pad), lambda b: (b, 0, 0)),     # per-block A_hat
            pl.BlockSpec((n_pad, hidden_dim), lambda b: (0, 0)),       # shared S1
            pl.BlockSpec((hidden_dim, latent2), lambda b: (0, 0)),     # shared W2
        ],
        out_specs=pl.BlockSpec((bb, n_pad, latent2), lambda b: (b, 0, 0)),
        compiler_params=pltpu.CompilerParams(
            dimension_semantics=("parallel",)),
    )(A_hat_p, S1_p, W2_p)

    out = out[:B, :n, :]
    means = out[..., :latent_dim]
    stddevs = out[..., latent_dim:]                  # exp already applied in-kernel
    if squeeze:
        means, stddevs = means[0], stddevs[0]
    return means, stddevs


def reference(A, H0, W1, W2):
    n = A.shape[-1]
    latent_dim = W2.shape[1] // 2
    A_hat = A + jnp.eye(n, dtype=A.dtype)
    H = jnp.maximum(A_hat @ (H0 @ W1), 0.0)
    H = A_hat @ (H @ W2)
    return H[..., :latent_dim], jnp.exp(H[..., latent_dim:])


if __name__ == "__main__":
    # Shapes implied by the module: n=20 nodes, initial_dim=k1=6,
    # hidden_dim=32, latent_dim=8 -> gc2 output dim 16.  Batch of 50 graphs.
    n, initial_dim, hidden_dim, latent_dim = 20, 6, 32, 8
    B = 50

    key = jax.random.PRNGKey(0)
    k_a, k_h0, k_w1, k_w2 = jax.random.split(key, 4)

    A_batch = jax.random.normal(k_a, (B, n, n), dtype=jnp.float32)
    H0 = jax.random.normal(k_h0, (n, initial_dim), dtype=jnp.float32)
    # pygcn-style uniform(-1/sqrt(out), 1/sqrt(out)) weights
    stdv1 = 1.0 / (hidden_dim ** 0.5)
    stdv2 = 1.0 / ((2 * latent_dim) ** 0.5)
    W1 = jax.random.uniform(k_w1, (initial_dim, hidden_dim), jnp.float32, -stdv1, stdv1)
    W2 = jax.random.uniform(k_w2, (hidden_dim, 2 * latent_dim), jnp.float32, -stdv2, stdv2)

    ref_m, ref_s = reference(A_batch, H0, W1, W2)

    # Batched path: 50 graphs -> 2 grid steps of 32 graphs (batch zero-padded).
    means_b, stds_b = graphite_encoder(A_batch, H0, W1, W2, block_graphs=32)
    jax.block_until_ready((means_b, stds_b))
    assert means_b.shape == (B, n, latent_dim) and stds_b.shape == (B, n, latent_dim)
    assert jnp.allclose(means_b, ref_m, atol=1e-3, rtol=1e-3)
    assert jnp.allclose(stds_b, ref_s, atol=1e-3, rtol=1e-3)

    # Single-graph path (original module interface).
    means1, stds1 = graphite_encoder(A_batch[0], H0, W1, W2)
    jax.block_until_ready((means1, stds1))
    assert means1.shape == (n, latent_dim) and stds1.shape == (n, latent_dim)
    assert jnp.allclose(means1, ref_m[0], atol=1e-3, rtol=1e-3)
    assert jnp.allclose(stds1, ref_s[0], atol=1e-3, rtol=1e-3)

    # bf16 compute path (v6e/v7x MXU-native); smoke check only -- random normal
    # adjacencies lose precision in bf16, while real 0/1 graphs (+I) are exact.
    means_h, stds_h = graphite_encoder(A_batch, H0, W1, W2,
                                       compute_dtype=jnp.bfloat16)
    jax.block_until_ready((means_h, stds_h))
    assert means_h.shape == (B, n, latent_dim) and stds_h.shape == (B, n, latent_dim)
    assert bool(jnp.all(jnp.isfinite(means_h))) and bool(jnp.all(jnp.isfinite(stds_h)))

    # TODO(synk): torch.distributions.Normal is just a (means, stddevs) container;
    # we return the two tensors instead of a distribution object.
    print("KERNEL_OK")
</pallas_src>

<mosaic_0001>
module attributes {stable_mosaic.version = 11 : i64} {
  func.func @graphite_encoder_kernel(%arg0: i32, %arg1: memref<32x24x24xf32, #tpu.memory_space<vmem>>, %arg2: memref<24x32xf32, #tpu.memory_space<vmem>>, %arg3: memref<32x16xf32, #tpu.memory_space<vmem>>, %arg4: memref<32x24x16xf32, #tpu.memory_space<vmem>>) attributes {dimension_semantics = [#tpu.dimension_semantics<parallel>], iteration_bounds = array<i64: 2>, scalar_prefetch = 0 : i64, scratch_operands = 0 : i64, tpu.core_type = #tpu.core_type<tc>, window_params = [{transform_indices = @transform_0, window_bounds = array<i64: 32, 24, 24>}, {pipeline_mode = #tpu.pipeline_mode<synchronous>, transform_indices = @transform_1, window_bounds = array<i64: 24, 32>}, {pipeline_mode = #tpu.pipeline_mode<synchronous>, transform_indices = @transform_2, window_bounds = array<i64: 32, 16>}, {transform_indices = @transform_3, window_bounds = array<i64: 32, 24, 16>}]} {
    %c0 = arith.constant 0 : index
    %c0_0 = arith.constant 0 : index
    %c0_1 = arith.constant 0 : index
    %0 = vector.load %arg1[%c0, %c0_0, %c0_1] : memref<32x24x24xf32, #tpu.memory_space<vmem>>, vector<32x24x24xf32>
    %1 = vector.shape_cast %0 : vector<32x24x24xf32> to vector<768x24xf32>
    %c0_2 = arith.constant 0 : index
    %c0_3 = arith.constant 0 : index
    %2 = vector.load %arg2[%c0_2, %c0_3] : memref<24x32xf32, #tpu.memory_space<vmem>>, vector<24x32xf32>
    %cst = arith.constant dense<0.000000e+00> : vector<768x32xf32>
    %3 = tpu.matmul %1, %2, %cst {dimension_numbers = #tpu.dot_dimension_numbers<[1], [0], [0], [1], [0, 0, 1, 1], [], []>} : vector<768x24xf32>, vector<24x32xf32>, vector<768x32xf32> -> vector<768x32xf32>
    %cst_4 = arith.constant 0.000000e+00 : f32
    %4 = vector.broadcast %cst_4 : f32 to vector<768x32xf32>
    %5 = arith.maximumf %3, %4 : vector<768x32xf32>
    %c0_5 = arith.constant 0 : index
    %c0_6 = arith.constant 0 : index
    %6 = vector.load %arg3[%c0_5, %c0_6] : memref<32x16xf32, #tpu.memory_space<vmem>>, vector<32x16xf32>
    %cst_7 = arith.constant dense<0.000000e+00> : vector<768x16xf32>
    %7 = tpu.matmul %5, %6, %cst_7 {dimension_numbers = #tpu.dot_dimension_numbers<[1], [0], [0], [1], [0, 0, 1, 1], [], []>} : vector<768x32xf32>, vector<32x16xf32>, vector<768x16xf32> -> vector<768x16xf32>
    %8 = vector.shape_cast %7 : vector<768x16xf32> to vector<32x24x16xf32>
    "tpu.trace_start"() <{level = 10 : i32, message = "bij,bjk->bik"}> : () -> ()
    %cst_8 = arith.constant dense<0.000000e+00> : vector<32x24x16xf32>
    %9 = tpu.matmul %0, %8, %cst_8 {dimension_numbers = #tpu.dot_dimension_numbers<[2], [1], [1], [2], [0, 0, 0, 1, 1, 2], [0], [0]>} : vector<32x24x24xf32>, vector<32x24x16xf32>, vector<32x24x16xf32> -> vector<32x24x16xf32>
    "tpu.trace_stop"() : () -> ()
    %10 = tpu.iota {dimensions = array<i32: 2>} : vector<32x24x16xi32>
    %c8_i32 = arith.constant 8 : i32
    %11 = vector.broadcast %c8_i32 : i32 to vector<32x24x16xi32>
    %12 = arith.cmpi sge, %10, %11 : vector<32x24x16xi32>
    %cst_9 = arith.constant 0.000000e+00 : f32
    %13 = vector.broadcast %cst_9 : f32 to vector<32x24x16xf32>
    %14 = arith.select %12, %9, %13 : vector<32x24x16xi1>, vector<32x24x16xf32>
    %15 = math.exp %14 : vector<32x24x16xf32>
    %16 = arith.select %12, %15, %9 : vector<32x24x16xi1>, vector<32x24x16xf32>
    %c0_10 = arith.constant 0 : index
    %c0_11 = arith.constant 0 : index
    %c0_12 = arith.constant 0 : index
    %17 = vector.load %arg4[%c0_10, %c0_11, %c0_12] : memref<32x24x16xf32, #tpu.memory_space<vmem>>, vector<32x24x16xf32>
    tpu.vector_store %arg4[%c0_10, %c0_11, %c0_12], %16 {strides = array<i32>} : memref<32x24x16xf32, #tpu.memory_space<vmem>>, vector<32x24x16xf32>,
    return
  }
  func.func @transform_0(%arg0: i32) -> (i32, i32, i32) {
    %c0_i32 = arith.constant 0 : i32
    %c0_i32_0 = arith.constant 0 : i32
    %c0_i32_1 = arith.constant 0 : i32
    return %arg0, %c0_i32, %c0_i32_0 : i32, i32, i32
  }
  func.func @transform_1(%arg0: i32) -> (i32, i32) {
    %c0_i32 = arith.constant 0 : i32
    %c0_i32_0 = arith.constant 0 : i32
    %c0_i32_1 = arith.constant 0 : i32
    return %c0_i32, %c0_i32_0 : i32, i32
  }
  func.func @transform_2(%arg0: i32) -> (i32, i32) {
    %c0_i32 = arith.constant 0 : i32
    %c0_i32_0 = arith.constant 0 : i32
    %c0_i32_1 = arith.constant 0 : i32
    return %c0_i32, %c0_i32_0 : i32, i32
  }
  func.func @transform_3(%arg0: i32) -> (i32, i32, i32) {
    %c0_i32 = arith.constant 0 : i32
    %c0_i32_0 = arith.constant 0 : i32
    %c0_i32_1 = arith.constant 0 : i32
    return %arg0, %c0_i32, %c0_i32_0 : i32, i32, i32
  }
}

</mosaic_0001>

<llo_original>
// kernel: tpu_custom_call.1
$region0: #{tpu_custom_call.1}
  #allocation0 [shape = 'u32[]', space=smem, size = 0x4, offset = 0x4, fixed_abs, tag = 'smem constant byte address 0x4 - core index']
  #allocation1 [shape = 'u32[144,128]{1,0:T(1,128)}', space=vmem, size = 0x12000, scoped, tag = 'internal scratch']
  %s0 = inlined_call_operand.vmem [shape: f32[64,24,24], index: 0, kind: input, shape index: {}]
  %s1 = inlined_call_operand.vmem [shape: f32[24,32], index: 1, kind: input, shape index: {}]
  %s2 = inlined_call_operand.vmem [shape: f32[32,16], index: 2, kind: input, shape index: {}]
  %s3 = inlined_call_operand.vmem [shape: f32[64,24,16], index: 3, kind: output, shape index: {}]
  %s4 = sld [smem:[#allocation0]]
  $region45: #{tpu_custom_call.1} parent=0
    _
  %s6 = ssub.s32 1, %s4
  %s7 = scalar_select 0, %s6, %s4
  loop: start=0, step=1, limit=4
  $region2: #{tpu_custom_call.1} parent=0 // loop_pre_header
    _
  $region3: #{tpu_custom_call.1} parent=0 // loop_header
    %s9 = sphi 0, %s13
    %p10 = scmp.ge.s32.totalorder %s9, 4
    %s19 = sphi 0, %s21
    %s22 = sphi 0, %s19
    %s23 = sphi 0, %s22
    %s39 = sphi 0, %s23
    %s43 = sphi 0, %s43
    %s45 = sphi 0, %s43
    %s46 = sphi 0, %s45
    %s60 = sphi 0, %s46
    %s64 = sphi 0, %s64
    %s66 = sphi 0, %s64
    %s67 = sphi 0, %s66
    %s81 = sphi 0, %s67
    %s87 = sphi 0, %s89
    %s90 = sphi 0, %s87
    %s91 = sphi 0, %s90
    %s107 = sphi 0, %s91
  $region4: #{tpu_custom_call.1} parent=0 // loop_header_branch
    %12 = sbr.rel (%p10) target = $region8
  $region5: #{tpu_custom_call.1} parent=0 // loop_body
    %s14 = ssub.s32 %s9, 1
    %s15 = ssub.s32 %s9, 2
    %s16 = sadd.s32 %s9, 1
    %s17 = ssub.s32 %s9, %s16
    %p18 = scmp.eq.s32.totalorder %s17, 0
    %s20 = sadd.s32 %s19, 1
    %s21 = scalar_select %p18, %s19, %s20
    %p24 = pneg %p18
    %p25 = scmp.eq.s32.totalorder %s9, 1
    %p26 = por %p24, %p25
    %p27 = scmp.ne.s32.totalorder %s19, %s22
    %p28 = scmp.eq.s32.totalorder %s9, 0
    %p29 = por %p27, %p28
    %p30 = scmp.ne.s32.totalorder %s19, %s22
    %p31 = scmp.eq.s32.totalorder %s14, 1
    %p32 = por %p30, %p31
    %p33 = scmp.ne.s32.totalorder %s22, %s23
    %p34 = scmp.eq.s32.totalorder %s14, 0
    %p35 = por %p33, %p34
    %p36 = scmp.ne.s32.totalorder %s22, %s23
    %p37 = scmp.eq.s32.totalorder %s15, 1
    %p38 = por %p36, %p37
    %p40 = scmp.ne.s32.totalorder %s23, %s39
    %p41 = scmp.eq.s32.totalorder %s15, 0
    %p42 = por %p40, %p41
    %s44 = sadd.s32 %s43, 1
    %p47 = scmp.eq.s32.totalorder %s9, 1
    %p48 = scmp.ne.s32.totalorder %s43, %s45
    %p49 = scmp.eq.s32.totalorder %s9, 0
    %p50 = por %p48, %p49
    %p51 = scmp.ne.s32.totalorder %s43, %s45
    %p52 = scmp.eq.s32.totalorder %s14, 1
    %p53 = por %p51, %p52
    %p54 = scmp.ne.s32.totalorder %s45, %s46
    %p55 = scmp.eq.s32.totalorder %s14, 0
    %p56 = por %p54, %p55
    %p57 = scmp.ne.s32.totalorder %s45, %s46
    %p58 = scmp.eq.s32.totalorder %s15, 1
    %p59 = por %p57, %p58
    %p61 = scmp.ne.s32.totalorder %s46, %s60
    %p62 = scmp.eq.s32.totalorder %s15, 0
    %p63 = por %p61, %p62
    %s65 = sadd.s32 %s64, 1
    %p68 = scmp.eq.s32.totalorder %s9, 1
    %p69 = scmp.ne.s32.totalorder %s64, %s66
    %p70 = scmp.eq.s32.totalorder %s9, 0
    %p71 = por %p69, %p70
    %p72 = scmp.ne.s32.totalorder %s64, %s66
    %p73 = scmp.eq.s32.totalorder %s14, 1
    %p74 = por %p72, %p73
    %p75 = scmp.ne.s32.totalorder %s66, %s67
    %p76 = scmp.eq.s32.totalorder %s14, 0
    %p77 = por %p75, %p76
    %p78 = scmp.ne.s32.totalorder %s66, %s67
    %p79 = scmp.eq.s32.totalorder %s15, 1
    %p80 = por %p78, %p79
    %p82 = scmp.ne.s32.totalorder %s67, %s81
    %p83 = scmp.eq.s32.totalorder %s15, 0
    %p84 = por %p82, %p83
    %s85 = ssub.s32 %s9, %s16
    %p86 = scmp.eq.s32.totalorder %s85, 0
    %s88 = sadd.s32 %s87, 1
    %s89 = scalar_select %p86, %s87, %s88
    %p92 = pneg %p86
    %p93 = scmp.eq.s32.totalorder %s9, 1
    %p94 = por %p92, %p93
    %p95 = scmp.ne.s32.totalorder %s87, %s90
    %p96 = scmp.eq.s32.totalorder %s9, 0
    %p97 = por %p95, %p96
    %p98 = scmp.ne.s32.totalorder %s87, %s90
    %p99 = scmp.eq.s32.totalorder %s14, 1
    %p100 = por %p98, %p99
    %p101 = scmp.ne.s32.totalorder %s90, %s91
    %p102 = scmp.eq.s32.totalorder %s14, 0
    %p103 = por %p101, %p102
    %p104 = scmp.ne.s32.totalorder %s90, %s91
    %p105 = scmp.eq.s32.totalorder %s15, 1
    %p106 = por %p104, %p105
    %p108 = scmp.ne.s32.totalorder %s91, %s107
    %p109 = scmp.eq.s32.totalorder %s15, 0
    %p110 = por %p108, %p109
    %p111 = scmp.le.s32.totalorder 1, %s9
    %p112 = scmp.lt.s32.totalorder %s9, 3
    %p113 = pnand %p111, %p112
    %p114 = pneg %p113
    // Predicated region
    $region9: #{tpu_custom_call.1} parent=5 // pred_check
      _
    $region10: #{tpu_custom_call.1} parent=5 // pred_check_branch
      %116 = sbr.rel (%p113) target = $region12
    $region11: #{tpu_custom_call.1} parent=5 // pred_region
      %s117 = ssub.s32 %s9, 1
      // Predicated region
      $region13: #{tpu_custom_call.1} parent=11 // pred_check
        %p118 = pneg %p56
      $region14: #{tpu_custom_call.1} parent=11 // pred_check_branch
        %120 = sbr.rel (%p118) target = $region16
      $region15: #{tpu_custom_call.1} parent=11 // pred_region
        _
      $region16: #{tpu_custom_call.1} parent=11 // pred_fallthru
        _
      // Predicated region
      $region17: #{tpu_custom_call.1} parent=11 // pred_check
        %p121 = pneg %p77
      $region18: #{tpu_custom_call.1} parent=11 // pred_check_branch
        %123 = sbr.rel (%p121) target = $region20
      $region19: #{tpu_custom_call.1} parent=11 // pred_region
        _
      $region20: #{tpu_custom_call.1} parent=11 // pred_fallthru
        _
    $region12: #{tpu_custom_call.1} parent=5 // pred_fallthru
      _
    %p124 = scmp.lt.s32.totalorder %s9, 2
    // Predicated region
    $region21: #{tpu_custom_call.1} parent=5 // pred_check
      %p125 = pneg %p124
    $region22: #{tpu_custom_call.1} parent=5 // pred_check_branch
      %127 = sbr.rel (%p125) target = $region24
    $region23: #{tpu_custom_call.1} parent=5 // pred_region
      // Predicated region
      $region25: #{tpu_custom_call.1} parent=23 // pred_check
        %p128 = pneg %p29
      $region26: #{tpu_custom_call.1} parent=23 // pred_check_branch
        %130 = sbr.rel (%p128) target = $region28
      $region27: #{tpu_custom_call.1} parent=23 // pred_region
        %s131 = smul.u32 32, %s9
        %p132 = scmp.lt.s32.totalorder %s131, 63
        %s133 = scalar_select %p132, %s131, 63
        %s134 = smul.addr %s133, 3
        %s135 = smul.addr %s134, 8
        %s136 = scalar_lea.vmem %s0, %s135
        %s137 = smul.u32 32, %s9
      $region28: #{tpu_custom_call.1} parent=23 // pred_fallthru
        _
    $region24: #{tpu_custom_call.1} parent=5 // pred_fallthru
      _
    %p138 = scmp.le.s32.totalorder 1, %s9
    %p139 = scmp.lt.s32.totalorder %s9, 3
    %p140 = pnand %p138, %p139
    %p141 = pneg %p140
    // Predicated region
    $region29: #{tpu_custom_call.1} parent=5 // pred_check
      _
    $region30: #{tpu_custom_call.1} parent=5 // pred_check_branch
      %143 = sbr.rel (%p140) target = $region32
    $region31: #{tpu_custom_call.1} parent=5 // pred_region
      %s144 = ssub.s32 %s9, 1
      %s145 = smul.u32 32, %s14
      %p146 = scmp.lt.s32.totalorder %s145, 63
      %s147 = scalar_select %p146, %s145, 63
      %s148 = smul.addr %s147, 3
      %s149 = smul.addr %s148, 8
      %s150 = scalar_lea.vmem %s0, %s149
      %p151 = pneg %p35
      %p152 = pneg %p32
      %p153 = pneg %p56
      %p154 = pneg %p53
      %p155 = pneg %p77
      %p156 = pneg %p74
      %p157 = pneg %p103
      %p158 = pneg %p100
      %s159 = smul.u32 32, %s14
      %p160 = scmp.lt.s32.totalorder %s159, 63
      %s161 = scalar_select %p160, %s159, 63
      %s162 = smul.addr %s161, 3
      %s163 = smul.addr %s162, 8
      %s164 = scalar_lea.vmem %s3, %s163
      %s165 = smul.u32 32, %s14
      %p166 = scmp.lt.s32.totalorder %s165, 63
      %s167 = scalar_select %p166, %s165, 63
      %s168 = smul.addr %s167, 3
      %s169 = smul.addr %s168, 8
      %s170 = scalar_lea.vmem %s0, %s169
      %s171 = smul.u32 32, %s14
      %s172 = smul.u32 32, %s14
      %p173 = scmp.lt.s32.totalorder %s172, 63
      %s174 = scalar_select %p173, %s172, 63
      %s175 = smul.addr %s174, 3
      %s176 = smul.addr %s175, 8
      %s177 = scalar_lea.vmem %s3, %s176
      %s178 = smul.u32 32, %s14
      %v179 = vld [vmem:[%s170] sm:$0xff]
      %v180 = vld [vmem:[%s170 + $0x8] sm:$0xff]
      %v181 = vld [vmem:[%s170 + $0x10] sm:$0xff]
      %v182 = vld [vmem:[%s170 + $0x18] sm:$0xff]
      %v183 = vld [vmem:[%s170 + $0x20] sm:$0xff]
      %v184 = vld [vmem:[%s170 + $0x28] sm:$0xff]
      %v185 = vld [vmem:[%s170 + $0x30] sm:$0xff]
      %v186 = vld [vmem:[%s170 + $0x38] sm:$0xff]
      %v187 = vld [vmem:[%s170 + $0x40] sm:$0xff]
      %v188 = vld [vmem:[%s170 + $0x48] sm:$0xff]
      %v189 = vld [vmem:[%s170 + $0x50] sm:$0xff]
      %v190 = vld [vmem:[%s170 + $0x58] sm:$0xff]
      %v191 = vld [vmem:[%s170 + $0x60] sm:$0xff]
      %v192 = vld [vmem:[%s170 + $0x68] sm:$0xff]
      %v193 = vld [vmem:[%s170 + $0x70] sm:$0xff]
      %v194 = vld [vmem:[%s170 + $0x78] sm:$0xff]
      %v195 = vld [vmem:[%s170 + $0x80] sm:$0xff]
      %v196 = vld [vmem:[%s170 + $0x88] sm:$0xff]
      %v197 = vld [vmem:[%s170 + $0x90] sm:$0xff]
      %v198 = vld [vmem:[%s170 + $0x98] sm:$0xff]
      %v199 = vld [vmem:[%s170 + $0xa0] sm:$0xff]
      %v200 = vld [vmem:[%s170 + $0xa8] sm:$0xff]
      %v201 = vld [vmem:[%s170 + $0xb0] sm:$0xff]
      %v202 = vld [vmem:[%s170 + $0xb8] sm:$0xff]
      %v203 = vld [vmem:[%s170 + $0xc0] sm:$0xff]
      %v204 = vld [vmem:[%s170 + $0xc8] sm:$0xff]
      %v205 = vld [vmem:[%s170 + $0xd0] sm:$0xff]
      %v206 = vld [vmem:[%s170 + $0xd8] sm:$0xff]
      %v207 = vld [vmem:[%s170 + $0xe0] sm:$0xff]
      %v208 = vld [vmem:[%s170 + $0xe8] sm:$0xff]
      %v209 = vld [vmem:[%s170 + $0xf0] sm:$0xff]
      %v210 = vld [vmem:[%s170 + $0xf8] sm:$0xff]
      %v211 = vld [vmem:[%s170 + $0x100] sm:$0xff]
      %v212 = vld [vmem:[%s170 + $0x108] sm:$0xff]
      %v213 = vld [vmem:[%s170 + $0x110] sm:$0xff]
      %v214 = vld [vmem:[%s170 + $0x118] sm:$0xff]
      %v215 = vld [vmem:[%s170 + $0x120] sm:$0xff]
      %v216 = vld [vmem:[%s170 + $0x128] sm:$0xff]
      %v217 = vld [vmem:[%s170 + $0x130] sm:$0xff]
      %v218 = vld [vmem:[%s170 + $0x138] sm:$0xff]
      %v219 = vld [vmem:[%s170 + $0x140] sm:$0xff]
      %v220 = vld [vmem:[%s170 + $0x148] sm:$0xff]
      %v221 = vld [vmem:[%s170 + $0x150] sm:$0xff]
      %v222 = vld [vmem:[%s170 + $0x158] sm:$0xff]
      %v223 = vld [vmem:[%s170 + $0x160] sm:$0xff]
      %v224 = vld [vmem:[%s170 + $0x168] sm:$0xff]
      %v225 = vld [vmem:[%s170 + $0x170] sm:$0xff]
      %v226 = vld [vmem:[%s170 + $0x178] sm:$0xff]
      %v227 = vld [vmem:[%s170 + $0x180] sm:$0xff]
      %v228 = vld [vmem:[%s170 + $0x188] sm:$0xff]
      %v229 = vld [vmem:[%s170 + $0x190] sm:$0xff]
      %v230 = vld [vmem:[%s170 + $0x198] sm:$0xff]
      %v231 = vld [vmem:[%s170 + $0x1a0] sm:$0xff]
      %v232 = vld [vmem:[%s170 + $0x1a8] sm:$0xff]
      %v233 = vld [vmem:[%s170 + $0x1b0] sm:$0xff]
      %v234 = vld [vmem:[%s170 + $0x1b8] sm:$0xff]
      %v235 = vld [vmem:[%s170 + $0x1c0] sm:$0xff]
      %v236 = vld [vmem:[%s170 + $0x1c8] sm:$0xff]
      %v237 = vld [vmem:[%s170 + $0x1d0] sm:$0xff]
      %v238 = vld [vmem:[%s170 + $0x1d8] sm:$0xff]
      %v239 = vld [vmem:[%s170 + $0x1e0] sm:$0xff]
      %v240 = vld [vmem:[%s170 + $0x1e8] sm:$0xff]
      %v241 = vld [vmem:[%s170 + $0x1f0] sm:$0xff]
      %v242 = vld [vmem:[%s170 + $0x1f8] sm:$0xff]
      %v243 = vld [vmem:[%s170 + $0x200] sm:$0xff]
      %v244 = vld [vmem:[%s170 + $0x208] sm:$0xff]
      %v245 = vld [vmem:[%s170 + $0x210] sm:$0xff]
      %v246 = vld [vmem:[%s170 + $0x218] sm:$0xff]
      %v247 = vld [vmem:[%s170 + $0x220] sm:$0xff]
      %v248 = vld [vmem:[%s170 + $0x228] sm:$0xff]
      %v249 = vld [vmem:[%s170 + $0x230] sm:$0xff]
      %v250 = vld [vmem:[%s170 + $0x238] sm:$0xff]
      %v251 = vld [vmem:[%s170 + $0x240] sm:$0xff]
      %v252 = vld [vmem:[%s170 + $0x248] sm:$0xff]
      %v253 = vld [vmem:[%s170 + $0x250] sm:$0xff]
      %v254 = vld [vmem:[%s170 + $0x258] sm:$0xff]
      %v255 = vld [vmem:[%s170 + $0x260] sm:$0xff]
      %v256 = vld [vmem:[%s170 + $0x268] sm:$0xff]
      %v257 = vld [vmem:[%s170 + $0x270] sm:$0xff]
      %v258 = vld [vmem:[%s170 + $0x278] sm:$0xff]
      %v259 = vld [vmem:[%s170 + $0x280] sm:$0xff]
      %v260 = vld [vmem:[%s170 + $0x288] sm:$0xff]
      %v261 = vld [vmem:[%s170 + $0x290] sm:$0xff]
      %v262 = vld [vmem:[%s170 + $0x298] sm:$0xff]
      %v263 = vld [vmem:[%s170 + $0x2a0] sm:$0xff]
      %v264 = vld [vmem:[%s170 + $0x2a8] sm:$0xff]
      %v265 = vld [vmem:[%s170 + $0x2b0] sm:$0xff]
      %v266 = vld [vmem:[%s170 + $0x2b8] sm:$0xff]
      %v267 = vld [vmem:[%s170 + $0x2c0] sm:$0xff]
      %v268 = vld [vmem:[%s170 + $0x2c8] sm:$0xff]
      %v269 = vld [vmem:[%s170 + $0x2d0] sm:$0xff]
      %v270 = vld [vmem:[%s170 + $0x2d8] sm:$0xff]
      %v271 = vld [vmem:[%s170 + $0x2e0] sm:$0xff]
      %v272 = vld [vmem:[%s170 + $0x2e8] sm:$0xff]
      %v273 = vld [vmem:[%s170 + $0x2f0] sm:$0xff]
      %v274 = vld [vmem:[%s170 + $0x2f8] sm:$0xff]
      %v275 = vld [vmem:[%s1] sm:$0xff]
      %v276 = vld [vmem:[%s1 + $0x8] sm:$0xff]
      %v277 = vld [vmem:[%s1 + $0x10] sm:$0xff]
      %vm278 = vcmask 195584
      %v280 = vsel %vm278, %v179, 0
      %v283 = vsel %vm278, %v180, 0
      %v286 = vsel %vm278, %v181, 0
      %v289 = vsel %vm278, %v182, 0
      %v292 = vsel %vm278, %v183, 0
      %v295 = vsel %vm278, %v184, 0
      %v298 = vsel %vm278, %v185, 0
      %v301 = vsel %vm278, %v186, 0
      %v304 = vsel %vm278, %v187, 0
      %v307 = vsel %vm278, %v188, 0
      %v310 = vsel %vm278, %v189, 0
      %v313 = vsel %vm278, %v190, 0
      %v316 = vsel %vm278, %v191, 0
      %v319 = vsel %vm278, %v192, 0
      %v322 = vsel %vm278, %v193, 0
      %v325 = vsel %vm278, %v194, 0
      %v328 = vsel %vm278, %v195, 0
      %v331 = vsel %vm278, %v196, 0
      %v334 = vsel %vm278, %v197, 0
      %v337 = vsel %vm278, %v198, 0
      %v340 = vsel %vm278, %v199, 0
      %v343 = vsel %vm278, %v200, 0
      %v346 = vsel %vm278, %v201, 0
      %v349 = vsel %vm278, %v202, 0
      %v352 = vsel %vm278, %v203, 0
      %v355 = vsel %vm278, %v204, 0
      %v358 = vsel %vm278, %v205, 0
      %v361 = vsel %vm278, %v206, 0
      %v364 = vsel %vm278, %v207, 0
      %v367 = vsel %vm278, %v208, 0
      %v370 = vsel %vm278, %v209, 0
      %v373 = vsel %vm278, %v210, 0
      %v376 = vsel %vm278, %v211, 0
      %v379 = vsel %vm278, %v212, 0
      %v382 = vsel %vm278, %v213, 0
      %v385 = vsel %vm278, %v214, 0
      %v388 = vsel %vm278, %v215, 0
      %v391 = vsel %vm278, %v216, 0
      %v394 = vsel %vm278, %v217, 0
      %v397 = vsel %vm278, %v218, 0
      %v400 = vsel %vm278, %v219, 0
      %v403 = vsel %vm278, %v220, 0
      %v406 = vsel %vm278, %v221, 0
      %v409 = vsel %vm278, %v222, 0
      %v412 = vsel %vm278, %v223, 0
      %v415 = vsel %vm278, %v224, 0
      %v418 = vsel %vm278, %v225, 0
      %v421 = vsel %vm278, %v226, 0
      %v424 = vsel %vm278, %v227, 0
      %v427 = vsel %vm278, %v228, 0
      %v430 = vsel %vm278, %v229, 0
      %v433 = vsel %vm278, %v230, 0
      %v436 = vsel %vm278, %v231, 0
      %v439 = vsel %vm278, %v232, 0
      %v442 = vsel %vm278, %v233, 0
      %v445 = vsel %vm278, %v234, 0
      %v448 = vsel %vm278, %v235, 0
      %v451 = vsel %vm278, %v236, 0
      %v454 = vsel %vm278, %v237, 0
      %v457 = vsel %vm278, %v238, 0
      %v460 = vsel %vm278, %v239, 0
      %v463 = vsel %vm278, %v240, 0
      %v466 = vsel %vm278, %v241, 0
      %v469 = vsel %vm278, %v242, 0
      %v472 = vsel %vm278, %v243, 0
      %v475 = vsel %vm278, %v244, 0
      %v478 = vsel %vm278, %v245, 0
      %v481 = vsel %vm278, %v246, 0
      %v484 = vsel %vm278, %v247, 0
      %v487 = vsel %vm278, %v248, 0
      %v490 = vsel %vm278, %v249, 0
      %v493 = vsel %vm278, %v250, 0
      %v496 = vsel %vm278, %v251, 0
      %v499 = vsel %vm278, %v252, 0
      %v502 = vsel %vm278, %v253, 0
      %v505 = vsel %vm278, %v254, 0
      %v508 = vsel %vm278, %v255, 0
      %v511 = vsel %vm278, %v256, 0
      %v514 = vsel %vm278, %v257, 0
      %v517 = vsel %vm278, %v258, 0
      %v520 = vsel %vm278, %v259, 0
      %v523 = vsel %vm278, %v260, 0
      %v526 = vsel %vm278, %v261, 0
      %v529 = vsel %vm278, %v262, 0
      %v532 = vsel %vm278, %v263, 0
      %v535 = vsel %vm278, %v264, 0
      %v538 = vsel %vm278, %v265, 0
      %v541 = vsel %vm278, %v266, 0
      %v544 = vsel %vm278, %v267, 0
      %v547 = vsel %vm278, %v268, 0
      %v550 = vsel %vm278, %v269, 0
      %v553 = vsel %vm278, %v270, 0
      %v556 = vsel %vm278, %v271, 0
      %v559 = vsel %vm278, %v272, 0
      %v562 = vsel %vm278, %v273, 0
      %v565 = vsel %vm278, %v274, 0
      %567 = vmatprep.subr.mxu0 0.0
      %568 = vmatpush1.msra.mxu0 %v275
      %569 = vmatprep.subr.mxu0 0.0
      %570 = vmatpush1.msra.mxu0 %v276
      %571 = vmatprep.subr.mxu0 0.0
      %572 = vmatpush1.msra.mxu0 %v277
      %573 = vmatprep.subr.mxu0 0.0
      %574 = vmatpush1.msra.mxu0 0.0
      %575 = vmatprep.subr.mxu0 0.0
      %576 = vmatpush1.msra.mxu0 0.0
      %577 = vmatprep.subr.mxu0 0.0
      %578 = vmatpush1.msra.mxu0 0.0
      %579 = vmatprep.subr.mxu0 0.0
      %580 = vmatpush1.msra.mxu0 0.0
      %581 = vmatprep.subr.mxu0 0.0
      %582 = vmatpush1.msra.mxu0 0.0
      %583 = vmatprep.subr.mxu0 0.0
      %584 = vmatpush1.msra.mxu0 0.0
      %585 = vmatprep.subr.mxu0 0.0
      %586 = vmatpush1.msra.mxu0 0.0
      %587 = vmatprep.subr.mxu0 0.0
      %588 = vmatpush1.msra.mxu0 0.0
      %589 = vmatprep.subr.mxu0 0.0
      %590 = vmatpush1.msra.mxu0 0.0
      %591 = vmatprep.subr.mxu0 0.0
      %592 = vmatpush1.msra.mxu0 0.0
      %593 = vmatprep.subr.mxu0 0.0
      %594 = vmatpush1.msra.mxu0 0.0
      %595 = vmatprep.subr.mxu0 0.0
      %596 = vmatpush1.msra.mxu0 0.0
      %597 = vmatprep.subr.mxu0 0.0
      %598 = vmatpush1.msra.mxu0 0.0
      %599 = vmatprep.subr.mxu0 0.0
      %600 = vmatpush1.msra.mxu0 0.0
      %601 = vmatprep.subr.mxu0 0.0
      %602 = vmatpush1.msra.mxu0 0.0
      %603 = vmatprep.subr.mxu0 0.0
      %604 = vmatpush1.msra.mxu0 0.0
      %605 = vmatprep.subr.mxu0 0.0
      %606 = vmatpush1.msra.mxu0 0.0
      %607 = vmatprep.subr.mxu0 0.0
      %608 = vmatpush1.msra.mxu0 0.0
      %609 = vmatprep.subr.mxu0 0.0
      %610 = vmatpush1.msra.mxu0 0.0
      %611 = vmatprep.subr.mxu0 0.0
      %612 = vmatpush1.msra.mxu0 0.0
      %613 = vmatprep.subr.mxu0 0.0
      %614 = vmatpush1.msra.mxu0 0.0
      %615 = vmatprep.subr.mxu0 0.0
      %616 = vmatpush1.msra.mxu0 0.0
      %617 = vmatprep.subr.mxu0 0.0
      %618 = vmatpush1.msra.mxu0 0.0
      %619 = vmatprep.subr.mxu0 0.0
      %620 = vmatpush1.msra.mxu0 0.0
      %621 = vmatprep.subr.mxu0 0.0
      %622 = vmatpush1.msra.mxu0 0.0
      %623 = vmatprep.subr.mxu0 0.0
      %624 = vmatpush1.msra.mxu0 0.0
      %625 = vmatprep.subr.mxu0 0.0
      %626 = vmatpush1.msra.mxu0 0.0
      %627 = vmatprep.subr.mxu0 0.0
      %628 = vmatpush1.msra.mxu0 0.0
      %629 = vmatprep.subr.mxu0 0.0
      %630 = vmatpush1.msra.mxu0 0.0
      %631 = vmatprep.mubr.f32.mxu0 0.0
      %632 = vmatmul.mubr.f32.gmra.mrb[0].mxu0 %v280
      %v633 = vpop.f32.mrb[0].mxu0
      %v634 = vadd.f32 0.0, %v633
      %v635 = vpop.f32.mrb[0].mxu0
      %636 = vmatprep.mubr.f32.mxu0 0.0
      %637 = vmatmul.mubr.f32.gmra.mrb[0].mxu0 %v283
      %v638 = vpop.f32.mrb[0].mxu0
      %v639 = vadd.f32 0.0, %v638
      %v640 = vpop.f32.mrb[0].mxu0
      %641 = vmatprep.mubr.f32.mxu0 0.0
      %642 = vmatmul.mubr.f32.gmra.mrb[0].mxu0 %v286
      %v643 = vpop.f32.mrb[0].mxu0
      %v644 = vadd.f32 0.0, %v643
      %v645 = vpop.f32.mrb[0].mxu0
      %646 = vmatprep.mubr.f32.mxu0 0.0
      %647 = vmatmul.mubr.f32.gmra.mrb[0].mxu0 %v289
      %v648 = vpop.f32.mrb[0].mxu0
      %v649 = vadd.f32 0.0, %v648
      %v650 = vpop.f32.mrb[0].mxu0
      %651 = vmatprep.mubr.f32.mxu0 0.0
      %652 = vmatmul.mubr.f32.gmra.mrb[0].mxu0 %v292
      %v653 = vpop.f32.mrb[0].mxu0
      %v654 = vadd.f32 0.0, %v653
      %v655 = vpop.f32.mrb[0].mxu0
      %656 = vmatprep.mubr.f32.mxu0 0.0
      %657 = vmatmul.mubr.f32.gmra.mrb[0].mxu0 %v295
      %v658 = vpop.f32.mrb[0].mxu0
      %v659 = vadd.f32 0.0, %v658
      %v660 = vpop.f32.mrb[0].mxu0
      %661 = vmatprep.mubr.f32.mxu0 0.0
      %662 = vmatmul.mubr.f32.gmra.mrb[0].mxu0 %v298
      %v663 = vpop.f32.mrb[0].mxu0
      %v664 = vadd.f32 0.0, %v663
      %v665 = vpop.f32.mrb[0].mxu0
      %666 = vmatprep.mubr.f32.mxu0 0.0
      %667 = vmatmul.mubr.f32.gmra.mrb[0].mxu0 %v301
      %v668 = vpop.f32.mrb[0].mxu0
      %v669 = vadd.f32 0.0, %v668
      %v670 = vpop.f32.mrb[0].mxu0
      %671 = vmatprep.mubr.f32.mxu0 0.0
      %672 = vmatmul.mubr.f32.gmra.mrb[0].mxu0 %v304
      %v673 = vpop.f32.mrb[0].mxu0
      %v674 = vadd.f32 0.0, %v673
      %v675 = vpop.f32.mrb[0].mxu0
      %676 = vmatprep.mubr.f32.mxu0 0.0
      %677 = vmatmul.mubr.f32.gmra.mrb[0].mxu0 %v307
      %v678 = vpop.f32.mrb[0].mxu0
      %v679 = vadd.f32 0.0, %v678
      %v680 = vpop.f32.mrb[0].mxu0
      %681 = vmatprep.mubr.f32.mxu0 0.0
      %682 = vmatmul.mubr.f32.gmra.mrb[0].mxu0 %v310
      %v683 = vpop.f32.mrb[0].mxu0
      %v684 = vadd.f32 0.0, %v683
      %v685 = vpop.f32.mrb[0].mxu0
      %686 = vmatprep.mubr.f32.mxu0 0.0
      %687 = vmatmul.mubr.f32.gmra.mrb[0].mxu0 %v313
      %v688 = vpop.f32.mrb[0].mxu0
      %v689 = vadd.f32 0.0, %v688
      %v690 = vpop.f32.mrb[0].mxu0
      %691 = vmatprep.mubr.f32.mxu0 0.0
      %692 = vmatmul.mubr.f32.gmra.mrb[0].mxu0 %v316
      %v693 = vpop.f32.mrb[0].mxu0
      %v694 = vadd.f32 0.0, %v693
      %v695 = vpop.f32.mrb[0].mxu0
      %696 = vmatprep.mubr.f32.mxu0 0.0
      %697 = vmatmul.mubr.f32.gmra.mrb[0].mxu0 %v319
      %v698 = vpop.f32.mrb[0].mxu0
      %v699 = vadd.f32 0.0, %v698
      %v700 = vpop.f32.mrb[0].mxu0
      %701 = vmatprep.mubr.f32.mxu0 0.0
      %702 = vmatmul.mubr.f32.gmra.mrb[0].mxu0 %v322
      %v703 = vpop.f32.mrb[0].mxu0
      %v704 = vadd.f32 0.0, %v703
      %v705 = vpop.f32.mrb[0].mxu0
      %706 = vmatprep.mubr.f32.mxu0 0.0
      %707 = vmatmul.mubr.f32.gmra.mrb[0].mxu0 %v325
      %v708 = vpop.f32.mrb[0].mxu0
      %v709 = vadd.f32 0.0, %v708
      %v710 = vpop.f32.mrb[0].mxu0
      %711 = vmatprep.mubr.f32.mxu0 0.0
      %712 = vmatmul.mubr.f32.gmra.mrb[0].mxu0 %v328
      %v713 = vpop.f32.mrb[0].mxu0
      %v714 = vadd.f32 0.0, %v713
      %v715 = vpop.f32.mrb[0].mxu0
      %716 = vmatprep.mubr.f32.mxu0 0.0
      %717 = vmatmul.mubr.f32.gmra.mrb[0].mxu0 %v331
      %v718 = vpop.f32.mrb[0].mxu0
      %v719 = vadd.f32 0.0, %v718
      %v720 = vpop.f32.mrb[0].mxu0
      %721 = vmatprep.mubr.f32.mxu0 0.0
      %722 = vmatmul.mubr.f32.gmra.mrb[0].mxu0 %v334
      %v723 = vpop.f32.mrb[0].mxu0
      %v724 = vadd.f32 0.0, %v723
      %v725 = vpop.f32.mrb[0].mxu0
      %726 = vmatprep.mubr.f32.mxu0 0.0
      %727 = vmatmul.mubr.f32.gmra.mrb[0].mxu0 %v337
      %v728 = vpop.f32.mrb[0].mxu0
      %v729 = vadd.f32 0.0, %v728
      %v730 = vpop.f32.mrb[0].mxu0
      %731 = vmatprep.mubr.f32.mxu0 0.0
      %732 = vmatmul.mubr.f32.gmra.mrb[0].mxu0 %v340
      %v733 = vpop.f32.mrb[0].mxu0
      %v734 = vadd.f32 0.0, %v733
      %v735 = vpop.f32.mrb[0].mxu0
      %736 = vmatprep.mubr.f32.mxu0 0.0
      %737 = vmatmul.mubr.f32.gmra.mrb[0].mxu0 %v343
      %v738 = vpop.f32.mrb[0].mxu0
      %v739 = vadd.f32 0.0, %v738
      %v740 = vpop.f32.mrb[0].mxu0
      %741 = vmatprep.mubr.f32.mxu0 0.0
      %742 = vmatmul.mubr.f32.gmra.mrb[0].mxu0 %v346
      %v743 = vpop.f32.mrb[0].mxu0
      %v744 = vadd.f32 0.0, %v743
      %v745 = vpop.f32.mrb[0].mxu0
      %746 = vmatprep.mubr.f32.mxu0 0.0
      %747 = vmatmul.mubr.f32.gmra.mrb[0].mxu0 %v349
      %v748 = vpop.f32.mrb[0].mxu0
      %v749 = vadd.f32 0.0, %v748
      %v750 = vpop.f32.mrb[0].mxu0
      %751 = vmatprep.mubr.f32.mxu0 0.0
      %752 = vmatmul.mubr.f32.gmra.mrb[0].mxu0 %v352
      %v753 = vpop.f32.mrb[0].mxu0
      %v754 = vadd.f32 0.0, %v753
      %v755 = vpop.f32.mrb[0].mxu0
      %756 = vmatprep.mubr.f32.mxu0 0.0
      %757 = vmatmul.mubr.f32.gmra.mrb[0].mxu0 %v355
      %v758 = vpop.f32.mrb[0].mxu0
      %v759 = vadd.f32 0.0, %v758
      %v760 = vpop.f32.mrb[0].mxu0
      %761 = vmatprep.mubr.f32.mxu0 0.0
      %762 = vmatmul.mubr.f32.gmra.mrb[0].mxu0 %v358
      %v763 = vpop.f32.mrb[0].mxu0
      %v764 = vadd.f32 0.0, %v763
      %v765 = vpop.f32.mrb[0].mxu0
      %766 = vmatprep.mubr.f32.mxu0 0.0
      %767 = vmatmul.mubr.f32.gmra.mrb[0].mxu0 %v361
      %v768 = vpop.f32.mrb[0].mxu0
      %v769 = vadd.f32 0.0, %v768
      %v770 = vpop.f32.mrb[0].mxu0
      %771 = vmatprep.mubr.f32.mxu0 0.0
      %772 = vmatmul.mubr.f32.gmra.mrb[0].mxu0 %v364
      %v773 = vpop.f32.mrb[0].mxu0
      %v774 = vadd.f32 0.0, %v773
      %v775 = vpop.f32.mrb[0].mxu0
      %776 = vmatprep.mubr.f32.mxu0 0.0
      %777 = vmatmul.mubr.f32.gmra.mrb[0].mxu0 %v367
      %v778 = vpop.f32.mrb[0].mxu0
      %v779 = vadd.f32 0.0, %v778
      %v780 = vpop.f32.mrb[0].mxu0
      %781 = vmatprep.mubr.f32.mxu0 0.0
      %782 = vmatmul.mubr.f32.gmra.mrb[0].mxu0 %v370
      %v783 = vpop.f32.mrb[0].mxu0
      %v784 = vadd.f32 0.0, %v783
      %v785 = vpop.f32.mrb[0].mxu0
      %786 = vmatprep.mubr.f32.mxu0 0.0
      %787 = vmatmul.mubr.f32.gmra.mrb[0].mxu0 %v373
      %v788 = vpop.f32.mrb[0].mxu0
      %v789 = vadd.f32 0.0, %v788
      %v790 = vpop.f32.mrb[0].mxu0
      %791 = vmatprep.mubr.f32.mxu0 0.0
      %792 = vmatmul.mubr.f32.gmra.mrb[0].mxu0 %v376
      %v793 = vpop.f32.mrb[0].mxu0
      %v794 = vadd.f32 0.0, %v793
      %v795 = vpop.f32.mrb[0].mxu0
      %796 = vmatprep.mubr.f32.mxu0 0.0
      %797 = vmatmul.mubr.f32.gmra.mrb[0].mxu0 %v379
      %v798 = vpop.f32.mrb[0].mxu0
      %v799 = vadd.f32 0.0, %v798
      %v800 = vpop.f32.mrb[0].mxu0
      %801 = vmatprep.mubr.f32.mxu0 0.0
      %802 = vmatmul.mubr.f32.gmra.mrb[0].mxu0 %v382
      %v803 = vpop.f32.mrb[0].mxu0
      %v804 = vadd.f32 0.0, %v803
      %v805 = vpop.f32.mrb[0].mxu0
      %806 = vmatprep.mubr.f32.mxu0 0.0
      %807 = vmatmul.mubr.f32.gmra.mrb[0].mxu0 %v385
      %v808 = vpop.f32.mrb[0].mxu0
      %v809 = vadd.f32 0.0, %v808
      %v810 = vpop.f32.mrb[0].mxu0
      %811 = vmatprep.mubr.f32.mxu0 0.0
      %812 = vmatmul.mubr.f32.gmra.mrb[0].mxu0 %v388
      %v813 = vpop.f32.mrb[0].mxu0
      %v814 = vadd.f32 0.0, %v813
      %v815 = vpop.f32.mrb[0].mxu0
      %816 = vmatprep.mubr.f32.mxu0 0.0
      %817 = vmatmul.mubr.f32.gmra.mrb[0].mxu0 %v391
      %v818 = vpop.f32.mrb[0].mxu0
      %v819 = vadd.f32 0.0, %v818
      %v820 = vpop.f32.mrb[0].mxu0
      %821 = vmatprep.mubr.f32.mxu0 0.0
      %822 = vmatmul.mubr.f32.gmra.mrb[0].mxu0 %v394
      %v823 = vpop.f32.mrb[0].mxu0
      %v824 = vadd.f32 0.0, %v823
      %v825 = vpop.f32.mrb[0].mxu0
      %826 = vmatprep.mubr.f32.mxu0 0.0
      %827 = vmatmul.mubr.f32.gmra.mrb[0].mxu0 %v397
      %v828 = vpop.f32.mrb[0].mxu0
      %v829 = vadd.f32 0.0, %v828
      %v830 = vpop.f32.mrb[0].mxu0
      %831 = vmatprep.mubr.f32.mxu0 0.0
      %832 = vmatmul.mubr.f32.gmra.mrb[0].mxu0 %v400
      %v833 = vpop.f32.mrb[0].mxu0
      %v834 = vadd.f32 0.0, %v833
      %v835 = vpop.f32.mrb[0].mxu0
      %836 = vmatprep.mubr.f32.mxu0 0.0
      %837 = vmatmul.mubr.f32.gmra.mrb[0].mxu0 %v403
      %v838 = vpop.f32.mrb[0].mxu0
      %v839 = vadd.f32 0.0, %v838
      %v840 = vpop.f32.mrb[0].mxu0
      %841 = vmatprep.mubr.f32.mxu0 0.0
      %842 = vmatmul.mubr.f32.gmra.mrb[0].mxu0 %v406
      %v843 = vpop.f32.mrb[0].mxu0
      %v844 = vadd.f32 0.0, %v843
      %v845 = vpop.f32.mrb[0].mxu0
      %846 = vmatprep.mubr.f32.mxu0 0.0
      %847 = vmatmul.mubr.f32.gmra.mrb[0].mxu0 %v409
      %v848 = vpop.f32.mrb[0].mxu0
      %v849 = vadd.f32 0.0, %v848
      %v850 = vpop.f32.mrb[0].mxu0
      %851 = vmatprep.mubr.f32.mxu0 0.0
      %852 = vmatmul.mubr.f32.gmra.mrb[0].mxu0 %v412
      %v853 = vpop.f32.mrb[0].mxu0
      %v854 = vadd.f32 0.0, %v853
      %v855 = vpop.f32.mrb[0].mxu0
      %856 = vmatprep.mubr.f32.mxu0 0.0
      %857 = vmatmul.mubr.f32.gmra.mrb[0].mxu0 %v415
      %v858 = vpop.f32.mrb[0].mxu0
      %v859 = vadd.f32 0.0, %v858
      %v860 = vpop.f32.mrb[0].mxu0
      %861 = vmatprep.mubr.f32.mxu0 0.0
      %862 = vmatmul.mubr.f32.gmra.mrb[0].mxu0 %v418
      %v863 = vpop.f32.mrb[0].mxu0
      %v864 = vadd.f32 0.0, %v863
      %v865 = vpop.f32.mrb[0].mxu0
      %866 = vmatprep.mubr.f32.mxu0 0.0
      %867 = vmatmul.mubr.f32.gmra.mrb[0].mxu0 %v421
      %v868 = vpop.f32.mrb[0].mxu0
      %v869 = vadd.f32 0.0, %v868
      %v870 = vpop.f32.mrb[0].mxu0
      %871 = vmatprep.mubr.f32.mxu0 0.0
      %872 = vmatmul.mubr.f32.gmra.mrb[0].mxu0 %v424
      %v873 = vpop.f32.mrb[0].mxu0
      %v874 = vadd.f32 0.0, %v873
      %v875 = vpop.f32.mrb[0].mxu0
      %876 = vmatprep.mubr.f32.mxu0 0.0
      %877 = vmatmul.mubr.f32.gmra.mrb[0].mxu0 %v427
      %v878 = vpop.f32.mrb[0].mxu0
      %v879 = vadd.f32 0.0, %v878
      %v880 = vpop.f32.mrb[0].mxu0
      %881 = vmatprep.mubr.f32.mxu0 0.0
      %882 = vmatmul.mubr.f32.gmra.mrb[0].mxu0 %v430
      %v883 = vpop.f32.mrb[0].mxu0
      %v884 = vadd.f32 0.0, %v883
      %v885 = vpop.f32.mrb[0].mxu0
      %886 = vmatprep.mubr.f32.mxu0 0.0
      %887 = vmatmul.mubr.f32.gmra.mrb[0].mxu0 %v433
      %v888 = vpop.f32.mrb[0].mxu0
      %v889 = vadd.f32 0.0, %v888
      %v890 = vpop.f32.mrb[0].mxu0
      %891 = vmatprep.mubr.f32.mxu0 0.0
      %892 = vmatmul.mubr.f32.gmra.mrb[0].mxu0 %v436
      %v893 = vpop.f32.mrb[0].mxu0
      %v894 = vadd.f32 0.0, %v893
      %v895 = vpop.f32.mrb[0].mxu0
      %896 = vmatprep.mubr.f32.mxu0 0.0
      %897 = vmatmul.mubr.f32.gmra.mrb[0].mxu0 %v439
      %v898 = vpop.f32.mrb[0].mxu0
      %v899 = vadd.f32 0.0, %v898
      %v900 = vpop.f32.mrb[0].mxu0
      %901 = vmatprep.mubr.f32.mxu0 0.0
      %902 = vmatmul.mubr.f32.gmra.mrb[0].mxu0 %v442
      %v903 = vpop.f32.mrb[0].mxu0
      %v904 = vadd.f32 0.0, %v903
      %v905 = vpop.f32.mrb[0].mxu0
      %906 = vmatprep.mubr.f32.mxu0 0.0
      %907 = vmatmul.mubr.f32.gmra.mrb[0].mxu0 %v445
      %v908 = vpop.f32.mrb[0].mxu0
      %v909 = vadd.f32 0.0, %v908
      %v910 = vpop.f32.mrb[0].mxu0
      %911 = vmatprep.mubr.f32.mxu0 0.0
      %912 = vmatmul.mubr.f32.gmra.mrb[0].mxu0 %v448
      %v913 = vpop.f32.mrb[0].mxu0
      %v914 = vadd.f32 0.0, %v913
      %v915 = vpop.f32.mrb[0].mxu0
      %916 = vmatprep.mubr.f32.mxu0 0.0
      %917 = vmatmul.mubr.f32.gmra.mrb[0].mxu0 %v451
      %v918 = vpop.f32.mrb[0].mxu0
      %v919 = vadd.f32 0.0, %v918
      %v920 = vpop.f32.mrb[0].mxu0
      %921 = vmatprep.mubr.f32.mxu0 0.0
      %922 = vmatmul.mubr.f32.gmra.mrb[0].mxu0 %v454
      %v923 = vpop.f32.mrb[0].mxu0
      %v924 = vadd.f32 0.0, %v923
      %v925 = vpop.f32.mrb[0].mxu0
      %926 = vmatprep.mubr.f32.mxu0 0.0
      %927 = vmatmul.mubr.f32.gmra.mrb[0].mxu0 %v457
      %v928 = vpop.f32.mrb[0].mxu0
      %v929 = vadd.f32 0.0, %v928
      %v930 = vpop.f32.mrb[0].mxu0
      %931 = vmatprep.mubr.f32.mxu0 0.0
      %932 = vmatmul.mubr.f32.gmra.mrb[0].mxu0 %v460
      %v933 = vpop.f32.mrb[0].mxu0
      %v934 = vadd.f32 0.0, %v933
      %v935 = vpop.f32.mrb[0].mxu0
      %936 = vmatprep.mubr.f32.mxu0 0.0
      %937 = vmatmul.mubr.f32.gmra.mrb[0].mxu0 %v463
      %v938 = vpop.f32.mrb[0].mxu0
      %v939 = vadd.f32 0.0, %v938
      %v940 = vpop.f32.mrb[0].mxu0
      %941 = vmatprep.mubr.f32.mxu0 0.0
      %942 = vmatmul.mubr.f32.gmra.mrb[0].mxu0 %v466
      %v943 = vpop.f32.mrb[0].mxu0
      %v944 = vadd.f32 0.0, %v943
      %v945 = vpop.f32.mrb[0].mxu0
      %946 = vmatprep.mubr.f32.mxu0 0.0
      %947 = vmatmul.mubr.f32.gmra.mrb[0].mxu0 %v469
      %v948 = vpop.f32.mrb[0].mxu0
      %v949 = vadd.f32 0.0, %v948
      %v950 = vpop.f32.mrb[0].mxu0
      %951 = vmatprep.mubr.f32.mxu0 0.0
      %952 = vmatmul.mubr.f32.gmra.mrb[0].mxu0 %v472
      %v953 = vpop.f32.mrb[0].mxu0
      %v954 = vadd.f32 0.0, %v953
      %v955 = vpop.f32.mrb[0].mxu0
      %956 = vmatprep.mubr.f32.mxu0 0.0
      %957 = vmatmul.mubr.f32.gmra.mrb[0].mxu0 %v475
      %v958 = vpop.f32.mrb[0].mxu0
      %v959 = vadd.f32 0.0, %v958
      %v960 = vpop.f32.mrb[0].mxu0
      %961 = vmatprep.mubr.f32.mxu0 0.0
      %962 = vmatmul.mubr.f32.gmra.mrb[0].mxu0 %v478
      %v963 = vpop.f32.mrb[0].mxu0
      %v964 = vadd.f32 0.0, %v963
      %v965 = vpop.f32.mrb[0].mxu0
      %966 = vmatprep.mubr.f32.mxu0 0.0
      %967 = vmatmul.mubr.f32.gmra.mrb[0].mxu0 %v481
      %v968 = vpop.f32.mrb[0].mxu0
      %v969 = vadd.f32 0.0, %v968
      %v970 = vpop.f32.mrb[0].mxu0
      %971 = vmatprep.mubr.f32.mxu0 0.0
      %972 = vmatmul.mubr.f32.gmra.mrb[0].mxu0 %v484
      %v973 = vpop.f32.mrb[0].mxu0
      %v974 = vadd.f32 0.0, %v973
      %v975 = vpop.f32.mrb[0].mxu0
      %976 = vmatprep.mubr.f32.mxu0 0.0
      %977 = vmatmul.mubr.f32.gmra.mrb[0].mxu0 %v487
      %v978 = vpop.f32.mrb[0].mxu0
      %v979 = vadd.f32 0.0, %v978
      %v980 = vpop.f32.mrb[0].mxu0
      %981 = vmatprep.mubr.f32.mxu0 0.0
      %982 = vmatmul.mubr.f32.gmra.mrb[0].mxu0 %v490
      %v983 = vpop.f32.mrb[0].mxu0
      %v984 = vadd.f32 0.0, %v983
      %v985 = vpop.f32.mrb[0].mxu0
      %986 = vmatprep.mubr.f32.mxu0 0.0
      %987 = vmatmul.mubr.f32.gmra.mrb[0].mxu0 %v493
      %v988 = vpop.f32.mrb[0].mxu0
      %v989 = vadd.f32 0.0, %v988
      %v990 = vpop.f32.mrb[0].mxu0
      %991 = vmatprep.mubr.f32.mxu0 0.0
      %992 = vmatmul.mubr.f32.gmra.mrb[0].mxu0 %v496
      %v993 = vpop.f32.mrb[0].mxu0
      %v994 = vadd.f32 0.0, %v993
      %v995 = vpop.f32.mrb[0].mxu0
      %996 = vmatprep.mubr.f32.mxu0 0.0
      %997 = vmatmul.mubr.f32.gmra.mrb[0].mxu0 %v499
      %v998 = vpop.f32.mrb[0].mxu0
      %v999 = vadd.f32 0.0, %v998
      %v1000 = vpop.f32.mrb[0].mxu0
      %1001 = vmatprep.mubr.f32.mxu0 0.0
      %1002 = vmatmul.mubr.f32.gmra.mrb[0].mxu0 %v502
      %v1003 = vpop.f32.mrb[0].mxu0
      %v1004 = vadd.f32 0.0, %v1003
      %v1005 = vpop.f32.mrb[0].mxu0
      %1006 = vmatprep.mubr.f32.mxu0 0.0
      %1007 = vmatmul.mubr.f32.gmra.mrb[0].mxu0 %v505
      %v1008 = vpop.f32.mrb[0].mxu0
      %v1009 = vadd.f32 0.0, %v1008
      %v1010 = vpop.f32.mrb[0].mxu0
      %1011 = vmatprep.mubr.f32.mxu0 0.0
      %1012 = vmatmul.mubr.f32.gmra.mrb[0].mxu0 %v508
      %v1013 = vpop.f32.mrb[0].mxu0
      %v1014 = vadd.f32 0.0, %v1013
      %v1015 = vpop.f32.mrb[0].mxu0
      %1016 = vmatprep.mubr.f32.mxu0 0.0
      %1017 = vmatmul.mubr.f32.gmra.mrb[0].mxu0 %v511
      %v1018 = vpop.f32.mrb[0].mxu0
      %v1019 = vadd.f32 0.0, %v1018
      %v1020 = vpop.f32.mrb[0].mxu0
      %1021 = vmatprep.mubr.f32.mxu0 0.0
      %1022 = vmatmul.mubr.f32.gmra.mrb[0].mxu0 %v514
      %v1023 = vpop.f32.mrb[0].mxu0
      %v1024 = vadd.f32 0.0, %v1023
      %v1025 = vpop.f32.mrb[0].mxu0
      %1026 = vmatprep.mubr.f32.mxu0 0.0
      %1027 = vmatmul.mubr.f32.gmra.mrb[0].mxu0 %v517
      %v1028 = vpop.f32.mrb[0].mxu0
      %v1029 = vadd.f32 0.0, %v1028
      %v1030 = vpop.f32.mrb[0].mxu0
      %1031 = vmatprep.mubr.f32.mxu0 0.0
      %1032 = vmatmul.mubr.f32.gmra.mrb[0].mxu0 %v520
      %v1033 = vpop.f32.mrb[0].mxu0
      %v1034 = vadd.f32 0.0, %v1033
      %v1035 = vpop.f32.mrb[0].mxu0
      %1036 = vmatprep.mubr.f32.mxu0 0.0
      %1037 = vmatmul.mubr.f32.gmra.mrb[0].mxu0 %v523
      %v1038 = vpop.f32.mrb[0].mxu0
      %v1039 = vadd.f32 0.0, %v1038
      %v1040 = vpop.f32.mrb[0].mxu0
      %1041 = vmatprep.mubr.f32.mxu0 0.0
      %1042 = vmatmul.mubr.f32.gmra.mrb[0].mxu0 %v526
      %v1043 = vpop.f32.mrb[0].mxu0
      %v1044 = vadd.f32 0.0, %v1043
      %v1045 = vpop.f32.mrb[0].mxu0
      %1046 = vmatprep.mubr.f32.mxu0 0.0
      %1047 = vmatmul.mubr.f32.gmra.mrb[0].mxu0 %v529
      %v1048 = vpop.f32.mrb[0].mxu0
      %v1049 = vadd.f32 0.0, %v1048
      %v1050 = vpop.f32.mrb[0].mxu0
      %1051 = vmatprep.mubr.f32.mxu0 0.0
      %1052 = vmatmul.mubr.f32.gmra.mrb[0].mxu0 %v532
      %v1053 = vpop.f32.mrb[0].mxu0
      %v1054 = vadd.f32 0.0, %v1053
      %v1055 = vpop.f32.mrb[0].mxu0
      %1056 = vmatprep.mubr.f32.mxu0 0.0
      %1057 = vmatmul.mubr.f32.gmra.mrb[0].mxu0 %v535
      %v1058 = vpop.f32.mrb[0].mxu0
      %v1059 = vadd.f32 0.0, %v1058
      %v1060 = vpop.f32.mrb[0].mxu0
      %1061 = vmatprep.mubr.f32.mxu0 0.0
      %1062 = vmatmul.mubr.f32.gmra.mrb[0].mxu0 %v538
      %v1063 = vpop.f32.mrb[0].mxu0
      %v1064 = vadd.f32 0.0, %v1063
      %v1065 = vpop.f32.mrb[0].mxu0
      %1066 = vmatprep.mubr.f32.mxu0 0.0
      %1067 = vmatmul.mubr.f32.gmra.mrb[0].mxu0 %v541
      %v1068 = vpop.f32.mrb[0].mxu0
      %v1069 = vadd.f32 0.0, %v1068
      %v1070 = vpop.f32.mrb[0].mxu0
      %1071 = vmatprep.mubr.f32.mxu0 0.0
      %1072 = vmatmul.mubr.f32.gmra.mrb[0].mxu0 %v544
      %v1073 = vpop.f32.mrb[0].mxu0
      %v1074 = vadd.f32 0.0, %v1073
      %v1075 = vpop.f32.mrb[0].mxu0
      %1076 = vmatprep.mubr.f32.mxu0 0.0
      %1077 = vmatmul.mubr.f32.gmra.mrb[0].mxu0 %v547
      %v1078 = vpop.f32.mrb[0].mxu0
      %v1079 = vadd.f32 0.0, %v1078
      %v1080 = vpop.f32.mrb[0].mxu0
      %1081 = vmatprep.mubr.f32.mxu0 0.0
      %1082 = vmatmul.mubr.f32.gmra.mrb[0].mxu0 %v550
      %v1083 = vpop.f32.mrb[0].mxu0
      %v1084 = vadd.f32 0.0, %v1083
      %v1085 = vpop.f32.mrb[0].mxu0
      %1086 = vmatprep.mubr.f32.mxu0 0.0
      %1087 = vmatmul.mubr.f32.gmra.mrb[0].mxu0 %v553
      %v1088 = vpop.f32.mrb[0].mxu0
      %v1089 = vadd.f32 0.0, %v1088
      %v1090 = vpop.f32.mrb[0].mxu0
      %1091 = vmatprep.mubr.f32.mxu0 0.0
      %1092 = vmatmul.mubr.f32.gmra.mrb[0].mxu0 %v556
      %v1093 = vpop.f32.mrb[0].mxu0
      %v1094 = vadd.f32 0.0, %v1093
      %v1095 = vpop.f32.mrb[0].mxu0
      %1096 = vmatprep.mubr.f32.mxu0 0.0
      %1097 = vmatmul.mubr.f32.gmra.mrb[0].mxu0 %v559
      %v1098 = vpop.f32.mrb[0].mxu0
      %v1099 = vadd.f32 0.0, %v1098
      %v1100 = vpop.f32.mrb[0].mxu0
      %1101 = vmatprep.mubr.f32.mxu0 0.0
      %1102 = vmatmul.mubr.f32.gmra.mrb[0].mxu0 %v562
      %v1103 = vpop.f32.mrb[0].mxu0
      %v1104 = vadd.f32 0.0, %v1103
      %v1105 = vpop.f32.mrb[0].mxu0
      %1106 = vmatprep.mubr.f32.mxu0 0.0
      %1107 = vmatmul.mubr.f32.gmra.mrb[0].mxu0 %v565
      %v1108 = vpop.f32.mrb[0].mxu0
      %v1109 = vadd.f32 0.0, %v1108
      %v1110 = vpop.f32.mrb[0].mxu0
      %1111 = vdwg.mxu0
      %v1112 = vmax.f32 %v634, 0.0
      %v1113 = vmax.f32 %v639, 0.0
      %v1114 = vmax.f32 %v644, 0.0
      %v1115 = vmax.f32 %v649, 0.0
      %v1116 = vmax.f32 %v654, 0.0
      %v1117 = vmax.f32 %v659, 0.0
      %v1118 = vmax.f32 %v664, 0.0
      %v1119 = vmax.f32 %v669, 0.0
      %v1120 = vmax.f32 %v674, 0.0
      %v1121 = vmax.f32 %v679, 0.0
      %v1122 = vmax.f32 %v684, 0.0
      %v1123 = vmax.f32 %v689, 0.0
      %v1124 = vmax.f32 %v694, 0.0
      %v1125 = vmax.f32 %v699, 0.0
      %v1126 = vmax.f32 %v704, 0.0
      %v1127 = vmax.f32 %v709, 0.0
      %v1128 = vmax.f32 %v714, 0.0
      %v1129 = vmax.f32 %v719, 0.0
      %v1130 = vmax.f32 %v724, 0.0
      %v1131 = vmax.f32 %v729, 0.0
      %v1132 = vmax.f32 %v734, 0.0
      %v1133 = vmax.f32 %v739, 0.0
      %v1134 = vmax.f32 %v744, 0.0
      %v1135 = vmax.f32 %v749, 0.0
      %v1136 = vmax.f32 %v754, 0.0
      %v1137 = vmax.f32 %v759, 0.0
      %v1138 = vmax.f32 %v764, 0.0
      %v1139 = vmax.f32 %v769, 0.0
      %v1140 = vmax.f32 %v774, 0.0
      %v1141 = vmax.f32 %v779, 0.0
      %v1142 = vmax.f32 %v784, 0.0
      %v1143 = vmax.f32 %v789, 0.0
      %v1144 = vmax.f32 %v794, 0.0
      %v1145 = vmax.f32 %v799, 0.0
      %v1146 = vmax.f32 %v804, 0.0
      %v1147 = vmax.f32 %v809, 0.0
      %v1148 = vmax.f32 %v814, 0.0
      %v1149 = vmax.f32 %v819, 0.0
      %v1150 = vmax.f32 %v824, 0.0
      %v1151 = vmax.f32 %v829, 0.0
      %v1152 = vmax.f32 %v834, 0.0
      %v1153 = vmax.f32 %v839, 0.0
      %v1154 = vmax.f32 %v844, 0.0
      %v1155 = vmax.f32 %v849, 0.0
      %v1156 = vmax.f32 %v854, 0.0
      %v1157 = vmax.f32 %v859, 0.0
      %v1158 = vmax.f32 %v864, 0.0
      %v1159 = vmax.f32 %v869, 0.0
      %v1160 = vmax.f32 %v874, 0.0
      %v1161 = vmax.f32 %v879, 0.0
      %v1162 = vmax.f32 %v884, 0.0
      %v1163 = vmax.f32 %v889, 0.0
      %v1164 = vmax.f32 %v894, 0.0
      %v1165 = vmax.f32 %v899, 0.0
      %v1166 = vmax.f32 %v904, 0.0
      %v1167 = vmax.f32 %v909, 0.0
      %v1168 = vmax.f32 %v914, 0.0
      %v1169 = vmax.f32 %v919, 0.0
      %v1170 = vmax.f32 %v924, 0.0
      %v1171 = vmax.f32 %v929, 0.0
      %v1172 = vmax.f32 %v934, 0.0
      %v1173 = vmax.f32 %v939, 0.0
      %v1174 = vmax.f32 %v944, 0.0
      %v1175 = vmax.f32 %v949, 0.0
      %v1176 = vmax.f32 %v954, 0.0
      %v1177 = vmax.f32 %v959, 0.0
      %v1178 = vmax.f32 %v964, 0.0
      %v1179 = vmax.f32 %v969, 0.0
      %v1180 = vmax.f32 %v974, 0.0
      %v1181 = vmax.f32 %v979, 0.0
      %v1182 = vmax.f32 %v984, 0.0
      %v1183 = vmax.f32 %v989, 0.0
      %v1184 = vmax.f32 %v994, 0.0
      %v1185 = vmax.f32 %v999, 0.0
      %v1186 = vmax.f32 %v1004, 0.0
      %v1187 = vmax.f32 %v1009, 0.0
      %v1188 = vmax.f32 %v1014, 0.0
      %v1189 = vmax.f32 %v1019, 0.0
      %v1190 = vmax.f32 %v1024, 0.0
      %v1191 = vmax.f32 %v1029, 0.0
      %v1192 = vmax.f32 %v1034, 0.0
      %v1193 = vmax.f32 %v1039, 0.0
      %v1194 = vmax.f32 %v1044, 0.0
      %v1195 = vmax.f32 %v1049, 0.0
      %v1196 = vmax.f32 %v1054, 0.0
      %v1197 = vmax.f32 %v1059, 0.0
      %v1198 = vmax.f32 %v1064, 0.0
      %v1199 = vmax.f32 %v1069, 0.0
      %v1200 = vmax.f32 %v1074, 0.0
      %v1201 = vmax.f32 %v1079, 0.0
      %v1202 = vmax.f32 %v1084, 0.0
      %v1203 = vmax.f32 %v1089, 0.0
      %v1204 = vmax.f32 %v1094, 0.0
      %v1205 = vmax.f32 %v1099, 0.0
      %v1206 = vmax.f32 %v1104, 0.0
      %v1207 = vmax.f32 %v1109, 0.0
      %v1208 = vld [vmem:[%s2] sm:$0xff]
      %v1209 = vld [vmem:[%s2 + $0x8] sm:$0xff]
      %v1210 = vld [vmem:[%s2 + $0x10] sm:$0xff]
      %v1211 = vld [vmem:[%s2 + $0x18] sm:$0xff]
      %vm1212 = vcmask 261120
      %v1214 = vsel %vm1212, %v1112, 0
      %v1217 = vsel %vm1212, %v1113, 0
      %v1220 = vsel %vm1212, %v1114, 0
      %v1223 = vsel %vm1212, %v1115, 0
      %v1226 = vsel %vm1212, %v1116, 0
      %v1229 = vsel %vm1212, %v1117, 0
      %v1232 = vsel %vm1212, %v1118, 0
      %v1235 = vsel %vm1212, %v1119, 0
      %v1238 = vsel %vm1212, %v1120, 0
      %v1241 = vsel %vm1212, %v1121, 0
      %v1244 = vsel %vm1212, %v1122, 0
      %v1247 = vsel %vm1212, %v1123, 0
      %v1250 = vsel %vm1212, %v1124, 0
      %v1253 = vsel %vm1212, %v1125, 0
      %v1256 = vsel %vm1212, %v1126, 0
      %v1259 = vsel %vm1212, %v1127, 0
      %v1262 = vsel %vm1212, %v1128, 0
      %v1265 = vsel %vm1212, %v1129, 0
      %v1268 = vsel %vm1212, %v1130, 0
      %v1271 = vsel %vm1212, %v1131, 0
      %v1274 = vsel %vm1212, %v1132, 0
      %v1277 = vsel %vm1212, %v1133, 0
      %v1280 = vsel %vm1212, %v1134, 0
      %v1283 = vsel %vm1212, %v1135, 0
      %v1286 = vsel %vm1212, %v1136, 0
      %v1289 = vsel %vm1212, %v1137, 0
      %v1292 = vsel %vm1212, %v1138, 0
      %v1295 = vsel %vm1212, %v1139, 0
      %v1298 = vsel %vm1212, %v1140, 0
      %v1301 = vsel %vm1212, %v1141, 0
      %v1304 = vsel %vm1212, %v1142, 0
      %v1307 = vsel %vm1212, %v1143, 0
      %v1310 = vsel %vm1212, %v1144, 0
      %v1313 = vsel %vm1212, %v1145, 0
      %v1316 = vsel %vm1212, %v1146, 0
      %v1319 = vsel %vm1212, %v1147, 0
      %v1322 = vsel %vm1212, %v1148, 0
      %v1325 = vsel %vm1212, %v1149, 0
      %v1328 = vsel %vm1212, %v1150, 0
      %v1331 = vsel %vm1212, %v1151, 0
      %v1334 = vsel %vm1212, %v1152, 0
      %v1337 = vsel %vm1212, %v1153, 0
      %v1340 = vsel %vm1212, %v1154, 0
      %v1343 = vsel %vm1212, %v1155, 0
      %v1346 = vsel %vm1212, %v1156, 0
      %v1349 = vsel %vm1212, %v1157, 0
      %v1352 = vsel %vm1212, %v1158, 0
      %v1355 = vsel %vm1212, %v1159, 0
      %v1358 = vsel %vm1212, %v1160, 0
      %v1361 = vsel %vm1212, %v1161, 0
      %v1364 = vsel %vm1212, %v1162, 0
      %v1367 = vsel %vm1212, %v1163, 0
      %v1370 = vsel %vm1212, %v1164, 0
      %v1373 = vsel %vm1212, %v1165, 0
      %v1376 = vsel %vm1212, %v1166, 0
      %v1379 = vsel %vm1212, %v1167, 0
      %v1382 = vsel %vm1212, %v1168, 0
      %v1385 = vsel %vm1212, %v1169, 0
      %v1388 = vsel %vm1212, %v1170, 0
      %v1391 = vsel %vm1212, %v1171, 0
      %v1394 = vsel %vm1212, %v1172, 0
      %v1397 = vsel %vm1212, %v1173, 0
      %v1400 = vsel %vm1212, %v1174, 0
      %v1403 = vsel %vm1212, %v1175, 0
      %v1406 = vsel %vm1212, %v1176, 0
      %v1409 = vsel %vm1212, %v1177, 0
      %v1412 = vsel %vm1212, %v1178, 0
      %v1415 = vsel %vm1212, %v1179, 0
      %v1418 = vsel %vm1212, %v1180, 0
      %v1421 = vsel %vm1212, %v1181, 0
      %v1424 = vsel %vm1212, %v1182, 0
      %v1427 = vsel %vm1212, %v1183, 0
      %v1430 = vsel %vm1212, %v1184, 0
      %v1433 = vsel %vm1212, %v1185, 0
      %v1436 = vsel %vm1212, %v1186, 0
      %v1439 = vsel %vm1212, %v1187, 0
      %v1442 = vsel %vm1212, %v1188, 0
      %v1445 = vsel %vm1212, %v1189, 0
      %v1448 = vsel %vm1212, %v1190, 0
      %v1451 = vsel %vm1212, %v1191, 0
      %v1454 = vsel %vm1212, %v1192, 0
      %v1457 = vsel %vm1212, %v1193, 0
      %v1460 = vsel %vm1212, %v1194, 0
      %v1463 = vsel %vm1212, %v1195, 0
      %v1466 = vsel %vm1212, %v1196, 0
      %v1469 = vsel %vm1212, %v1197, 0
      %v1472 = vsel %vm1212, %v1198, 0
      %v1475 = vsel %vm1212, %v1199, 0
      %v1478 = vsel %vm1212, %v1200, 0
      %v1481 = vsel %vm1212, %v1201, 0
      %v1484 = vsel %vm1212, %v1202, 0
      %v1487 = vsel %vm1212, %v1203, 0
      %v1490 = vsel %vm1212, %v1204, 0
      %v1493 = vsel %vm1212, %v1205, 0
      %v1496 = vsel %vm1212, %v1206, 0
      %v1499 = vsel %vm1212, %v1207, 0
      %1501 = vmatprep.subr.mxu0 0.0
      %1502 = vmatpush1.msra.mxu0 %v1208
      %1503 = vmatprep.subr.mxu0 0.0
      %1504 = vmatpush1.msra.mxu0 %v1209
      %1505 = vmatprep.subr.mxu0 0.0
      %1506 = vmatpush1.msra.mxu0 %v1210
      %1507 = vmatprep.subr.mxu0 0.0
      %1508 = vmatpush1.msra.mxu0 %v1211
      %1509 = vmatprep.subr.mxu0 0.0
      %1510 = vmatpush1.msra.mxu0 0.0
      %1511 = vmatprep.subr.mxu0 0.0
      %1512 = vmatpush1.msra.mxu0 0.0
      %1513 = vmatprep.subr.mxu0 0.0
      %1514 = vmatpush1.msra.mxu0 0.0
      %1515 = vmatprep.subr.mxu0 0.0
      %1516 = vmatpush1.msra.mxu0 0.0
      %1517 = vmatprep.subr.mxu0 0.0
      %1518 = vmatpush1.msra.mxu0 0.0
      %1519 = vmatprep.subr.mxu0 0.0
      %1520 = vmatpush1.msra.mxu0 0.0
      %1521 = vmatprep.subr.mxu0 0.0
      %1522 = vmatpush1.msra.mxu0 0.0
      %1523 = vmatprep.subr.mxu0 0.0
      %1524 = vmatpush1.msra.mxu0 0.0
      %1525 = vmatprep.subr.mxu0 0.0
      %1526 = vmatpush1.msra.mxu0 0.0
      %1527 = vmatprep.subr.mxu0 0.0
      %1528 = vmatpush1.msra.mxu0 0.0
      %1529 = vmatprep.subr.mxu0 0.0
      %1530 = vmatpush1.msra.mxu0 0.0
      %1531 = vmatprep.subr.mxu0 0.0
      %1532 = vmatpush1.msra.mxu0 0.0
      %1533 = vmatprep.subr.mxu0 0.0
      %1534 = vmatpush1.msra.mxu0 0.0
      %1535 = vmatprep.subr.mxu0 0.0
      %1536 = vmatpush1.msra.mxu0 0.0
      %1537 = vmatprep.subr.mxu0 0.0
      %1538 = vmatpush1.msra.mxu0 0.0
      %1539 = vmatprep.subr.mxu0 0.0
      %1540 = vmatpush1.msra.mxu0 0.0
      %1541 = vmatprep.subr.mxu0 0.0
      %1542 = vmatpush1.msra.mxu0 0.0
      %1543 = vmatprep.subr.mxu0 0.0
      %1544 = vmatpush1.msra.mxu0 0.0
      %1545 = vmatprep.subr.mxu0 0.0
      %1546 = vmatpush1.msra.mxu0 0.0
      %1547 = vmatprep.subr.mxu0 0.0
      %1548 = vmatpush1.msra.mxu0 0.0
      %1549 = vmatprep.subr.mxu0 0.0
      %1550 = vmatpush1.msra.mxu0 0.0
      %1551 = vmatprep.subr.mxu0 0.0
      %1552 = vmatpush1.msra.mxu0 0.0
      %1553 = vmatprep.subr.mxu0 0.0
      %1554 = vmatpush1.msra.mxu0 0.0
      %1555 = vmatprep.subr.mxu0 0.0
      %1556 = vmatpush1.msra.mxu0 0.0
      %1557 = vmatprep.subr.mxu0 0.0
      %1558 = vmatpush1.msra.mxu0 0.0
      %1559 = vmatprep.subr.mxu0 0.0
      %1560 = vmatpush1.msra.mxu0 0.0
      %1561 = vmatprep.subr.mxu0 0.0
      %1562 = vmatpush1.msra.mxu0 0.0
      %1563 = vmatprep.subr.mxu0 0.0
      %1564 = vmatpush1.msra.mxu0 0.0
      %1565 = vmatprep.mubr.f32.mxu0 0.0
      %1566 = vmatmul.mubr.f32.gmra.mrb[0].mxu0 %v1214
      %v1567 = vpop.f32.mrb[0].mxu0
      %v1568 = vadd.f32 0.0, %v1567
      %v1569 = vpop.f32.mrb[0].mxu0
      %1570 = vmatprep.mubr.f32.mxu0 0.0
      %1571 = vmatmul.mubr.f32.gmra.mrb[0].mxu0 %v1217
      %v1572 = vpop.f32.mrb[0].mxu0
      %v1573 = vadd.f32 0.0, %v1572
      %v1574 = vpop.f32.mrb[0].mxu0
      %1575 = vmatprep.mubr.f32.mxu0 0.0
      %1576 = vmatmul.mubr.f32.gmra.mrb[0].mxu0 %v1220
      %v1577 = vpop.f32.mrb[0].mxu0
      %v1578 = vadd.f32 0.0, %v1577
      %v1579 = vpop.f32.mrb[0].mxu0
      %1580 = vmatprep.mubr.f32.mxu0 0.0
      %1581 = vmatmul.mubr.f32.gmra.mrb[0].mxu0 %v1223
      %v1582 = vpop.f32.mrb[0].mxu0
      %v1583 = vadd.f32 0.0, %v1582
      %v1584 = vpop.f32.mrb[0].mxu0
      %1585 = vmatprep.mubr.f32.mxu0 0.0
      %1586 = vmatmul.mubr.f32.gmra.mrb[0].mxu0 %v1226
      %v1587 = vpop.f32.mrb[0].mxu0
      %v1588 = vadd.f32 0.0, %v1587
      %v1589 = vpop.f32.mrb[0].mxu0
      %1590 = vmatprep.mubr.f32.mxu0 0.0
      %1591 = vmatmul.mubr.f32.gmra.mrb[0].mxu0 %v1229
      %v1592 = vpop.f32.mrb[0].mxu0
      %v1593 = vadd.f32 0.0, %v1592
      %v1594 = vpop.f32.mrb[0].mxu0
      %1595 = vmatprep.mubr.f32.mxu0 0.0
      %1596 = vmatmul.mubr.f32.gmra.mrb[0].mxu0 %v1232
      %v1597 = vpop.f32.mrb[0].mxu0
      %v1598 = vadd.f32 0.0, %v1597
      %v1599 = vpop.f32.mrb[0].mxu0
      %1600 = vmatprep.mubr.f32.mxu0 0.0
      %1601 = vmatmul.mubr.f32.gmra.mrb[0].mxu0 %v1235
      %v1602 = vpop.f32.mrb[0].mxu0
      %v1603 = vadd.f32 0.0, %v1602
      %v1604 = vpop.f32.mrb[0].mxu0
      %1605 = vmatprep.mubr.f32.mxu0 0.0
      %1606 = vmatmul.mubr.f32.gmra.mrb[0].mxu0 %v1238
      %v1607 = vpop.f32.mrb[0].mxu0
      %v1608 = vadd.f32 0.0, %v1607
      %v1609 = vpop.f32.mrb[0].mxu0
      %1610 = vmatprep.mubr.f32.mxu0 0.0
      %1611 = vmatmul.mubr.f32.gmra.mrb[0].mxu0 %v1241
      %v1612 = vpop.f32.mrb[0].mxu0
      %v1613 = vadd.f32 0.0, %v1612
      %v1614 = vpop.f32.mrb[0].mxu0
      %1615 = vmatprep.mubr.f32.mxu0 0.0
      %1616 = vmatmul.mubr.f32.gmra.mrb[0].mxu0 %v1244
      %v1617 = vpop.f32.mrb[0].mxu0
      %v1618 = vadd.f32 0.0, %v1617
      %v1619 = vpop.f32.mrb[0].mxu0
      %1620 = vmatprep.mubr.f32.mxu0 0.0
      %1621 = vmatmul.mubr.f32.gmra.mrb[0].mxu0 %v1247
      %v1622 = vpop.f32.mrb[0].mxu0
      %v1623 = vadd.f32 0.0, %v1622
      %v1624 = vpop.f32.mrb[0].mxu0
      %1625 = vmatprep.mubr.f32.mxu0 0.0
      %1626 = vmatmul.mubr.f32.gmra.mrb[0].mxu0 %v1250
      %v1627 = vpop.f32.mrb[0].mxu0
      %v1628 = vadd.f32 0.0, %v1627
      %v1629 = vpop.f32.mrb[0].mxu0
      %1630 = vmatprep.mubr.f32.mxu0 0.0
      %1631 = vmatmul.mubr.f32.gmra.mrb[0].mxu0 %v1253
      %v1632 = vpop.f32.mrb[0].mxu0
      %v1633 = vadd.f32 0.0, %v1632
      %v1634 = vpop.f32.mrb[0].mxu0
      %1635 = vmatprep.mubr.f32.mxu0 0.0
      %1636 = vmatmul.mubr.f32.gmra.mrb[0].mxu0 %v1256
      %v1637 = vpop.f32.mrb[0].mxu0
      %v1638 = vadd.f32 0.0, %v1637
      %v1639 = vpop.f32.mrb[0].mxu0
      %1640 = vmatprep.mubr.f32.mxu0 0.0
      %1641 = vmatmul.mubr.f32.gmra.mrb[0].mxu0 %v1259
      %v1642 = vpop.f32.mrb[0].mxu0
      %v1643 = vadd.f32 0.0, %v1642
      %v1644 = vpop.f32.mrb[0].mxu0
      %1645 = vmatprep.mubr.f32.mxu0 0.0
      %1646 = vmatmul.mubr.f32.gmra.mrb[0].mxu0 %v1262
      %v1647 = vpop.f32.mrb[0].mxu0
      %v1648 = vadd.f32 0.0, %v1647
      %v1649 = vpop.f32.mrb[0].mxu0
      %1650 = vmatprep.mubr.f32.mxu0 0.0
      %1651 = vmatmul.mubr.f32.gmra.mrb[0].mxu0 %v1265
      %v1652 = vpop.f32.mrb[0].mxu0
      %v1653 = vadd.f32 0.0, %v1652
      %v1654 = vpop.f32.mrb[0].mxu0
      %1655 = vmatprep.mubr.f32.mxu0 0.0
      %1656 = vmatmul.mubr.f32.gmra.mrb[0].mxu0 %v1268
      %v1657 = vpop.f32.mrb[0].mxu0
      %v1658 = vadd.f32 0.0, %v1657
      %v1659 = vpop.f32.mrb[0].mxu0
      %1660 = vmatprep.mubr.f32.mxu0 0.0
      %1661 = vmatmul.mubr.f32.gmra.mrb[0].mxu0 %v1271
      %v1662 = vpop.f32.mrb[0].mxu0
      %v1663 = vadd.f32 0.0, %v1662
      %v1664 = vpop.f32.mrb[0].mxu0
      %1665 = vmatprep.mubr.f32.mxu0 0.0
      %1666 = vmatmul.mubr.f32.gmra.mrb[0].mxu0 %v1274
      %v1667 = vpop.f32.mrb[0].mxu0
      %v1668 = vadd.f32 0.0, %v1667
      %v1669 = vpop.f32.mrb[0].mxu0
      %1670 = vmatprep.mubr.f32.mxu0 0.0
      %1671 = vmatmul.mubr.f32.gmra.mrb[0].mxu0 %v1277
      %v1672 = vpop.f32.mrb[0].mxu0
      %v1673 = vadd.f32 0.0, %v1672
      %v1674 = vpop.f32.mrb[0].mxu0
      %1675 = vmatprep.mubr.f32.mxu0 0.0
      %1676 = vmatmul.mubr.f32.gmra.mrb[0].mxu0 %v1280
      %v1677 = vpop.f32.mrb[0].mxu0
      %v1678 = vadd.f32 0.0, %v1677
      %v1679 = vpop.f32.mrb[0].mxu0
      %1680 = vmatprep.mubr.f32.mxu0 0.0
      %1681 = vmatmul.mubr.f32.gmra.mrb[0].mxu0 %v1283
      %v1682 = vpop.f32.mrb[0].mxu0
      %v1683 = vadd.f32 0.0, %v1682
      %v1684 = vpop.f32.mrb[0].mxu0
      %1685 = vmatprep.mubr.f32.mxu0 0.0
      %1686 = vmatmul.mubr.f32.gmra.mrb[0].mxu0 %v1286
      %v1687 = vpop.f32.mrb[0].mxu0
      %v1688 = vadd.f32 0.0, %v1687
      %v1689 = vpop.f32.mrb[0].mxu0
      %1690 = vmatprep.mubr.f32.mxu0 0.0
      %1691 = vmatmul.mubr.f32.gmra.mrb[0].mxu0 %v1289
      %v1692 = vpop.f32.mrb[0].mxu0
      %v1693 = vadd.f32 0.0, %v1692
      %v1694 = vpop.f32.mrb[0].mxu0
      %1695 = vmatprep.mubr.f32.mxu0 0.0
      %1696 = vmatmul.mubr.f32.gmra.mrb[0].mxu0 %v1292
      %v1697 = vpop.f32.mrb[0].mxu0
      %v1698 = vadd.f32 0.0, %v1697
      %v1699 = vpop.f32.mrb[0].mxu0
      %1700 = vmatprep.mubr.f32.mxu0 0.0
      %1701 = vmatmul.mubr.f32.gmra.mrb[0].mxu0 %v1295
      %v1702 = vpop.f32.mrb[0].mxu0
      %v1703 = vadd.f32 0.0, %v1702
      %v1704 = vpop.f32.mrb[0].mxu0
      %1705 = vmatprep.mubr.f32.mxu0 0.0
      %1706 = vmatmul.mubr.f32.gmra.mrb[0].mxu0 %v1298
      %v1707 = vpop.f32.mrb[0].mxu0
      %v1708 = vadd.f32 0.0, %v1707
      %v1709 = vpop.f32.mrb[0].mxu0
      %1710 = vmatprep.mubr.f32.mxu0 0.0
      %1711 = vmatmul.mubr.f32.gmra.mrb[0].mxu0 %v1301
      %v1712 = vpop.f32.mrb[0].mxu0
      %v1713 = vadd.f32 0.0, %v1712
      %v1714 = vpop.f32.mrb[0].mxu0
      %1715 = vmatprep.mubr.f32.mxu0 0.0
      %1716 = vmatmul.mubr.f32.gmra.mrb[0].mxu0 %v1304
      %v1717 = vpop.f32.mrb[0].mxu0
      %v1718 = vadd.f32 0.0, %v1717
      %v1719 = vpop.f32.mrb[0].mxu0
      %1720 = vmatprep.mubr.f32.mxu0 0.0
      %1721 = vmatmul.mubr.f32.gmra.mrb[0].mxu0 %v1307
      %v1722 = vpop.f32.mrb[0].mxu0
      %v1723 = vadd.f32 0.0, %v1722
      %v1724 = vpop.f32.mrb[0].mxu0
      %1725 = vmatprep.mubr.f32.mxu0 0.0
      %1726 = vmatmul.mubr.f32.gmra.mrb[0].mxu0 %v1310
      %v1727 = vpop.f32.mrb[0].mxu0
      %v1728 = vadd.f32 0.0, %v1727
      %v1729 = vpop.f32.mrb[0].mxu0
      %1730 = vmatprep.mubr.f32.mxu0 0.0
      %1731 = vmatmul.mubr.f32.gmra.mrb[0].mxu0 %v1313
      %v1732 = vpop.f32.mrb[0].mxu0
      %v1733 = vadd.f32 0.0, %v1732
      %v1734 = vpop.f32.mrb[0].mxu0
      %1735 = vmatprep.mubr.f32.mxu0 0.0
      %1736 = vmatmul.mubr.f32.gmra.mrb[0].mxu0 %v1316
      %v1737 = vpop.f32.mrb[0].mxu0
      %v1738 = vadd.f32 0.0, %v1737
      %v1739 = vpop.f32.mrb[0].mxu0
      %1740 = vmatprep.mubr.f32.mxu0 0.0
      %1741 = vmatmul.mubr.f32.gmra.mrb[0].mxu0 %v1319
      %v1742 = vpop.f32.mrb[0].mxu0
      %v1743 = vadd.f32 0.0, %v1742
      %v1744 = vpop.f32.mrb[0].mxu0
      %1745 = vmatprep.mubr.f32.mxu0 0.0
      %1746 = vmatmul.mubr.f32.gmra.mrb[0].mxu0 %v1322
      %v1747 = vpop.f32.mrb[0].mxu0
      %v1748 = vadd.f32 0.0, %v1747
      %v1749 = vpop.f32.mrb[0].mxu0
      %1750 = vmatprep.mubr.f32.mxu0 0.0
      %1751 = vmatmul.mubr.f32.gmra.mrb[0].mxu0 %v1325
      %v1752 = vpop.f32.mrb[0].mxu0
      %v1753 = vadd.f32 0.0, %v1752
      %v1754 = vpop.f32.mrb[0].mxu0
      %1755 = vmatprep.mubr.f32.mxu0 0.0
      %1756 = vmatmul.mubr.f32.gmra.mrb[0].mxu0 %v1328
      %v1757 = vpop.f32.mrb[0].mxu0
      %v1758 = vadd.f32 0.0, %v1757
      %v1759 = vpop.f32.mrb[0].mxu0
      %1760 = vmatprep.mubr.f32.mxu0 0.0
      %1761 = vmatmul.mubr.f32.gmra.mrb[0].mxu0 %v1331
      %v1762 = vpop.f32.mrb[0].mxu0
      %v1763 = vadd.f32 0.0, %v1762
      %v1764 = vpop.f32.mrb[0].mxu0
      %1765 = vmatprep.mubr.f32.mxu0 0.0
      %1766 = vmatmul.mubr.f32.gmra.mrb[0].mxu0 %v1334
      %v1767 = vpop.f32.mrb[0].mxu0
      %v1768 = vadd.f32 0.0, %v1767
      %v1769 = vpop.f32.mrb[0].mxu0
      %1770 = vmatprep.mubr.f32.mxu0 0.0
      %1771 = vmatmul.mubr.f32.gmra.mrb[0].mxu0 %v1337
      %v1772 = vpop.f32.mrb[0].mxu0
      %v1773 = vadd.f32 0.0, %v1772
      %v1774 = vpop.f32.mrb[0].mxu0
      %1775 = vmatprep.mubr.f32.mxu0 0.0
      %1776 = vmatmul.mubr.f32.gmra.mrb[0].mxu0 %v1340
      %v1777 = vpop.f32.mrb[0].mxu0
      %v1778 = vadd.f32 0.0, %v1777
      %v1779 = vpop.f32.mrb[0].mxu0
      %1780 = vmatprep.mubr.f32.mxu0 0.0
      %1781 = vmatmul.mubr.f32.gmra.mrb[0].mxu0 %v1343
      %v1782 = vpop.f32.mrb[0].mxu0
      %v1783 = vadd.f32 0.0, %v1782
      %v1784 = vpop.f32.mrb[0].mxu0
      %1785 = vmatprep.mubr.f32.mxu0 0.0
      %1786 = vmatmul.mubr.f32.gmra.mrb[0].mxu0 %v1346
      %v1787 = vpop.f32.mrb[0].mxu0
      %v1788 = vadd.f32 0.0, %v1787
      %v1789 = vpop.f32.mrb[0].mxu0
      %1790 = vmatprep.mubr.f32.mxu0 0.0
      %1791 = vmatmul.mubr.f32.gmra.mrb[0].mxu0 %v1349
      %v1792 = vpop.f32.mrb[0].mxu0
      %v1793 = vadd.f32 0.0, %v1792
      %v1794 = vpop.f32.mrb[0].mxu0
      %1795 = vmatprep.mubr.f32.mxu0 0.0
      %1796 = vmatmul.mubr.f32.gmra.mrb[0].mxu0 %v1352
      %v1797 = vpop.f32.mrb[0].mxu0
      %v1798 = vadd.f32 0.0, %v1797
      %v1799 = vpop.f32.mrb[0].mxu0
      %1800 = vmatprep.mubr.f32.mxu0 0.0
      %1801 = vmatmul.mubr.f32.gmra.mrb[0].mxu0 %v1355
      %v1802 = vpop.f32.mrb[0].mxu0
      %v1803 = vadd.f32 0.0, %v1802
      %v1804 = vpop.f32.mrb[0].mxu0
      %1805 = vmatprep.mubr.f32.mxu0 0.0
      %1806 = vmatmul.mubr.f32.gmra.mrb[0].mxu0 %v1358
      %v1807 = vpop.f32.mrb[0].mxu0
      %v1808 = vadd.f32 0.0, %v1807
      %v1809 = vpop.f32.mrb[0].mxu0
      %1810 = vmatprep.mubr.f32.mxu0 0.0
      %1811 = vmatmul.mubr.f32.gmra.mrb[0].mxu0 %v1361
      %v1812 = vpop.f32.mrb[0].mxu0
      %v1813 = vadd.f32 0.0, %v1812
      %v1814 = vpop.f32.mrb[0].mxu0
      %1815 = vmatprep.mubr.f32.mxu0 0.0
      %1816 = vmatmul.mubr.f32.gmra.mrb[0].mxu0 %v1364
      %v1817 = vpop.f32.mrb[0].mxu0
      %v1818 = vadd.f32 0.0, %v1817
      %v1819 = vpop.f32.mrb[0].mxu0
      %1820 = vmatprep.mubr.f32.mxu0 0.0
      %1821 = vmatmul.mubr.f32.gmra.mrb[0].mxu0 %v1367
      %v1822 = vpop.f32.mrb[0].mxu0
      %v1823 = vadd.f32 0.0, %v1822
      %v1824 = vpop.f32.mrb[0].mxu0
      %1825 = vmatprep.mubr.f32.mxu0 0.0
      %1826 = vmatmul.mubr.f32.gmra.mrb[0].mxu0 %v1370
      %v1827 = vpop.f32.mrb[0].mxu0
      %v1828 = vadd.f32 0.0, %v1827
      %v1829 = vpop.f32.mrb[0].mxu0
      %1830 = vmatprep.mubr.f32.mxu0 0.0
      %1831 = vmatmul.mubr.f32.gmra.mrb[0].mxu0 %v1373
      %v1832 = vpop.f32.mrb[0].mxu0
      %v1833 = vadd.f32 0.0, %v1832
      %v1834 = vpop.f32.mrb[0].mxu0
      %1835 = vmatprep.mubr.f32.mxu0 0.0
      %1836 = vmatmul.mubr.f32.gmra.mrb[0].mxu0 %v1376
      %v1837 = vpop.f32.mrb[0].mxu0
      %v1838 = vadd.f32 0.0, %v1837
      %v1839 = vpop.f32.mrb[0].mxu0
      %1840 = vmatprep.mubr.f32.mxu0 0.0
      %1841 = vmatmul.mubr.f32.gmra.mrb[0].mxu0 %v1379
      %v1842 = vpop.f32.mrb[0].mxu0
      %v1843 = vadd.f32 0.0, %v1842
      %v1844 = vpop.f32.mrb[0].mxu0
      %1845 = vmatprep.mubr.f32.mxu0 0.0
      %1846 = vmatmul.mubr.f32.gmra.mrb[0].mxu0 %v1382
      %v1847 = vpop.f32.mrb[0].mxu0
      %v1848 = vadd.f32 0.0, %v1847
      %v1849 = vpop.f32.mrb[0].mxu0
      %1850 = vmatprep.mubr.f32.mxu0 0.0
      %1851 = vmatmul.mubr.f32.gmra.mrb[0].mxu0 %v1385
      %v1852 = vpop.f32.mrb[0].mxu0
      %v1853 = vadd.f32 0.0, %v1852
      %v1854 = vpop.f32.mrb[0].mxu0
      %1855 = vmatprep.mubr.f32.mxu0 0.0
      %1856 = vmatmul.mubr.f32.gmra.mrb[0].mxu0 %v1388
      %v1857 = vpop.f32.mrb[0].mxu0
      %v1858 = vadd.f32 0.0, %v1857
      %v1859 = vpop.f32.mrb[0].mxu0
      %1860 = vmatprep.mubr.f32.mxu0 0.0
      %1861 = vmatmul.mubr.f32.gmra.mrb[0].mxu0 %v1391
      %v1862 = vpop.f32.mrb[0].mxu0
      %v1863 = vadd.f32 0.0, %v1862
      %v1864 = vpop.f32.mrb[0].mxu0
      %1865 = vmatprep.mubr.f32.mxu0 0.0
      %1866 = vmatmul.mubr.f32.gmra.mrb[0].mxu0 %v1394
      %v1867 = vpop.f32.mrb[0].mxu0
      %v1868 = vadd.f32 0.0, %v1867
      %v1869 = vpop.f32.mrb[0].mxu0
      %1870 = vmatprep.mubr.f32.mxu0 0.0
      %1871 = vmatmul.mubr.f32.gmra.mrb[0].mxu0 %v1397
      %v1872 = vpop.f32.mrb[0].mxu0
      %v1873 = vadd.f32 0.0, %v1872
      %v1874 = vpop.f32.mrb[0].mxu0
      %1875 = vmatprep.mubr.f32.mxu0 0.0
      %1876 = vmatmul.mubr.f32.gmra.mrb[0].mxu0 %v1400
      %v1877 = vpop.f32.mrb[0].mxu0
      %v1878 = vadd.f32 0.0, %v1877
      %v1879 = vpop.f32.mrb[0].mxu0
      %1880 = vmatprep.mubr.f32.mxu0 0.0
      %1881 = vmatmul.mubr.f32.gmra.mrb[0].mxu0 %v1403
      %v1882 = vpop.f32.mrb[0].mxu0
      %v1883 = vadd.f32 0.0, %v1882
      %v1884 = vpop.f32.mrb[0].mxu0
      %1885 = vmatprep.mubr.f32.mxu0 0.0
      %1886 = vmatmul.mubr.f32.gmra.mrb[0].mxu0 %v1406
      %v1887 = vpop.f32.mrb[0].mxu0
      %v1888 = vadd.f32 0.0, %v1887
      %v1889 = vpop.f32.mrb[0].mxu0
      %1890 = vmatprep.mubr.f32.mxu0 0.0
      %1891 = vmatmul.mubr.f32.gmra.mrb[0].mxu0 %v1409
      %v1892 = vpop.f32.mrb[0].mxu0
      %v1893 = vadd.f32 0.0, %v1892
      %v1894 = vpop.f32.mrb[0].mxu0
      %1895 = vmatprep.mubr.f32.mxu0 0.0
      %1896 = vmatmul.mubr.f32.gmra.mrb[0].mxu0 %v1412
      %v1897 = vpop.f32.mrb[0].mxu0
      %v1898 = vadd.f32 0.0, %v1897
      %v1899 = vpop.f32.mrb[0].mxu0
      %1900 = vmatprep.mubr.f32.mxu0 0.0
      %1901 = vmatmul.mubr.f32.gmra.mrb[0].mxu0 %v1415
      %v1902 = vpop.f32.mrb[0].mxu0
      %v1903 = vadd.f32 0.0, %v1902
      %v1904 = vpop.f32.mrb[0].mxu0
      %1905 = vmatprep.mubr.f32.mxu0 0.0
      %1906 = vmatmul.mubr.f32.gmra.mrb[0].mxu0 %v1418
      %v1907 = vpop.f32.mrb[0].mxu0
      %v1908 = vadd.f32 0.0, %v1907
      %v1909 = vpop.f32.mrb[0].mxu0
      %1910 = vmatprep.mubr.f32.mxu0 0.0
      %1911 = vmatmul.mubr.f32.gmra.mrb[0].mxu0 %v1421
      %v1912 = vpop.f32.mrb[0].mxu0
      %v1913 = vadd.f32 0.0, %v1912
      %v1914 = vpop.f32.mrb[0].mxu0
      %1915 = vmatprep.mubr.f32.mxu0 0.0
      %1916 = vmatmul.mubr.f32.gmra.mrb[0].mxu0 %v1424
      %v1917 = vpop.f32.mrb[0].mxu0
      %v1918 = vadd.f32 0.0, %v1917
      %v1919 = vpop.f32.mrb[0].mxu0
      %1920 = vmatprep.mubr.f32.mxu0 0.0
      %1921 = vmatmul.mubr.f32.gmra.mrb[0].mxu0 %v1427
      %v1922 = vpop.f32.mrb[0].mxu0
      %v1923 = vadd.f32 0.0, %v1922
      %v1924 = vpop.f32.mrb[0].mxu0
      %1925 = vmatprep.mubr.f32.mxu0 0.0
      %1926 = vmatmul.mubr.f32.gmra.mrb[0].mxu0 %v1430
      %v1927 = vpop.f32.mrb[0].mxu0
      %v1928 = vadd.f32 0.0, %v1927
      %v1929 = vpop.f32.mrb[0].mxu0
      %1930 = vmatprep.mubr.f32.mxu0 0.0
      %1931 = vmatmul.mubr.f32.gmra.mrb[0].mxu0 %v1433
      %v1932 = vpop.f32.mrb[0].mxu0
      %v1933 = vadd.f32 0.0, %v1932
      %v1934 = vpop.f32.mrb[0].mxu0
      %1935 = vmatprep.mubr.f32.mxu0 0.0
      %1936 = vmatmul.mubr.f32.gmra.mrb[0].mxu0 %v1436
      %v1937 = vpop.f32.mrb[0].mxu0
      %v1938 = vadd.f32 0.0, %v1937
      %v1939 = vpop.f32.mrb[0].mxu0
      %1940 = vmatprep.mubr.f32.mxu0 0.0
      %1941 = vmatmul.mubr.f32.gmra.mrb[0].mxu0 %v1439
      %v1942 = vpop.f32.mrb[0].mxu0
      %v1943 = vadd.f32 0.0, %v1942
      %v1944 = vpop.f32.mrb[0].mxu0
      %1945 = vmatprep.mubr.f32.mxu0 0.0
      %1946 = vmatmul.mubr.f32.gmra.mrb[0].mxu0 %v1442
      %v1947 = vpop.f32.mrb[0].mxu0
      %v1948 = vadd.f32 0.0, %v1947
      %v1949 = vpop.f32.mrb[0].mxu0
      %1950 = vmatprep.mubr.f32.mxu0 0.0
      %1951 = vmatmul.mubr.f32.gmra.mrb[0].mxu0 %v1445
      %v1952 = vpop.f32.mrb[0].mxu0
      %v1953 = vadd.f32 0.0, %v1952
      %v1954 = vpop.f32.mrb[0].mxu0
      %1955 = vmatprep.mubr.f32.mxu0 0.0
      %1956 = vmatmul.mubr.f32.gmra.mrb[0].mxu0 %v1448
      %v1957 = vpop.f32.mrb[0].mxu0
      %v1958 = vadd.f32 0.0, %v1957
      %v1959 = vpop.f32.mrb[0].mxu0
      %1960 = vmatprep.mubr.f32.mxu0 0.0
      %1961 = vmatmul.mubr.f32.gmra.mrb[0].mxu0 %v1451
      %v1962 = vpop.f32.mrb[0].mxu0
      %v1963 = vadd.f32 0.0, %v1962
      %v1964 = vpop.f32.mrb[0].mxu0
      %1965 = vmatprep.mubr.f32.mxu0 0.0
      %1966 = vmatmul.mubr.f32.gmra.mrb[0].mxu0 %v1454
      %v1967 = vpop.f32.mrb[0].mxu0
      %v1968 = vadd.f32 0.0, %v1967
      %v1969 = vpop.f32.mrb[0].mxu0
      %1970 = vmatprep.mubr.f32.mxu0 0.0
      %1971 = vmatmul.mubr.f32.gmra.mrb[0].mxu0 %v1457
      %v1972 = vpop.f32.mrb[0].mxu0
      %v1973 = vadd.f32 0.0, %v1972
      %v1974 = vpop.f32.mrb[0].mxu0
      %1975 = vmatprep.mubr.f32.mxu0 0.0
      %1976 = vmatmul.mubr.f32.gmra.mrb[0].mxu0 %v1460
      %v1977 = vpop.f32.mrb[0].mxu0
      %v1978 = vadd.f32 0.0, %v1977
      %v1979 = vpop.f32.mrb[0].mxu0
      %1980 = vmatprep.mubr.f32.mxu0 0.0
      %1981 = vmatmul.mubr.f32.gmra.mrb[0].mxu0 %v1463
      %v1982 = vpop.f32.mrb[0].mxu0
      %v1983 = vadd.f32 0.0, %v1982
      %v1984 = vpop.f32.mrb[0].mxu0
      %1985 = vmatprep.mubr.f32.mxu0 0.0
      %1986 = vmatmul.mubr.f32.gmra.mrb[0].mxu0 %v1466
      %v1987 = vpop.f32.mrb[0].mxu0
      %v1988 = vadd.f32 0.0, %v1987
      %v1989 = vpop.f32.mrb[0].mxu0
      %1990 = vmatprep.mubr.f32.mxu0 0.0
      %1991 = vmatmul.mubr.f32.gmra.mrb[0].mxu0 %v1469
      %v1992 = vpop.f32.mrb[0].mxu0
      %v1993 = vadd.f32 0.0, %v1992
      %v1994 = vpop.f32.mrb[0].mxu0
      %1995 = vmatprep.mubr.f32.mxu0 0.0
      %1996 = vmatmul.mubr.f32.gmra.mrb[0].mxu0 %v1472
      %v1997 = vpop.f32.mrb[0].mxu0
      %v1998 = vadd.f32 0.0, %v1997
      %v1999 = vpop.f32.mrb[0].mxu0
      %2000 = vmatprep.mubr.f32.mxu0 0.0
      %2001 = vmatmul.mubr.f32.gmra.mrb[0].mxu0 %v1475
      %v2002 = vpop.f32.mrb[0].mxu0
      %v2003 = vadd.f32 0.0, %v2002
      %v2004 = vpop.f32.mrb[0].mxu0
      %2005 = vmatprep.mubr.f32.mxu0 0.0
      %2006 = vmatmul.mubr.f32.gmra.mrb[0].mxu0 %v1478
      %v2007 = vpop.f32.mrb[0].mxu0
      %v2008 = vadd.f32 0.0, %v2007
      %v2009 = vpop.f32.mrb[0].mxu0
      %2010 = vmatprep.mubr.f32.mxu0 0.0
      %2011 = vmatmul.mubr.f32.gmra.mrb[0].mxu0 %v1481
      %v2012 = vpop.f32.mrb[0].mxu0
      %v2013 = vadd.f32 0.0, %v2012
      %v2014 = vpop.f32.mrb[0].mxu0
      %2015 = vmatprep.mubr.f32.mxu0 0.0
      %2016 = vmatmul.mubr.f32.gmra.mrb[0].mxu0 %v1484
      %v2017 = vpop.f32.mrb[0].mxu0
      %v2018 = vadd.f32 0.0, %v2017
      %v2019 = vpop.f32.mrb[0].mxu0
      %2020 = vmatprep.mubr.f32.mxu0 0.0
      %2021 = vmatmul.mubr.f32.gmra.mrb[0].mxu0 %v1487
      %v2022 = vpop.f32.mrb[0].mxu0
      %v2023 = vadd.f32 0.0, %v2022
      %v2024 = vpop.f32.mrb[0].mxu0
      %2025 = vmatprep.mubr.f32.mxu0 0.0
      %2026 = vmatmul.mubr.f32.gmra.mrb[0].mxu0 %v1490
      %v2027 = vpop.f32.mrb[0].mxu0
      %v2028 = vadd.f32 0.0, %v2027
      %v2029 = vpop.f32.mrb[0].mxu0
      %2030 = vmatprep.mubr.f32.mxu0 0.0
      %2031 = vmatmul.mubr.f32.gmra.mrb[0].mxu0 %v1493
      %v2032 = vpop.f32.mrb[0].mxu0
      %v2033 = vadd.f32 0.0, %v2032
      %v2034 = vpop.f32.mrb[0].mxu0
      %2035 = vmatprep.mubr.f32.mxu0 0.0
      %2036 = vmatmul.mubr.f32.gmra.mrb[0].mxu0 %v1496
      %v2037 = vpop.f32.mrb[0].mxu0
      %v2038 = vadd.f32 0.0, %v2037
      %v2039 = vpop.f32.mrb[0].mxu0
      %2040 = vmatprep.mubr.f32.mxu0 0.0
      %2041 = vmatmul.mubr.f32.gmra.mrb[0].mxu0 %v1499
      %v2042 = vpop.f32.mrb[0].mxu0
      %v2043 = vadd.f32 0.0, %v2042
      %v2044 = vpop.f32.mrb[0].mxu0
      %2045 = vdwg.mxu0
      %2046 = vmatprep.subr.mxu0 0.0
      %2047 = vmatpush1.msra.mxu0 %v1568
      %2048 = vmatprep.subr.mxu0 0.0
      %2049 = vmatpush1.msra.mxu0 %v1573
      %2050 = vmatprep.subr.mxu0 0.0
      %2051 = vmatpush1.msra.mxu0 %v1578
      %2052 = vmatprep.subr.mxu0 0.0
      %2053 = vmatpush1.msra.mxu0 0.0
      %2054 = vmatprep.subr.mxu0 0.0
      %2055 = vmatpush1.msra.mxu0 0.0
      %2056 = vmatprep.subr.mxu0 0.0
      %2057 = vmatpush1.msra.mxu0 0.0
      %2058 = vmatprep.subr.mxu0 0.0
      %2059 = vmatpush1.msra.mxu0 0.0
      %2060 = vmatprep.subr.mxu0 0.0
      %2061 = vmatpush1.msra.mxu0 0.0
      %2062 = vmatprep.subr.mxu0 0.0
      %2063 = vmatpush1.msra.mxu0 0.0
      %2064 = vmatprep.subr.mxu0 0.0
      %2065 = vmatpush1.msra.mxu0 0.0
      %2066 = vmatprep.subr.mxu0 0.0
      %2067 = vmatpush1.msra.mxu0 0.0
      %2068 = vmatprep.subr.mxu0 0.0
      %2069 = vmatpush1.msra.mxu0 0.0
      %2070 = vmatprep.subr.mxu0 0.0
      %2071 = vmatpush1.msra.mxu0 0.0
      %2072 = vmatprep.subr.mxu0 0.0
      %2073 = vmatpush1.msra.mxu0 0.0
      %2074 = vmatprep.subr.mxu0 0.0
      %2075 = vmatpush1.msra.mxu0 0.0
      %2076 = vmatprep.subr.mxu0 0.0
      %2077 = vmatpush1.msra.mxu0 0.0
      %2078 = vmatprep.subr.mxu0 0.0
      %2079 = vmatpush1.msra.mxu0 0.0
      %2080 = vmatprep.subr.mxu0 0.0
      %2081 = vmatpush1.msra.mxu0 0.0
      %2082 = vmatprep.subr.mxu0 0.0
      %2083 = vmatpush1.msra.mxu0 0.0
      %2084 = vmatprep.subr.mxu0 0.0
      %2085 = vmatpush1.msra.mxu0 0.0
      %2086 = vmatprep.subr.mxu0 0.0
      %2087 = vmatpush1.msra.mxu0 0.0
      %2088 = vmatprep.subr.mxu0 0.0
      %2089 = vmatpush1.msra.mxu0 0.0
      %2090 = vmatprep.subr.mxu0 0.0
      %2091 = vmatpush1.msra.mxu0 0.0
      %2092 = vmatprep.subr.mxu0 0.0
      %2093 = vmatpush1.msra.mxu0 0.0
      %2094 = vmatprep.subr.mxu0 0.0
      %2095 = vmatpush1.msra.mxu0 0.0
      %2096 = vmatprep.subr.mxu0 0.0
      %2097 = vmatpush1.msra.mxu0 0.0
      %2098 = vmatprep.subr.mxu0 0.0
      %2099 = vmatpush1.msra.mxu0 0.0
      %2100 = vmatprep.subr.mxu0 0.0
      %2101 = vmatpush1.msra.mxu0 0.0
      %2102 = vmatprep.subr.mxu0 0.0
      %2103 = vmatpush1.msra.mxu0 0.0
      %2104 = vmatprep.subr.mxu0 0.0
      %2105 = vmatpush1.msra.mxu0 0.0
      %2106 = vmatprep.subr.mxu0 0.0
      %2107 = vmatpush1.msra.mxu0 0.0
      %2108 = vmatprep.subr.mxu0 0.0
      %2109 = vmatpush1.msra.mxu0 0.0
      %2110 = vmatprep.mubr.f32.mxu0 0.0
      %2111 = vmatmul.mubr.f32.gmra.mrb[0].mxu0 %v280
      %v2112 = vpop.f32.mrb[0].mxu0
      %v2113 = vadd.f32 0.0, %v2112
      %v2114 = vpop.f32.mrb[0].mxu0
      %2115 = vmatprep.mubr.f32.mxu0 0.0
      %2116 = vmatmul.mubr.f32.gmra.mrb[0].mxu0 %v283
      %v2117 = vpop.f32.mrb[0].mxu0
      %v2118 = vadd.f32 0.0, %v2117
      %v2119 = vpop.f32.mrb[0].mxu0
      %2120 = vmatprep.mubr.f32.mxu0 0.0
      %2121 = vmatmul.mubr.f32.gmra.mrb[0].mxu0 %v286
      %v2122 = vpop.f32.mrb[0].mxu0
      %v2123 = vadd.f32 0.0, %v2122
      %v2124 = vpop.f32.mrb[0].mxu0
      %2125 = vdwg.mxu0
      %2126 = vmatprep.subr.mxu0 0.0
      %2127 = vmatpush1.msra.mxu0 %v1583
      %2128 = vmatprep.subr.mxu0 0.0
      %2129 = vmatpush1.msra.mxu0 %v1588
      %2130 = vmatprep.subr.mxu0 0.0
      %2131 = vmatpush1.msra.mxu0 %v1593
      %2132 = vmatprep.subr.mxu0 0.0
      %2133 = vmatpush1.msra.mxu0 0.0
      %2134 = vmatprep.subr.mxu0 0.0
      %2135 = vmatpush1.msra.mxu0 0.0
      %2136 = vmatprep.subr.mxu0 0.0
      %2137 = vmatpush1.msra.mxu0 0.0
      %2138 = vmatprep.subr.mxu0 0.0
      %2139 = vmatpush1.msra.mxu0 0.0
      %2140 = vmatprep.subr.mxu0 0.0
      %2141 = vmatpush1.msra.mxu0 0.0
      %2142 = vmatprep.subr.mxu0 0.0
      %2143 = vmatpush1.msra.mxu0 0.0
      %2144 = vmatprep.subr.mxu0 0.0
      %2145 = vmatpush1.msra.mxu0 0.0
      %2146 = vmatprep.subr.mxu0 0.0
      %2147 = vmatpush1.msra.mxu0 0.0
      %2148 = vmatprep.subr.mxu0 0.0
      %2149 = vmatpush1.msra.mxu0 0.0
      %2150 = vmatprep.subr.mxu0 0.0
      %2151 = vmatpush1.msra.mxu0 0.0
      %2152 = vmatprep.subr.mxu0 0.0
      %2153 = vmatpush1.msra.mxu0 0.0
      %2154 = vmatprep.subr.mxu0 0.0
      %2155 = vmatpush1.msra.mxu0 0.0
      %2156 = vmatprep.subr.mxu0 0.0
      %2157 = vmatpush1.msra.mxu0 0.0
      %2158 = vmatprep.subr.mxu0 0.0
      %2159 = vmatpush1.msra.mxu0 0.0
      %2160 = vmatprep.subr.mxu0 0.0
      %2161 = vmatpush1.msra.mxu0 0.0
      %2162 = vmatprep.subr.mxu0 0.0
      %2163 = vmatpush1.msra.mxu0 0.0
      %2164 = vmatprep.subr.mxu0 0.0
      %2165 = vmatpush1.msra.mxu0 0.0
      %2166 = vmatprep.subr.mxu0 0.0
      %2167 = vmatpush1.msra.mxu0 0.0
      %2168 = vmatprep.subr.mxu0 0.0
      %2169 = vmatpush1.msra.mxu0 0.0
      %2170 = vmatprep.subr.mxu0 0.0
      %2171 = vmatpush1.msra.mxu0 0.0
      %2172 = vmatprep.subr.mxu0 0.0
      %2173 = vmatpush1.msra.mxu0 0.0
      %2174 = vmatprep.subr.mxu0 0.0
      %2175 = vmatpush1.msra.mxu0 0.0
      %2176 = vmatprep.subr.mxu0 0.0
      %2177 = vmatpush1.msra.mxu0 0.0
      %2178 = vmatprep.subr.mxu0 0.0
      %2179 = vmatpush1.msra.mxu0 0.0
      %2180 = vmatprep.subr.mxu0 0.0
      %2181 = vmatpush1.msra.mxu0 0.0
      %2182 = vmatprep.subr.mxu0 0.0
      %2183 = vmatpush1.msra.mxu0 0.0
      %2184 = vmatprep.subr.mxu0 0.0
      %2185 = vmatpush1.msra.mxu0 0.0
      %2186 = vmatprep.subr.mxu0 0.0
      %2187 = vmatpush1.msra.mxu0 0.0
      %2188 = vmatprep.subr.mxu0 0.0
      %2189 = vmatpush1.msra.mxu0 0.0
      %2190 = vmatprep.mubr.f32.mxu0 0.0
      %2191 = vmatmul.mubr.f32.gmra.mrb[0].mxu0 %v289
      %v2192 = vpop.f32.mrb[0].mxu0
      %v2193 = vadd.f32 0.0, %v2192
      %v2194 = vpop.f32.mrb[0].mxu0
      %2195 = vmatprep.mubr.f32.mxu0 0.0
      %2196 = vmatmul.mubr.f32.gmra.mrb[0].mxu0 %v292
      %v2197 = vpop.f32.mrb[0].mxu0
      %v2198 = vadd.f32 0.0, %v2197
      %v2199 = vpop.f32.mrb[0].mxu0
      %2200 = vmatprep.mubr.f32.mxu0 0.0
      %2201 = vmatmul.mubr.f32.gmra.mrb[0].mxu0 %v295
      %v2202 = vpop.f32.mrb[0].mxu0
      %v2203 = vadd.f32 0.0, %v2202
      %v2204 = vpop.f32.mrb[0].mxu0
      %2205 = vdwg.mxu0
      %2206 = vmatprep.subr.mxu0 0.0
      %2207 = vmatpush1.msra.mxu0 %v1598
      %2208 = vmatprep.subr.mxu0 0.0
      %2209 = vmatpush1.msra.mxu0 %v1603
      %2210 = vmatprep.subr.mxu0 0.0
      %2211 = vmatpush1.msra.mxu0 %v1608
      %2212 = vmatprep.subr.mxu0 0.0
      %2213 = vmatpush1.msra.mxu0 0.0
      %2214 = vmatprep.subr.mxu0 0.0
      %2215 = vmatpush1.msra.mxu0 0.0
      %2216 = vmatprep.subr.mxu0 0.0
      %2217 = vmatpush1.msra.mxu0 0.0
      %2218 = vmatprep.subr.mxu0 0.0
      %2219 = vmatpush1.msra.mxu0 0.0
      %2220 = vmatprep.subr.mxu0 0.0
      %2221 = vmatpush1.msra.mxu0 0.0
      %2222 = vmatprep.subr.mxu0 0.0
      %2223 = vmatpush1.msra.mxu0 0.0
      %2224 = vmatprep.subr.mxu0 0.0
      %2225 = vmatpush1.msra.mxu0 0.0
      %2226 = vmatprep.subr.mxu0 0.0
      %2227 = vmatpush1.msra.mxu0 0.0
      %2228 = vmatprep.subr.mxu0 0.0
      %2229 = vmatpush1.msra.mxu0 0.0
      %2230 = vmatprep.subr.mxu0 0.0
      %2231 = vmatpush1.msra.mxu0 0.0
      %2232 = vmatprep.subr.mxu0 0.0
      %2233 = vmatpush1.msra.mxu0 0.0
      %2234 = vmatprep.subr.mxu0 0.0
      %2235 = vmatpush1.msra.mxu0 0.0
      %2236 = vmatprep.subr.mxu0 0.0
      %2237 = vmatpush1.msra.mxu0 0.0
      %2238 = vmatprep.subr.mxu0 0.0
      %2239 = vmatpush1.msra.mxu0 0.0
      %2240 = vmatprep.subr.mxu0 0.0
      %2241 = vmatpush1.msra.mxu0 0.0
      %2242 = vmatprep.subr.mxu0 0.0
      %2243 = vmatpush1.msra.mxu0 0.0
      %2244 = vmatprep.subr.mxu0 0.0
      %2245 = vmatpush1.msra.mxu0 0.0
      %2246 = vmatprep.subr.mxu0 0.0
      %2247 = vmatpush1.msra.mxu0 0.0
      %2248 = vmatprep.subr.mxu0 0.0
      %2249 = vmatpush1.msra.mxu0 0.0
      %2250 = vmatprep.subr.mxu0 0.0
      %2251 = vmatpush1.msra.mxu0 0.0
      %2252 = vmatprep.subr.mxu0 0.0
      %2253 = vmatpush1.msra.mxu0 0.0
      %2254 = vmatprep.subr.mxu0 0.0
      %2255 = vmatpush1.msra.mxu0 0.0
      %2256 = vmatprep.subr.mxu0 0.0
      %2257 = vmatpush1.msra.mxu0 0.0
      %2258 = vmatprep.subr.mxu0 0.0
      %2259 = vmatpush1.msra.mxu0 0.0
      %2260 = vmatprep.subr.mxu0 0.0
      %2261 = vmatpush1.msra.mxu0 0.0
      %2262 = vmatprep.subr.mxu0 0.0
      %2263 = vmatpush1.msra.mxu0 0.0
      %2264 = vmatprep.subr.mxu0 0.0
      %2265 = vmatpush1.msra.mxu0 0.0
      %2266 = vmatprep.subr.mxu0 0.0
      %2267 = vmatpush1.msra.mxu0 0.0
      %2268 = vmatprep.subr.mxu0 0.0
      %2269 = vmatpush1.msra.mxu0 0.0
      %2270 = vmatprep.mubr.f32.mxu0 0.0
      %2271 = vmatmul.mubr.f32.gmra.mrb[0].mxu0 %v298
      %v2272 = vpop.f32.mrb[0].mxu0
      %v2273 = vadd.f32 0.0, %v2272
      %v2274 = vpop.f32.mrb[0].mxu0
      %2275 = vmatprep.mubr.f32.mxu0 0.0
      %2276 = vmatmul.mubr.f32.gmra.mrb[0].mxu0 %v301
      %v2277 = vpop.f32.mrb[0].mxu0
      %v2278 = vadd.f32 0.0, %v2277
      %v2279 = vpop.f32.mrb[0].mxu0
      %2280 = vmatprep.mubr.f32.mxu0 0.0
      %2281 = vmatmul.mubr.f32.gmra.mrb[0].mxu0 %v304
      %v2282 = vpop.f32.mrb[0].mxu0
      %v2283 = vadd.f32 0.0, %v2282
      %v2284 = vpop.f32.mrb[0].mxu0
      %2285 = vdwg.mxu0
      %2286 = vmatprep.subr.mxu0 0.0
      %2287 = vmatpush1.msra.mxu0 %v1613
      %2288 = vmatprep.subr.mxu0 0.0
      %2289 = vmatpush1.msra.mxu0 %v1618
      %2290 = vmatprep.subr.mxu0 0.0
      %2291 = vmatpush1.msra.mxu0 %v1623
      %2292 = vmatprep.subr.mxu0 0.0
      %2293 = vmatpush1.msra.mxu0 0.0
      %2294 = vmatprep.subr.mxu0 0.0
      %2295 = vmatpush1.msra.mxu0 0.0
      %2296 = vmatprep.subr.mxu0 0.0
      %2297 = vmatpush1.msra.mxu0 0.0
      %2298 = vmatprep.subr.mxu0 0.0
      %2299 = vmatpush1.msra.mxu0 0.0
      %2300 = vmatprep.subr.mxu0 0.0
      %2301 = vmatpush1.msra.mxu0 0.0
      %2302 = vmatprep.subr.mxu0 0.0
      %2303 = vmatpush1.msra.mxu0 0.0
      %2304 = vmatprep.subr.mxu0 0.0
      %2305 = vmatpush1.msra.mxu0 0.0
      %2306 = vmatprep.subr.mxu0 0.0
      %2307 = vmatpush1.msra.mxu0 0.0
      %2308 = vmatprep.subr.mxu0 0.0
      %2309 = vmatpush1.msra.mxu0 0.0
      %2310 = vmatprep.subr.mxu0 0.0
      %2311 = vmatpush1.msra.mxu0 0.0
      %2312 = vmatprep.subr.mxu0 0.0
      %2313 = vmatpush1.msra.mxu0 0.0
      %2314 = vmatprep.subr.mxu0 0.0
      %2315 = vmatpush1.msra.mxu0 0.0
      %2316 = vmatprep.subr.mxu0 0.0
      %2317 = vmatpush1.msra.mxu0 0.0
      %2318 = vmatprep.subr.mxu0 0.0
      %2319 = vmatpush1.msra.mxu0 0.0
      %2320 = vmatprep.subr.mxu0 0.0
      %2321 = vmatpush1.msra.mxu0 0.0
      %2322 = vmatprep.subr.mxu0 0.0
      %2323 = vmatpush1.msra.mxu0 0.0
      %2324 = vmatprep.subr.mxu0 0.0
      %2325 = vmatpush1.msra.mxu0 0.0
      %2326 = vmatprep.subr.mxu0 0.0
      %2327 = vmatpush1.msra.mxu0 0.0
      %2328 = vmatprep.subr.mxu0 0.0
      %2329 = vmatpush1.msra.mxu0 0.0
      %2330 = vmatprep.subr.mxu0 0.0
      %2331 = vmatpush1.msra.mxu0 0.0
      %2332 = vmatprep.subr.mxu0 0.0
      %2333 = vmatpush1.msra.mxu0 0.0
      %2334 = vmatprep.subr.mxu0 0.0
      %2335 = vmatpush1.msra.mxu0 0.0
      %2336 = vmatprep.subr.mxu0 0.0
      %2337 = vmatpush1.msra.mxu0 0.0
      %2338 = vmatprep.subr.mxu0 0.0
      %2339 = vmatpush1.msra.mxu0 0.0
      %2340 = vmatprep.subr.mxu0 0.0
      %2341 = vmatpush1.msra.mxu0 0.0
      %2342 = vmatprep.subr.mxu0 0.0
      %2343 = vmatpush1.msra.mxu0 0.0
      %2344 = vmatprep.subr.mxu0 0.0
      %2345 = vmatpush1.msra.mxu0 0.0
      %2346 = vmatprep.subr.mxu0 0.0
      %2347 = vmatpush1.msra.mxu0 0.0
      %2348 = vmatprep.subr.mxu0 0.0
      %2349 = vmatpush1.msra.mxu0 0.0
      %2350 = vmatprep.mubr.f32.mxu0 0.0
      %2351 = vmatmul.mubr.f32.gmra.mrb[0].mxu0 %v307
      %v2352 = vpop.f32.mrb[0].mxu0
      %v2353 = vadd.f32 0.0, %v2352
      %v2354 = vpop.f32.mrb[0].mxu0
      %2355 = vmatprep.mubr.f32.mxu0 0.0
      %2356 = vmatmul.mubr.f32.gmra.mrb[0].mxu0 %v310
      %v2357 = vpop.f32.mrb[0].mxu0
      %v2358 = vadd.f32 0.0, %v2357
      %v2359 = vpop.f32.mrb[0].mxu0
      %2360 = vmatprep.mubr.f32.mxu0 0.0
      %2361 = vmatmul.mubr.f32.gmra.mrb[0].mxu0 %v313
      %v2362 = vpop.f32.mrb[0].mxu0
      %v2363 = vadd.f32 0.0, %v2362
      %v2364 = vpop.f32.mrb[0].mxu0
      %2365 = vdwg.mxu0
      %2366 = vmatprep.subr.mxu0 0.0
      %2367 = vmatpush1.msra.mxu0 %v1628
      %2368 = vmatprep.subr.mxu0 0.0
      %2369 = vmatpush1.msra.mxu0 %v1633
      %2370 = vmatprep.subr.mxu0 0.0
      %2371 = vmatpush1.msra.mxu0 %v1638
      %2372 = vmatprep.subr.mxu0 0.0
      %2373 = vmatpush1.msra.mxu0 0.0
      %2374 = vmatprep.subr.mxu0 0.0
      %2375 = vmatpush1.msra.mxu0 0.0
      %2376 = vmatprep.subr.mxu0 0.0
      %2377 = vmatpush1.msra.mxu0 0.0
      %2378 = vmatprep.subr.mxu0 0.0
      %2379 = vmatpush1.msra.mxu0 0.0
      %2380 = vmatprep.subr.mxu0 0.0
      %2381 = vmatpush1.msra.mxu0 0.0
      %2382 = vmatprep.subr.mxu0 0.0
      %2383 = vmatpush1.msra.mxu0 0.0
      %2384 = vmatprep.subr.mxu0 0.0
      %2385 = vmatpush1.msra.mxu0 0.0
      %2386 = vmatprep.subr.mxu0 0.0
      %2387 = vmatpush1.msra.mxu0 0.0
      %2388 = vmatprep.subr.mxu0 0.0
      %2389 = vmatpush1.msra.mxu0 0.0
      %2390 = vmatprep.subr.mxu0 0.0
      %2391 = vmatpush1.msra.mxu0 0.0
      %2392 = vmatprep.subr.mxu0 0.0
      %2393 = vmatpush1.msra.mxu0 0.0
      %2394 = vmatprep.subr.mxu0 0.0
      %2395 = vmatpush1.msra.mxu0 0.0
      %2396 = vmatprep.subr.mxu0 0.0
      %2397 = vmatpush1.msra.mxu0 0.0
      %2398 = vmatprep.subr.mxu0 0.0
      %2399 = vmatpush1.msra.mxu0 0.0
      %2400 = vmatprep.subr.mxu0 0.0
      %2401 = vmatpush1.msra.mxu0 0.0
      %2402 = vmatprep.subr.mxu0 0.0
      %2403 = vmatpush1.msra.mxu0 0.0
      %2404 = vmatprep.subr.mxu0 0.0
      %2405 = vmatpush1.msra.mxu0 0.0
      %2406 = vmatprep.subr.mxu0 0.0
      %2407 = vmatpush1.msra.mxu0 0.0
      %2408 = vmatprep.subr.mxu0 0.0
      %2409 = vmatpush1.msra.mxu0 0.0
      %2410 = vmatprep.subr.mxu0 0.0
      %2411 = vmatpush1.msra.mxu0 0.0
      %2412 = vmatprep.subr.mxu0 0.0
      %2413 = vmatpush1.msra.mxu0 0.0
      %2414 = vmatprep.subr.mxu0 0.0
      %2415 = vmatpush1.msra.mxu0 0.0
      %2416 = vmatprep.subr.mxu0 0.0
      %2417 = vmatpush1.msra.mxu0 0.0
      %2418 = vmatprep.subr.mxu0 0.0
      %2419 = vmatpush1.msra.mxu0 0.0
      %2420 = vmatprep.subr.mxu0 0.0
      %2421 = vmatpush1.msra.mxu0 0.0
      %2422 = vmatprep.subr.mxu0 0.0
      %2423 = vmatpush1.msra.mxu0 0.0
      %2424 = vmatprep.subr.mxu0 0.0
      %2425 = vmatpush1.msra.mxu0 0.0
      %2426 = vmatprep.subr.mxu0 0.0
      %2427 = vmatpush1.msra.mxu0 0.0
      %2428 = vmatprep.subr.mxu0 0.0
      %2429 = vmatpush1.msra.mxu0 0.0
      %2430 = vmatprep.mubr.f32.mxu0 0.0
      %2431 = vmatmul.mubr.f32.gmra.mrb[0].mxu0 %v316
      %v2432 = vpop.f32.mrb[0].mxu0
      %v2433 = vadd.f32 0.0, %v2432
      %v2434 = vpop.f32.mrb[0].mxu0
      %2435 = vmatprep.mubr.f32.mxu0 0.0
      %2436 = vmatmul.mubr.f32.gmra.mrb[0].mxu0 %v319
      %v2437 = vpop.f32.mrb[0].mxu0
      %v2438 = vadd.f32 0.0, %v2437
      %v2439 = vpop.f32.mrb[0].mxu0
      %2440 = vmatprep.mubr.f32.mxu0 0.0
      %2441 = vmatmul.mubr.f32.gmra.mrb[0].mxu0 %v322
      %v2442 = vpop.f32.mrb[0].mxu0
      %v2443 = vadd.f32 0.0, %v2442
      %v2444 = vpop.f32.mrb[0].mxu0
      %2445 = vdwg.mxu0
      %2446 = vmatprep.subr.mxu0 0.0
      %2447 = vmatpush1.msra.mxu0 %v1643
      %2448 = vmatprep.subr.mxu0 0.0
      %2449 = vmatpush1.msra.mxu0 %v1648
      %2450 = vmatprep.subr.mxu0 0.0
      %2451 = vmatpush1.msra.mxu0 %v1653
      %2452 = vmatprep.subr.mxu0 0.0
      %2453 = vmatpush1.msra.mxu0 0.0
      %2454 = vmatprep.subr.mxu0 0.0
      %2455 = vmatpush1.msra.mxu0 0.0
      %2456 = vmatprep.subr.mxu0 0.0
      %2457 = vmatpush1.msra.mxu0 0.0
      %2458 = vmatprep.subr.mxu0 0.0
      %2459 = vmatpush1.msra.mxu0 0.0
      %2460 = vmatprep.subr.mxu0 0.0
      %2461 = vmatpush1.msra.mxu0 0.0
      %2462 = vmatprep.subr.mxu0 0.0
      %2463 = vmatpush1.msra.mxu0 0.0
      %2464 = vmatprep.subr.mxu0 0.0
      %2465 = vmatpush1.msra.mxu0 0.0
      %2466 = vmatprep.subr.mxu0 0.0
      %2467 = vmatpush1.msra.mxu0 0.0
      %2468 = vmatprep.subr.mxu0 0.0
      %2469 = vmatpush1.msra.mxu0 0.0
      %2470 = vmatprep.subr.mxu0 0.0
      %2471 = vmatpush1.msra.mxu0 0.0
      %2472 = vmatprep.subr.mxu0 0.0
      %2473 = vmatpush1.msra.mxu0 0.0
      %2474 = vmatprep.subr.mxu0 0.0
      %2475 = vmatpush1.msra.mxu0 0.0
      %2476 = vmatprep.subr.mxu0 0.0
      %2477 = vmatpush1.msra.mxu0 0.0
      %2478 = vmatprep.subr.mxu0 0.0
      %2479 = vmatpush1.msra.mxu0 0.0
      %2480 = vmatprep.subr.mxu0 0.0
      %2481 = vmatpush1.msra.mxu0 0.0
      %2482 = vmatprep.subr.mxu0 0.0
      %2483 = vmatpush1.msra.mxu0 0.0
      %2484 = vmatprep.subr.mxu0 0.0
      %2485 = vmatpush1.msra.mxu0 0.0
      %2486 = vmatprep.subr.mxu0 0.0
      %2487 = vmatpush1.msra.mxu0 0.0
      %2488 = vmatprep.subr.mxu0 0.0
      %2489 = vmatpush1.msra.mxu0 0.0
      %2490 = vmatprep.subr.mxu0 0.0
      %2491 = vmatpush1.msra.mxu0 0.0
      %2492 = vmatprep.subr.mxu0 0.0
      %2493 = vmatpush1.msra.mxu0 0.0
      %2494 = vmatprep.subr.mxu0 0.0
      %2495 = vmatpush1.msra.mxu0 0.0
      %2496 = vmatprep.subr.mxu0 0.0
      %2497 = vmatpush1.msra.mxu0 0.0
      %2498 = vmatprep.subr.mxu0 0.0
      %2499 = vmatpush1.msra.mxu0 0.0
      %2500 = vmatprep.subr.mxu0 0.0
      %2501 = vmatpush1.msra.mxu0 0.0
      %2502 = vmatprep.subr.mxu0 0.0
      %2503 = vmatpush1.msra.mxu0 0.0
      %2504 = vmatprep.subr.mxu0 0.0
      %2505 = vmatpush1.msra.mxu0 0.0
      %2506 = vmatprep.subr.mxu0 0.0
      %2507 = vmatpush1.msra.mxu0 0.0
      %2508 = vmatprep.subr.mxu0 0.0
      %2509 = vmatpush1.msra.mxu0 0.0
      %2510 = vmatprep.mubr.f32.mxu0 0.0
      %2511 = vmatmul.mubr.f32.gmra.mrb[0].mxu0 %v325
      %v2512 = vpop.f32.mrb[0].mxu0
      %v2513 = vadd.f32 0.0, %v2512
      %v2514 = vpop.f32.mrb[0].mxu0
      %2515 = vmatprep.mubr.f32.mxu0 0.0
      %2516 = vmatmul.mubr.f32.gmra.mrb[0].mxu0 %v328
      %v2517 = vpop.f32.mrb[0].mxu0
      %v2518 = vadd.f32 0.0, %v2517
      %v2519 = vpop.f32.mrb[0].mxu0
      %2520 = vmatprep.mubr.f32.mxu0 0.0
      %2521 = vmatmul.mubr.f32.gmra.mrb[0].mxu0 %v331
      %v2522 = vpop.f32.mrb[0].mxu0
      %v2523 = vadd.f32 0.0, %v2522
      %v2524 = vpop.f32.mrb[0].mxu0
      %2525 = vdwg.mxu0
      %2526 = vmatprep.subr.mxu0 0.0
      %2527 = vmatpush1.msra.mxu0 %v1658
      %2528 = vmatprep.subr.mxu0 0.0
      %2529 = vmatpush1.msra.mxu0 %v1663
      %2530 = vmatprep.subr.mxu0 0.0
      %2531 = vmatpush1.msra.mxu0 %v1668
      %2532 = vmatprep.subr.mxu0 0.0
      %2533 = vmatpush1.msra.mxu0 0.0
      %2534 = vmatprep.subr.mxu0 0.0
      %2535 = vmatpush1.msra.mxu0 0.0
      %2536 = vmatprep.subr.mxu0 0.0
      %2537 = vmatpush1.msra.mxu0 0.0
      %2538 = vmatprep.subr.mxu0 0.0
      %2539 = vmatpush1.msra.mxu0 0.0
      %2540 = vmatprep.subr.mxu0 0.0
      %2541 = vmatpush1.msra.mxu0 0.0
      %2542 = vmatprep.subr.mxu0 0.0
      %2543 = vmatpush1.msra.mxu0 0.0
      %2544 = vmatprep.subr.mxu0 0.0
      %2545 = vmatpush1.msra.mxu0 0.0
      %2546 = vmatprep.subr.mxu0 0.0
      %2547 = vmatpush1.msra.mxu0 0.0
      %2548 = vmatprep.subr.mxu0 0.0
      %2549 = vmatpush1.msra.mxu0 0.0
      %2550 = vmatprep.subr.mxu0 0.0
      %2551 = vmatpush1.msra.mxu0 0.0
      %2552 = vmatprep.subr.mxu0 0.0
      %2553 = vmatpush1.msra.mxu0 0.0
      %2554 = vmatprep.subr.mxu0 0.0
      %2555 = vmatpush1.msra.mxu0 0.0
      %2556 = vmatprep.subr.mxu0 0.0
      %2557 = vmatpush1.msra.mxu0 0.0
      %2558 = vmatprep.subr.mxu0 0.0
      %2559 = vmatpush1.msra.mxu0 0.0
      %2560 = vmatprep.subr.mxu0 0.0
      %2561 = vmatpush1.msra.mxu0 0.0
      %2562 = vmatprep.subr.mxu0 0.0
      %2563 = vmatpush1.msra.mxu0 0.0
      %2564 = vmatprep.subr.mxu0 0.0
      %2565 = vmatpush1.msra.mxu0 0.0
      %2566 = vmatprep.subr.mxu0 0.0
      %2567 = vmatpush1.msra.mxu0 0.0
      %2568 = vmatprep.subr.mxu0 0.0
      %2569 = vmatpush1.msra.mxu0 0.0
      %2570 = vmatprep.subr.mxu0 0.0
      %2571 = vmatpush1.msra.mxu0 0.0
      %2572 = vmatprep.subr.mxu0 0.0
      %2573 = vmatpush1.msra.mxu0 0.0
      %2574 = vmatprep.subr.mxu0 0.0
      %2575 = vmatpush1.msra.mxu0 0.0
      %2576 = vmatprep.subr.mxu0 0.0
      %2577 = vmatpush1.msra.mxu0 0.0
      %2578 = vmatprep.subr.mxu0 0.0
      %2579 = vmatpush1.msra.mxu0 0.0
      %2580 = vmatprep.subr.mxu0 0.0
      %2581 = vmatpush1.msra.mxu0 0.0
      %2582 = vmatprep.subr.mxu0 0.0
      %2583 = vmatpush1.msra.mxu0 0.0
      %2584 = vmatprep.subr.mxu0 0.0
      %2585 = vmatpush1.msra.mxu0 0.0
      %2586 = vmatprep.subr.mxu0 0.0
      %2587 = vmatpush1.msra.mxu0 0.0
      %2588 = vmatprep.subr.mxu0 0.0
      %2589 = vmatpush1.msra.mxu0 0.0
      %2590 = vmatprep.mubr.f32.mxu0 0.0
      %2591 = vmatmul.mubr.f32.gmra.mrb[0].mxu0 %v334
      %v2592 = vpop.f32.mrb[0].mxu0
      %v2593 = vadd.f32 0.0, %v2592
      %v2594 = vpop.f32.mrb[0].mxu0
      %2595 = vmatprep.mubr.f32.mxu0 0.0
      %2596 = vmatmul.mubr.f32.gmra.mrb[0].mxu0 %v337
      %v2597 = vpop.f32.mrb[0].mxu0
      %v2598 = vadd.f32 0.0, %v2597
      %v2599 = vpop.f32.mrb[0].mxu0
      %2600 = vmatprep.mubr.f32.mxu0 0.0
      %2601 = vmatmul.mubr.f32.gmra.mrb[0].mxu0 %v340
      %v2602 = vpop.f32.mrb[0].mxu0
      %v2603 = vadd.f32 0.0, %v2602
      %v2604 = vpop.f32.mrb[0].mxu0
      %2605 = vdwg.mxu0
      %2606 = vmatprep.subr.mxu0 0.0
      %2607 = vmatpush1.msra.mxu0 %v1673
      %2608 = vmatprep.subr.mxu0 0.0
      %2609 = vmatpush1.msra.mxu0 %v1678
      %2610 = vmatprep.subr.mxu0 0.0
      %2611 = vmatpush1.msra.mxu0 %v1683
      %2612 = vmatprep.subr.mxu0 0.0
      %2613 = vmatpush1.msra.mxu0 0.0
      %2614 = vmatprep.subr.mxu0 0.0
      %2615 = vmatpush1.msra.mxu0 0.0
      %2616 = vmatprep.subr.mxu0 0.0
      %2617 = vmatpush1.msra.mxu0 0.0
      %2618 = vmatprep.subr.mxu0 0.0
      %2619 = vmatpush1.msra.mxu0 0.0
      %2620 = vmatprep.subr.mxu0 0.0
      %2621 = vmatpush1.msra.mxu0 0.0
      %2622 = vmatprep.subr.mxu0 0.0
      %2623 = vmatpush1.msra.mxu0 0.0
      %2624 = vmatprep.subr.mxu0 0.0
      %2625 = vmatpush1.msra.mxu0 0.0
      %2626 = vmatprep.subr.mxu0 0.0
      %2627 = vmatpush1.msra.mxu0 0.0
      %2628 = vmatprep.subr.mxu0 0.0
      %2629 = vmatpush1.msra.mxu0 0.0
      %2630 = vmatprep.subr.mxu0 0.0
      %2631 = vmatpush1.msra.mxu0 0.0
      %2632 = vmatprep.subr.mxu0 0.0
      %2633 = vmatpush1.msra.mxu0 0.0
      %2634 = vmatprep.subr.mxu0 0.0
      %2635 = vmatpush1.msra.mxu0 0.0
      %2636 = vmatprep.subr.mxu0 0.0
      %2637 = vmatpush1.msra.mxu0 0.0
      %2638 = vmatprep.subr.mxu0 0.0
      %2639 = vmatpush1.msra.mxu0 0.0
      %2640 = vmatprep.subr.mxu0 0.0
      %2641 = vmatpush1.msra.mxu0 0.0
      %2642 = vmatprep.subr.mxu0 0.0
      %2643 = vmatpush1.msra.mxu0 0.0
      %2644 = vmatprep.subr.mxu0 0.0
      %2645 = vmatpush1.msra.mxu0 0.0
      %2646 = vmatprep.subr.mxu0 0.0
      %2647 = vmatpush1.msra.mxu0 0.0
      %2648 = vmatprep.subr.mxu0 0.0
      %2649 = vmatpush1.msra.mxu0 0.0
      %2650 = vmatprep.subr.mxu0 0.0
      %2651 = vmatpush1.msra.mxu0 0.0
      %2652 = vmatprep.subr.mxu0 0.0
      %2653 = vmatpush1.msra.mxu0 0.0
      %2654 = vmatprep.subr.mxu0 0.0
      %2655 = vmatpush1.msra.mxu0 0.0
      %2656 = vmatprep.subr.mxu0 0.0
      %2657 = vmatpush1.msra.mxu0 0.0
      %2658 = vmatprep.subr.mxu0 0.0
      %2659 = vmatpush1.msra.mxu0 0.0
      %2660 = vmatprep.subr.mxu0 0.0
      %2661 = vmatpush1.msra.mxu0 0.0
      %2662 = vmatprep.subr.mxu0 0.0
      %2663 = vmatpush1.msra.mxu0 0.0
      %2664 = vmatprep.subr.mxu0 0.0
      %2665 = vmatpush1.msra.mxu0 0.0
      %2666 = vmatprep.subr.mxu0 0.0
      %2667 = vmatpush1.msra.mxu0 0.0
      %2668 = vmatprep.subr.mxu0 0.0
      %2669 = vmatpush1.msra.mxu0 0.0
      %2670 = vmatprep.mubr.f32.mxu0 0.0
      %2671 = vmatmul.mubr.f32.gmra.mrb[0].mxu0 %v343
      %v2672 = vpop.f32.mrb[0].mxu0
      %v2673 = vadd.f32 0.0, %v2672
      %v2674 = vpop.f32.mrb[0].mxu0
      %2675 = vmatprep.mubr.f32.mxu0 0.0
      %2676 = vmatmul.mubr.f32.gmra.mrb[0].mxu0 %v346
      %v2677 = vpop.f32.mrb[0].mxu0
      %v2678 = vadd.f32 0.0, %v2677
      %v2679 = vpop.f32.mrb[0].mxu0
      %2680 = vmatprep.mubr.f32.mxu0 0.0
      %2681 = vmatmul.mubr.f32.gmra.mrb[0].mxu0 %v349
      %v2682 = vpop.f32.mrb[0].mxu0
      %v2683 = vadd.f32 0.0, %v2682
      %v2684 = vpop.f32.mrb[0].mxu0
      %2685 = vdwg.mxu0
      %2686 = vmatprep.subr.mxu0 0.0
      %2687 = vmatpush1.msra.mxu0 %v1688
      %2688 = vmatprep.subr.mxu0 0.0
      %2689 = vmatpush1.msra.mxu0 %v1693
      %2690 = vmatprep.subr.mxu0 0.0
      %2691 = vmatpush1.msra.mxu0 %v1698
      %2692 = vmatprep.subr.mxu0 0.0
      %2693 = vmatpush1.msra.mxu0 0.0
      %2694 = vmatprep.subr.mxu0 0.0
      %2695 = vmatpush1.msra.mxu0 0.0
      %2696 = vmatprep.subr.mxu0 0.0
      %2697 = vmatpush1.msra.mxu0 0.0
      %2698 = vmatprep.subr.mxu0 0.0
      %2699 = vmatpush1.msra.mxu0 0.0
      %2700 = vmatprep.subr.mxu0 0.0
      %2701 = vmatpush1.msra.mxu0 0.0
      %2702 = vmatprep.subr.mxu0 0.0
      %2703 = vmatpush1.msra.mxu0 0.0
      %2704 = vmatprep.subr.mxu0 0.0
      %2705 = vmatpush1.msra.mxu0 0.0
      %2706 = vmatprep.subr.mxu0 0.0
      %2707 = vmatpush1.msra.mxu0 0.0
      %2708 = vmatprep.subr.mxu0 0.0
      %2709 = vmatpush1.msra.mxu0 0.0
      %2710 = vmatprep.subr.mxu0 0.0
      %2711 = vmatpush1.msra.mxu0 0.0
      %2712 = vmatprep.subr.mxu0 0.0
      %2713 = vmatpush1.msra.mxu0 0.0
      %2714 = vmatprep.subr.mxu0 0.0
      %2715 = vmatpush1.msra.mxu0 0.0
      %2716 = vmatprep.subr.mxu0 0.0
      %2717 = vmatpush1.msra.mxu0 0.0
      %2718 = vmatprep.subr.mxu0 0.0
      %2719 = vmatpush1.msra.mxu0 0.0
      %2720 = vmatprep.subr.mxu0 0.0
      %2721 = vmatpush1.msra.mxu0 0.0
      %2722 = vmatprep.subr.mxu0 0.0
      %2723 = vmatpush1.msra.mxu0 0.0
      %2724 = vmatprep.subr.mxu0 0.0
      %2725 = vmatpush1.msra.mxu0 0.0
      %2726 = vmatprep.subr.mxu0 0.0
      %2727 = vmatpush1.msra.mxu0 0.0
      %2728 = vmatprep.subr.mxu0 0.0
      %2729 = vmatpush1.msra.mxu0 0.0
      %2730 = vmatprep.subr.mxu0 0.0
      %2731 = vmatpush1.msra.mxu0 0.0
      %2732 = vmatprep.subr.mxu0 0.0
      %2733 = vmatpush1.msra.mxu0 0.0
      %2734 = vmatprep.subr.mxu0 0.0
      %2735 = vmatpush1.msra.mxu0 0.0
      %2736 = vmatprep.subr.mxu0 0.0
      %2737 = vmatpush1.msra.mxu0 0.0
      %2738 = vmatprep.subr.mxu0 0.0
      %2739 = vmatpush1.msra.mxu0 0.0
      %2740 = vmatprep.subr.mxu0 0.0
      %2741 = vmatpush1.msra.mxu0 0.0
      %2742 = vmatprep.subr.mxu0 0.0
      %2743 = vmatpush1.msra.mxu0 0.0
      %2744 = vmatprep.subr.mxu0 0.0
      %2745 = vmatpush1.msra.mxu0 0.0
      %2746 = vmatprep.subr.mxu0 0.0
      %2747 = vmatpush1.msra.mxu0 0.0
      %2748 = vmatprep.subr.mxu0 0.0
      %2749 = vmatpush1.msra.mxu0 0.0
      %2750 = vmatprep.mubr.f32.mxu0 0.0
      %2751 = vmatmul.mubr.f32.gmra.mrb[0].mxu0 %v352
      %v2752 = vpop.f32.mrb[0].mxu0
      %v2753 = vadd.f32 0.0, %v2752
      %v2754 = vpop.f32.mrb[0].mxu0
      %2755 = vmatprep.mubr.f32.mxu0 0.0
      %2756 = vmatmul.mubr.f32.gmra.mrb[0].mxu0 %v355
      %v2757 = vpop.f32.mrb[0].mxu0
      %v2758 = vadd.f32 0.0, %v2757
      %v2759 = vpop.f32.mrb[0].mxu0
      %2760 = vmatprep.mubr.f32.mxu0 0.0
      %2761 = vmatmul.mubr.f32.gmra.mrb[0].mxu0 %v358
      %v2762 = vpop.f32.mrb[0].mxu0
      %v2763 = vadd.f32 0.0, %v2762
      %v2764 = vpop.f32.mrb[0].mxu0
      %2765 = vdwg.mxu0
      %2766 = vmatprep.subr.mxu0 0.0
      %2767 = vmatpush1.msra.mxu0 %v1703
      %2768 = vmatprep.subr.mxu0 0.0
      %2769 = vmatpush1.msra.mxu0 %v1708
      %2770 = vmatprep.subr.mxu0 0.0
      %2771 = vmatpush1.msra.mxu0 %v1713
      %2772 = vmatprep.subr.mxu0 0.0
      %2773 = vmatpush1.msra.mxu0 0.0
      %2774 = vmatprep.subr.mxu0 0.0
      %2775 = vmatpush1.msra.mxu0 0.0
      %2776 = vmatprep.subr.mxu0 0.0
      %2777 = vmatpush1.msra.mxu0 0.0
      %2778 = vmatprep.subr.mxu0 0.0
      %2779 = vmatpush1.msra.mxu0 0.0
      %2780 = vmatprep.subr.mxu0 0.0
      %2781 = vmatpush1.msra.mxu0 0.0
      %2782 = vmatprep.subr.mxu0 0.0
      %2783 = vmatpush1.msra.mxu0 0.0
      %2784 = vmatprep.subr.mxu0 0.0
      %2785 = vmatpush1.msra.mxu0 0.0
      %2786 = vmatprep.subr.mxu0 0.0
      %2787 = vmatpush1.msra.mxu0 0.0
      %2788 = vmatprep.subr.mxu0 0.0
      %2789 = vmatpush1.msra.mxu0 0.0
      %2790 = vmatprep.subr.mxu0 0.0
      %2791 = vmatpush1.msra.mxu0 0.0
      %2792 = vmatprep.subr.mxu0 0.0
      %2793 = vmatpush1.msra.mxu0 0.0
      %2794 = vmatprep.subr.mxu0 0.0
      %2795 = vmatpush1.msra.mxu0 0.0
      %2796 = vmatprep.subr.mxu0 0.0
      %2797 = vmatpush1.msra.mxu0 0.0
      %2798 = vmatprep.subr.mxu0 0.0
      %2799 = vmatpush1.msra.mxu0 0.0
      %2800 = vmatprep.subr.mxu0 0.0
      %2801 = vmatpush1.msra.mxu0 0.0
      %2802 = vmatprep.subr.mxu0 0.0
      %2803 = vmatpush1.msra.mxu0 0.0
      %2804 = vmatprep.subr.mxu0 0.0
      %2805 = vmatpush1.msra.mxu0 0.0
      %2806 = vmatprep.subr.mxu0 0.0
      %2807 = vmatpush1.msra.mxu0 0.0
      %2808 = vmatprep.subr.mxu0 0.0
      %2809 = vmatpush1.msra.mxu0 0.0
      %2810 = vmatprep.subr.mxu0 0.0
      %2811 = vmatpush1.msra.mxu0 0.0
      %2812 = vmatprep.subr.mxu0 0.0
      %2813 = vmatpush1.msra.mxu0 0.0
      %2814 = vmatprep.subr.mxu0 0.0
      %2815 = vmatpush1.msra.mxu0 0.0
      %2816 = vmatprep.subr.mxu0 0.0
      %2817 = vmatpush1.msra.mxu0 0.0
      %2818 = vmatprep.subr.mxu0 0.0
      %2819 = vmatpush1.msra.mxu0 0.0
      %2820 = vmatprep.subr.mxu0 0.0
      %2821 = vmatpush1.msra.mxu0 0.0
      %2822 = vmatprep.subr.mxu0 0.0
      %2823 = vmatpush1.msra.mxu0 0.0
      %2824 = vmatprep.subr.mxu0 0.0
      %2825 = vmatpush1.msra.mxu0 0.0
      %2826 = vmatprep.subr.mxu0 0.0
      %2827 = vmatpush1.msra.mxu0 0.0
      %2828 = vmatprep.subr.mxu0 0.0
      %2829 = vmatpush1.msra.mxu0 0.0
      %2830 = vmatprep.mubr.f32.mxu0 0.0
      %2831 = vmatmul.mubr.f32.gmra.mrb[0].mxu0 %v361
      %v2832 = vpop.f32.mrb[0].mxu0
      %v2833 = vadd.f32 0.0, %v2832
      %v2834 = vpop.f32.mrb[0].mxu0
      %2835 = vmatprep.mubr.f32.mxu0 0.0
      %2836 = vmatmul.mubr.f32.gmra.mrb[0].mxu0 %v364
      %v2837 = vpop.f32.mrb[0].mxu0
      %v2838 = vadd.f32 0.0, %v2837
      %v2839 = vpop.f32.mrb[0].mxu0
      %2840 = vmatprep.mubr.f32.mxu0 0.0
      %2841 = vmatmul.mubr.f32.gmra.mrb[0].mxu0 %v367
      %v2842 = vpop.f32.mrb[0].mxu0
      %v2843 = vadd.f32 0.0, %v2842
      %v2844 = vpop.f32.mrb[0].mxu0
      %2845 = vdwg.mxu0
      %2846 = vmatprep.subr.mxu0 0.0
      %2847 = vmatpush1.msra.mxu0 %v1718
      %2848 = vmatprep.subr.mxu0 0.0
      %2849 = vmatpush1.msra.mxu0 %v1723
      %2850 = vmatprep.subr.mxu0 0.0
      %2851 = vmatpush1.msra.mxu0 %v1728
      %2852 = vmatprep.subr.mxu0 0.0
      %2853 = vmatpush1.msra.mxu0 0.0
      %2854 = vmatprep.subr.mxu0 0.0
      %2855 = vmatpush1.msra.mxu0 0.0
      %2856 = vmatprep.subr.mxu0 0.0
      %2857 = vmatpush1.msra.mxu0 0.0
      %2858 = vmatprep.subr.mxu0 0.0
      %2859 = vmatpush1.msra.mxu0 0.0
      %2860 = vmatprep.subr.mxu0 0.0
      %2861 = vmatpush1.msra.mxu0 0.0
      %2862 = vmatprep.subr.mxu0 0.0
      %2863 = vmatpush1.msra.mxu0 0.0
      %2864 = vmatprep.subr.mxu0 0.0
      %2865 = vmatpush1.msra.mxu0 0.0
      %2866 = vmatprep.subr.mxu0 0.0
      %2867 = vmatpush1.msra.mxu0 0.0
      %2868 = vmatprep.subr.mxu0 0.0
      %2869 = vmatpush1.msra.mxu0 0.0
      %2870 = vmatprep.subr.mxu0 0.0
      %2871 = vmatpush1.msra.mxu0 0.0
      %2872 = vmatprep.subr.mxu0 0.0
      %2873 = vmatpush1.msra.mxu0 0.0
      %2874 = vmatprep.subr.mxu0 0.0
      %2875 = vmatpush1.msra.mxu0 0.0
      %2876 = vmatprep.subr.mxu0 0.0
      %2877 = vmatpush1.msra.mxu0 0.0
      %2878 = vmatprep.subr.mxu0 0.0
      %2879 = vmatpush1.msra.mxu0 0.0
      %2880 = vmatprep.subr.mxu0 0.0
      %2881 = vmatpush1.msra.mxu0 0.0
      %2882 = vmatprep.subr.mxu0 0.0
      %2883 = vmatpush1.msra.mxu0 0.0
      %2884 = vmatprep.subr.mxu0 0.0
      %2885 = vmatpush1.msra.mxu0 0.0
      %2886 = vmatprep.subr.mxu0 0.0
      %2887 = vmatpush1.msra.mxu0 0.0
      %2888 = vmatprep.subr.mxu0 0.0
      %2889 = vmatpush1.msra.mxu0 0.0
      %2890 = vmatprep.subr.mxu0 0.0
      %2891 = vmatpush1.msra.mxu0 0.0
      %2892 = vmatprep.subr.mxu0 0.0
      %2893 = vmatpush1.msra.mxu0 0.0
      %2894 = vmatprep.subr.mxu0 0.0
      %2895 = vmatpush1.msra.mxu0 0.0
      %2896 = vmatprep.subr.mxu0 0.0
      %2897 = vmatpush1.msra.mxu0 0.0
      %2898 = vmatprep.subr.mxu0 0.0
      %2899 = vmatpush1.msra.mxu0 0.0
      %2900 = vmatprep.subr.mxu0 0.0
      %2901 = vmatpush1.msra.mxu0 0.0
      %2902 = vmatprep.subr.mxu0 0.0
      %2903 = vmatpush1.msra.mxu0 0.0
      %2904 = vmatprep.subr.mxu0 0.0
      %2905 = vmatpush1.msra.mxu0 0.0
      %2906 = vmatprep.subr.mxu0 0.0
      %2907 = vmatpush1.msra.mxu0 0.0
      %2908 = vmatprep.subr.mxu0 0.0
      %2909 = vmatpush1.msra.mxu0 0.0
      %2910 = vmatprep.mubr.f32.mxu0 0.0
      %2911 = vmatmul.mubr.f32.gmra.mrb[0].mxu0 %v370
      %v2912 = vpop.f32.mrb[0].mxu0
      %v2913 = vadd.f32 0.0, %v2912
      %v2914 = vpop.f32.mrb[0].mxu0
      %2915 = vmatprep.mubr.f32.mxu0 0.0
      %2916 = vmatmul.mubr.f32.gmra.mrb[0].mxu0 %v373
      %v2917 = vpop.f32.mrb[0].mxu0
      %v2918 = vadd.f32 0.0, %v2917
      %v2919 = vpop.f32.mrb[0].mxu0
      %2920 = vmatprep.mubr.f32.mxu0 0.0
      %2921 = vmatmul.mubr.f32.gmra.mrb[0].mxu0 %v376
      %v2922 = vpop.f32.mrb[0].mxu0
      %v2923 = vadd.f32 0.0, %v2922
      %v2924 = vpop.f32.mrb[0].mxu0
      %2925 = vdwg.mxu0
      %2926 = vmatprep.subr.mxu0 0.0
      %2927 = vmatpush1.msra.mxu0 %v1733
      %2928 = vmatprep.subr.mxu0 0.0
      %2929 = vmatpush1.msra.mxu0 %v1738
      %2930 = vmatprep.subr.mxu0 0.0
      %2931 = vmatpush1.msra.mxu0 %v1743
      %2932 = vmatprep.subr.mxu0 0.0
      %2933 = vmatpush1.msra.mxu0 0.0
      %2934 = vmatprep.subr.mxu0 0.0
      %2935 = vmatpush1.msra.mxu0 0.0
      %2936 = vmatprep.subr.mxu0 0.0
      %2937 = vmatpush1.msra.mxu0 0.0
      %2938 = vmatprep.subr.mxu0 0.0
      %2939 = vmatpush1.msra.mxu0 0.0
      %2940 = vmatprep.subr.mxu0 0.0
      %2941 = vmatpush1.msra.mxu0 0.0
      %2942 = vmatprep.subr.mxu0 0.0
      %2943 = vmatpush1.msra.mxu0 0.0
      %2944 = vmatprep.subr.mxu0 0.0
      %2945 = vmatpush1.msra.mxu0 0.0
      %2946 = vmatprep.subr.mxu0 0.0
      %2947 = vmatpush1.msra.mxu0 0.0
      %2948 = vmatprep.subr.mxu0 0.0
      %2949 = vmatpush1.msra.mxu0 0.0
      %2950 = vmatprep.subr.mxu0 0.0
      %2951 = vmatpush1.msra.mxu0 0.0
      %2952 = vmatprep.subr.mxu0 0.0
      %2953 = vmatpush1.msra.mxu0 0.0
      %2954 = vmatprep.subr.mxu0 0.0
      %2955 = vmatpush1.msra.mxu0 0.0
      %2956 = vmatprep.subr.mxu0 0.0
      %2957 = vmatpush1.msra.mxu0 0.0
      %2958 = vmatprep.subr.mxu0 0.0
      %2959 = vmatpush1.msra.mxu0 0.0
      %2960 = vmatprep.subr.mxu0 0.0
      %2961 = vmatpush1.msra.mxu0 0.0
      %2962 = vmatprep.subr.mxu0 0.0
      %2963 = vmatpush1.msra.mxu0 0.0
      %2964 = vmatprep.subr.mxu0 0.0
      %2965 = vmatpush1.msra.mxu0 0.0
      %2966 = vmatprep.subr.mxu0 0.0
      %2967 = vmatpush1.msra.mxu0 0.0
      %2968 = vmatprep.subr.mxu0 0.0
      %2969 = vmatpush1.msra.mxu0 0.0
      %2970 = vmatprep.subr.mxu0 0.0
      %2971 = vmatpush1.msra.mxu0 0.0
      %2972 = vmatprep.subr.mxu0 0.0
      %2973 = vmatpush1.msra.mxu0 0.0
      %2974 = vmatprep.subr.mxu0 0.0
      %2975 = vmatpush1.msra.mxu0 0.0
      %2976 = vmatprep.subr.mxu0 0.0
      %2977 = vmatpush1.msra.mxu0 0.0
      %2978 = vmatprep.subr.mxu0 0.0
      %2979 = vmatpush1.msra.mxu0 0.0
      %2980 = vmatprep.subr.mxu0 0.0
      %2981 = vmatpush1.msra.mxu0 0.0
      %2982 = vmatprep.subr.mxu0 0.0
      %2983 = vmatpush1.msra.mxu0 0.0
      %2984 = vmatprep.subr.mxu0 0.0
      %2985 = vmatpush1.msra.mxu0 0.0
      %2986 = vmatprep.subr.mxu0 0.0
      %2987 = vmatpush1.msra.mxu0 0.0
      %2988 = vmatprep.subr.mxu0 0.0
      %2989 = vmatpush1.msra.mxu0 0.0
      %2990 = vmatprep.mubr.f32.mxu0 0.0
      %2991 = vmatmul.mubr.f32.gmra.mrb[0].mxu0 %v379
      %v2992 = vpop.f32.mrb[0].mxu0
      %v2993 = vadd.f32 0.0, %v2992
      %v2994 = vpop.f32.mrb[0].mxu0
      %2995 = vmatprep.mubr.f32.mxu0 0.0
      %2996 = vmatmul.mubr.f32.gmra.mrb[0].mxu0 %v382
      %v2997 = vpop.f32.mrb[0].mxu0
      %v2998 = vadd.f32 0.0, %v2997
      %v2999 = vpop.f32.mrb[0].mxu0
      %3000 = vmatprep.mubr.f32.mxu0 0.0
      %3001 = vmatmul.mubr.f32.gmra.mrb[0].mxu0 %v385
      %v3002 = vpop.f32.mrb[0].mxu0
      %v3003 = vadd.f32 0.0, %v3002
      %v3004 = vpop.f32.mrb[0].mxu0
      %3005 = vdwg.mxu0
      %3006 = vmatprep.subr.mxu0 0.0
      %3007 = vmatpush1.msra.mxu0 %v1748
      %3008 = vmatprep.subr.mxu0 0.0
      %3009 = vmatpush1.msra.mxu0 %v1753
      %3010 = vmatprep.subr.mxu0 0.0
      %3011 = vmatpush1.msra.mxu0 %v1758
      %3012 = vmatprep.subr.mxu0 0.0
      %3013 = vmatpush1.msra.mxu0 0.0
      %3014 = vmatprep.subr.mxu0 0.0
      %3015 = vmatpush1.msra.mxu0 0.0
      %3016 = vmatprep.subr.mxu0 0.0
      %3017 = vmatpush1.msra.mxu0 0.0
      %3018 = vmatprep.subr.mxu0 0.0
      %3019 = vmatpush1.msra.mxu0 0.0
      %3020 = vmatprep.subr.mxu0 0.0
      %3021 = vmatpush1.msra.mxu0 0.0
      %3022 = vmatprep.subr.mxu0 0.0
      %3023 = vmatpush1.msra.mxu0 0.0
      %3024 = vmatprep.subr.mxu0 0.0
      %3025 = vmatpush1.msra.mxu0 0.0
      %3026 = vmatprep.subr.mxu0 0.0
      %3027 = vmatpush1.msra.mxu0 0.0
      %3028 = vmatprep.subr.mxu0 0.0
      %3029 = vmatpush1.msra.mxu0 0.0
      %3030 = vmatprep.subr.mxu0 0.0
      %3031 = vmatpush1.msra.mxu0 0.0
      %3032 = vmatprep.subr.mxu0 0.0
      %3033 = vmatpush1.msra.mxu0 0.0
      %3034 = vmatprep.subr.mxu0 0.0
      %3035 = vmatpush1.msra.mxu0 0.0
      %3036 = vmatprep.subr.mxu0 0.0
      %3037 = vmatpush1.msra.mxu0 0.0
      %3038 = vmatprep.subr.mxu0 0.0
      %3039 = vmatpush1.msra.mxu0 0.0
      %3040 = vmatprep.subr.mxu0 0.0
      %3041 = vmatpush1.msra.mxu0 0.0
      %3042 = vmatprep.subr.mxu0 0.0
      %3043 = vmatpush1.msra.mxu0 0.0
      %3044 = vmatprep.subr.mxu0 0.0
      %3045 = vmatpush1.msra.mxu0 0.0
      %3046 = vmatprep.subr.mxu0 0.0
      %3047 = vmatpush1.msra.mxu0 0.0
      %3048 = vmatprep.subr.mxu0 0.0
      %3049 = vmatpush1.msra.mxu0 0.0
      %3050 = vmatprep.subr.mxu0 0.0
      %3051 = vmatpush1.msra.mxu0 0.0
      %3052 = vmatprep.subr.mxu0 0.0
      %3053 = vmatpush1.msra.mxu0 0.0
      %3054 = vmatprep.subr.mxu0 0.0
      %3055 = vmatpush1.msra.mxu0 0.0
      %3056 = vmatprep.subr.mxu0 0.0
      %3057 = vmatpush1.msra.mxu0 0.0
      %3058 = vmatprep.subr.mxu0 0.0
      %3059 = vmatpush1.msra.mxu0 0.0
      %3060 = vmatprep.subr.mxu0 0.0
      %3061 = vmatpush1.msra.mxu0 0.0
      %3062 = vmatprep.subr.mxu0 0.0
      %3063 = vmatpush1.msra.mxu0 0.0
      %3064 = vmatprep.subr.mxu0 0.0
      %3065 = vmatpush1.msra.mxu0 0.0
      %3066 = vmatprep.subr.mxu0 0.0
      %3067 = vmatpush1.msra.mxu0 0.0
      %3068 = vmatprep.subr.mxu0 0.0
      %3069 = vmatpush1.msra.mxu0 0.0
      %3070 = vmatprep.mubr.f32.mxu0 0.0
      %3071 = vmatmul.mubr.f32.gmra.mrb[0].mxu0 %v388
      %v3072 = vpop.f32.mrb[0].mxu0
      %v3073 = vadd.f32 0.0, %v3072
      %v3074 = vpop.f32.mrb[0].mxu0
      %3075 = vmatprep.mubr.f32.mxu0 0.0
      %3076 = vmatmul.mubr.f32.gmra.mrb[0].mxu0 %v391
      %v3077 = vpop.f32.mrb[0].mxu0
      %v3078 = vadd.f32 0.0, %v3077
      %v3079 = vpop.f32.mrb[0].mxu0
      %3080 = vmatprep.mubr.f32.mxu0 0.0
      %3081 = vmatmul.mubr.f32.gmra.mrb[0].mxu0 %v394
      %v3082 = vpop.f32.mrb[0].mxu0
      %v3083 = vadd.f32 0.0, %v3082
      %v3084 = vpop.f32.mrb[0].mxu0
      %3085 = vdwg.mxu0
      %3086 = vmatprep.subr.mxu0 0.0
      %3087 = vmatpush1.msra.mxu0 %v1763
      %3088 = vmatprep.subr.mxu0 0.0
      %3089 = vmatpush1.msra.mxu0 %v1768
      %3090 = vmatprep.subr.mxu0 0.0
      %3091 = vmatpush1.msra.mxu0 %v1773
      %3092 = vmatprep.subr.mxu0 0.0
      %3093 = vmatpush1.msra.mxu0 0.0
      %3094 = vmatprep.subr.mxu0 0.0
      %3095 = vmatpush1.msra.mxu0 0.0
      %3096 = vmatprep.subr.mxu0 0.0
      %3097 = vmatpush1.msra.mxu0 0.0
      %3098 = vmatprep.subr.mxu0 0.0
      %3099 = vmatpush1.msra.mxu0 0.0
      %3100 = vmatprep.subr.mxu0 0.0
      %3101 = vmatpush1.msra.mxu0 0.0
      %3102 = vmatprep.subr.mxu0 0.0
      %3103 = vmatpush1.msra.mxu0 0.0
      %3104 = vmatprep.subr.mxu0 0.0
      %3105 = vmatpush1.msra.mxu0 0.0
      %3106 = vmatprep.subr.mxu0 0.0
      %3107 = vmatpush1.msra.mxu0 0.0
      %3108 = vmatprep.subr.mxu0 0.0
      %3109 = vmatpush1.msra.mxu0 0.0
      %3110 = vmatprep.subr.mxu0 0.0
      %3111 = vmatpush1.msra.mxu0 0.0
      %3112 = vmatprep.subr.mxu0 0.0
      %3113 = vmatpush1.msra.mxu0 0.0
      %3114 = vmatprep.subr.mxu0 0.0
      %3115 = vmatpush1.msra.mxu0 0.0
      %3116 = vmatprep.subr.mxu0 0.0
      %3117 = vmatpush1.msra.mxu0 0.0
      %3118 = vmatprep.subr.mxu0 0.0
      %3119 = vmatpush1.msra.mxu0 0.0
      %3120 = vmatprep.subr.mxu0 0.0
      %3121 = vmatpush1.msra.mxu0 0.0
      %3122 = vmatprep.subr.mxu0 0.0
      %3123 = vmatpush1.msra.mxu0 0.0
      %3124 = vmatprep.subr.mxu0 0.0
      %3125 = vmatpush1.msra.mxu0 0.0
      %3126 = vmatprep.subr.mxu0 0.0
      %3127 = vmatpush1.msra.mxu0 0.0
      %3128 = vmatprep.subr.mxu0 0.0
      %3129 = vmatpush1.msra.mxu0 0.0
      %3130 = vmatprep.subr.mxu0 0.0
      %3131 = vmatpush1.msra.mxu0 0.0
      %3132 = vmatprep.subr.mxu0 0.0
      %3133 = vmatpush1.msra.mxu0 0.0
      %3134 = vmatprep.subr.mxu0 0.0
      %3135 = vmatpush1.msra.mxu0 0.0
      %3136 = vmatprep.subr.mxu0 0.0
      %3137 = vmatpush1.msra.mxu0 0.0
      %3138 = vmatprep.subr.mxu0 0.0
      %3139 = vmatpush1.msra.mxu0 0.0
      %3140 = vmatprep.subr.mxu0 0.0
      %3141 = vmatpush1.msra.mxu0 0.0
      %3142 = vmatprep.subr.mxu0 0.0
      %3143 = vmatpush1.msra.mxu0 0.0
      %3144 = vmatprep.subr.mxu0 0.0
      %3145 = vmatpush1.msra.mxu0 0.0
      %3146 = vmatprep.subr.mxu0 0.0
      %3147 = vmatpush1.msra.mxu0 0.0
      %3148 = vmatprep.subr.mxu0 0.0
      %3149 = vmatpush1.msra.mxu0 0.0
      %3150 = vmatprep.mubr.f32.mxu0 0.0
      %3151 = vmatmul.mubr.f32.gmra.mrb[0].mxu0 %v397
      %v3152 = vpop.f32.mrb[0].mxu0
      %v3153 = vadd.f32 0.0, %v3152
      %v3154 = vpop.f32.mrb[0].mxu0
      %3155 = vmatprep.mubr.f32.mxu0 0.0
      %3156 = vmatmul.mubr.f32.gmra.mrb[0].mxu0 %v400
      %v3157 = vpop.f32.mrb[0].mxu0
      %v3158 = vadd.f32 0.0, %v3157
      %v3159 = vpop.f32.mrb[0].mxu0
      %3160 = vmatprep.mubr.f32.mxu0 0.0
      %3161 = vmatmul.mubr.f32.gmra.mrb[0].mxu0 %v403
      %v3162 = vpop.f32.mrb[0].mxu0
      %v3163 = vadd.f32 0.0, %v3162
      %v3164 = vpop.f32.mrb[0].mxu0
      %3165 = vdwg.mxu0
      %3166 = vmatprep.subr.mxu0 0.0
      %3167 = vmatpush1.msra.mxu0 %v1778
      %3168 = vmatprep.subr.mxu0 0.0
      %3169 = vmatpush1.msra.mxu0 %v1783
      %3170 = vmatprep.subr.mxu0 0.0
      %3171 = vmatpush1.msra.mxu0 %v1788
      %3172 = vmatprep.subr.mxu0 0.0
      %3173 = vmatpush1.msra.mxu0 0.0
      %3174 = vmatprep.subr.mxu0 0.0
      %3175 = vmatpush1.msra.mxu0 0.0
      %3176 = vmatprep.subr.mxu0 0.0
      %3177 = vmatpush1.msra.mxu0 0.0
      %3178 = vmatprep.subr.mxu0 0.0
      %3179 = vmatpush1.msra.mxu0 0.0
      %3180 = vmatprep.subr.mxu0 0.0
      %3181 = vmatpush1.msra.mxu0 0.0
      %3182 = vmatprep.subr.mxu0 0.0
      %3183 = vmatpush1.msra.mxu0 0.0
      %3184 = vmatprep.subr.mxu0 0.0
      %3185 = vmatpush1.msra.mxu0 0.0
      %3186 = vmatprep.subr.mxu0 0.0
      %3187 = vmatpush1.msra.mxu0 0.0
      %3188 = vmatprep.subr.mxu0 0.0
      %3189 = vmatpush1.msra.mxu0 0.0
      %3190 = vmatprep.subr.mxu0 0.0
      %3191 = vmatpush1.msra.mxu0 0.0
      %3192 = vmatprep.subr.mxu0 0.0
      %3193 = vmatpush1.msra.mxu0 0.0
      %3194 = vmatprep.subr.mxu0 0.0
      %3195 = vmatpush1.msra.mxu0 0.0
      %3196 = vmatprep.subr.mxu0 0.0
      %3197 = vmatpush1.msra.mxu0 0.0
      %3198 = vmatprep.subr.mxu0 0.0
      %3199 = vmatpush1.msra.mxu0 0.0
      %3200 = vmatprep.subr.mxu0 0.0
      %3201 = vmatpush1.msra.mxu0 0.0
      %3202 = vmatprep.subr.mxu0 0.0
      %3203 = vmatpush1.msra.mxu0 0.0
      %3204 = vmatprep.subr.mxu0 0.0
      %3205 = vmatpush1.msra.mxu0 0.0
      %3206 = vmatprep.subr.mxu0 0.0
      %3207 = vmatpush1.msra.mxu0 0.0
      %3208 = vmatprep.subr.mxu0 0.0
      %3209 = vmatpush1.msra.mxu0 0.0
      %3210 = vmatprep.subr.mxu0 0.0
      %3211 = vmatpush1.msra.mxu0 0.0
      %3212 = vmatprep.subr.mxu0 0.0
      %3213 = vmatpush1.msra.mxu0 0.0
      %3214 = vmatprep.subr.mxu0 0.0
      %3215 = vmatpush1.msra.mxu0 0.0
      %3216 = vmatprep.subr.mxu0 0.0
      %3217 = vmatpush1.msra.mxu0 0.0
      %3218 = vmatprep.subr.mxu0 0.0
      %3219 = vmatpush1.msra.mxu0 0.0
      %3220 = vmatprep.subr.mxu0 0.0
      %3221 = vmatpush1.msra.mxu0 0.0
      %3222 = vmatprep.subr.mxu0 0.0
      %3223 = vmatpush1.msra.mxu0 0.0
      %3224 = vmatprep.subr.mxu0 0.0
      %3225 = vmatpush1.msra.mxu0 0.0
      %3226 = vmatprep.subr.mxu0 0.0
      %3227 = vmatpush1.msra.mxu0 0.0
      %3228 = vmatprep.subr.mxu0 0.0
      %3229 = vmatpush1.msra.mxu0 0.0
      %3230 = vmatprep.mubr.f32.mxu0 0.0
      %3231 = vmatmul.mubr.f32.gmra.mrb[0].mxu0 %v406
      %v3232 = vpop.f32.mrb[0].mxu0
      %v3233 = vadd.f32 0.0, %v3232
      %v3234 = vpop.f32.mrb[0].mxu0
      %3235 = vmatprep.mubr.f32.mxu0 0.0
      %3236 = vmatmul.mubr.f32.gmra.mrb[0].mxu0 %v409
      %v3237 = vpop.f32.mrb[0].mxu0
      %v3238 = vadd.f32 0.0, %v3237
      %v3239 = vpop.f32.mrb[0].mxu0
      %3240 = vmatprep.mubr.f32.mxu0 0.0
      %3241 = vmatmul.mubr.f32.gmra.mrb[0].mxu0 %v412
      %v3242 = vpop.f32.mrb[0].mxu0
      %v3243 = vadd.f32 0.0, %v3242
      %v3244 = vpop.f32.mrb[0].mxu0
      %3245 = vdwg.mxu0
      %3246 = vmatprep.subr.mxu0 0.0
      %3247 = vmatpush1.msra.mxu0 %v1793
      %3248 = vmatprep.subr.mxu0 0.0
      %3249 = vmatpush1.msra.mxu0 %v1798
      %3250 = vmatprep.subr.mxu0 0.0
      %3251 = vmatpush1.msra.mxu0 %v1803
      %3252 = vmatprep.subr.mxu0 0.0
      %3253 = vmatpush1.msra.mxu0 0.0
      %3254 = vmatprep.subr.mxu0 0.0
      %3255 = vmatpush1.msra.mxu0 0.0
      %3256 = vmatprep.subr.mxu0 0.0
      %3257 = vmatpush1.msra.mxu0 0.0
      %3258 = vmatprep.subr.mxu0 0.0
      %3259 = vmatpush1.msra.mxu0 0.0
      %3260 = vmatprep.subr.mxu0 0.0
      %3261 = vmatpush1.msra.mxu0 0.0
      %3262 = vmatprep.subr.mxu0 0.0
      %3263 = vmatpush1.msra.mxu0 0.0
      %3264 = vmatprep.subr.mxu0 0.0
      %3265 = vmatpush1.msra.mxu0 0.0
      %3266 = vmatprep.subr.mxu0 0.0
      %3267 = vmatpush1.msra.mxu0 0.0
      %3268 = vmatprep.subr.mxu0 0.0
      %3269 = vmatpush1.msra.mxu0 0.0
      %3270 = vmatprep.subr.mxu0 0.0
      %3271 = vmatpush1.msra.mxu0 0.0
      %3272 = vmatprep.subr.mxu0 0.0
      %3273 = vmatpush1.msra.mxu0 0.0
      %3274 = vmatprep.subr.mxu0 0.0
      %3275 = vmatpush1.msra.mxu0 0.0
      %3276 = vmatprep.subr.mxu0 0.0
      %3277 = vmatpush1.msra.mxu0 0.0
      %3278 = vmatprep.subr.mxu0 0.0
      %3279 = vmatpush1.msra.mxu0 0.0
      %3280 = vmatprep.subr.mxu0 0.0
      %3281 = vmatpush1.msra.mxu0 0.0
      %3282 = vmatprep.subr.mxu0 0.0
      %3283 = vmatpush1.msra.mxu0 0.0
      %3284 = vmatprep.subr.mxu0 0.0
      %3285 = vmatpush1.msra.mxu0 0.0
      %3286 = vmatprep.subr.mxu0 0.0
      %3287 = vmatpush1.msra.mxu0 0.0
      %3288 = vmatprep.subr.mxu0 0.0
      %3289 = vmatpush1.msra.mxu0 0.0
      %3290 = vmatprep.subr.mxu0 0.0
      %3291 = vmatpush1.msra.mxu0 0.0
      %3292 = vmatprep.subr.mxu0 0.0
      %3293 = vmatpush1.msra.mxu0 0.0
      %3294 = vmatprep.subr.mxu0 0.0
      %3295 = vmatpush1.msra.mxu0 0.0
      %3296 = vmatprep.subr.mxu0 0.0
      %3297 = vmatpush1.msra.mxu0 0.0
      %3298 = vmatprep.subr.mxu0 0.0
      %3299 = vmatpush1.msra.mxu0 0.0
      %3300 = vmatprep.subr.mxu0 0.0
      %3301 = vmatpush1.msra.mxu0 0.0
      %3302 = vmatprep.subr.mxu0 0.0
      %3303 = vmatpush1.msra.mxu0 0.0
      %3304 = vmatprep.subr.mxu0 0.0
      %3305 = vmatpush1.msra.mxu0 0.0
      %3306 = vmatprep.subr.mxu0 0.0
      %3307 = vmatpush1.msra.mxu0 0.0
      %3308 = vmatprep.subr.mxu0 0.0
      %3309 = vmatpush1.msra.mxu0 0.0
      %3310 = vmatprep.mubr.f32.mxu0 0.0
      %3311 = vmatmul.mubr.f32.gmra.mrb[0].mxu0 %v415
      %v3312 = vpop.f32.mrb[0].mxu0
      %v3313 = vadd.f32 0.0, %v3312
      %v3314 = vpop.f32.mrb[0].mxu0
      %3315 = vmatprep.mubr.f32.mxu0 0.0
      %3316 = vmatmul.mubr.f32.gmra.mrb[0].mxu0 %v418
      %v3317 = vpop.f32.mrb[0].mxu0
      %v3318 = vadd.f32 0.0, %v3317
      %v3319 = vpop.f32.mrb[0].mxu0
      %3320 = vmatprep.mubr.f32.mxu0 0.0
      %3321 = vmatmul.mubr.f32.gmra.mrb[0].mxu0 %v421
      %v3322 = vpop.f32.mrb[0].mxu0
      %v3323 = vadd.f32 0.0, %v3322
      %v3324 = vpop.f32.mrb[0].mxu0
      %3325 = vdwg.mxu0
      %3326 = vmatprep.subr.mxu0 0.0
      %3327 = vmatpush1.msra.mxu0 %v1808
      %3328 = vmatprep.subr.mxu0 0.0
      %3329 = vmatpush1.msra.mxu0 %v1813
      %3330 = vmatprep.subr.mxu0 0.0
      %3331 = vmatpush1.msra.mxu0 %v1818
      %3332 = vmatprep.subr.mxu0 0.0
      %3333 = vmatpush1.msra.mxu0 0.0
      %3334 = vmatprep.subr.mxu0 0.0
      %3335 = vmatpush1.msra.mxu0 0.0
      %3336 = vmatprep.subr.mxu0 0.0
      %3337 = vmatpush1.msra.mxu0 0.0
      %3338 = vmatprep.subr.mxu0 0.0
      %3339 = vmatpush1.msra.mxu0 0.0
      %3340 = vmatprep.subr.mxu0 0.0
      %3341 = vmatpush1.msra.mxu0 0.0
      %3342 = vmatprep.subr.mxu0 0.0
      %3343 = vmatpush1.msra.mxu0 0.0
      %3344 = vmatprep.subr.mxu0 0.0
      %3345 = vmatpush1.msra.mxu0 0.0
      %3346 = vmatprep.subr.mxu0 0.0
      %3347 = vmatpush1.msra.mxu0 0.0
      %3348 = vmatprep.subr.mxu0 0.0
      %3349 = vmatpush1.msra.mxu0 0.0
      %3350 = vmatprep.subr.mxu0 0.0
      %3351 = vmatpush1.msra.mxu0 0.0
      %3352 = vmatprep.subr.mxu0 0.0
      %3353 = vmatpush1.msra.mxu0 0.0
      %3354 = vmatprep.subr.mxu0 0.0
      %3355 = vmatpush1.msra.mxu0 0.0
      %3356 = vmatprep.subr.mxu0 0.0
      %3357 = vmatpush1.msra.mxu0 0.0
      %3358 = vmatprep.subr.mxu0 0.0
      %3359 = vmatpush1.msra.mxu0 0.0
      %3360 = vmatprep.subr.mxu0 0.0
      %3361 = vmatpush1.msra.mxu0 0.0
      %3362 = vmatprep.subr.mxu0 0.0
      %3363 = vmatpush1.msra.mxu0 0.0
      %3364 = vmatprep.subr.mxu0 0.0
      %3365 = vmatpush1.msra.mxu0 0.0
      %3366 = vmatprep.subr.mxu0 0.0
      %3367 = vmatpush1.msra.mxu0 0.0
      %3368 = vmatprep.subr.mxu0 0.0
      %3369 = vmatpush1.msra.mxu0 0.0
      %3370 = vmatprep.subr.mxu0 0.0
      %3371 = vmatpush1.msra.mxu0 0.0
      %3372 = vmatprep.subr.mxu0 0.0
      %3373 = vmatpush1.msra.mxu0 0.0
      %3374 = vmatprep.subr.mxu0 0.0
      %3375 = vmatpush1.msra.mxu0 0.0
      %3376 = vmatprep.subr.mxu0 0.0
      %3377 = vmatpush1.msra.mxu0 0.0
      %3378 = vmatprep.subr.mxu0 0.0
      %3379 = vmatpush1.msra.mxu0 0.0
      %3380 = vmatprep.subr.mxu0 0.0
      %3381 = vmatpush1.msra.mxu0 0.0
      %3382 = vmatprep.subr.mxu0 0.0
      %3383 = vmatpush1.msra.mxu0 0.0
      %3384 = vmatprep.subr.mxu0 0.0
      %3385 = vmatpush1.msra.mxu0 0.0
      %3386 = vmatprep.subr.mxu0 0.0
      %3387 = vmatpush1.msra.mxu0 0.0
      %3388 = vmatprep.subr.mxu0 0.0
      %3389 = vmatpush1.msra.mxu0 0.0
      %3390 = vmatprep.mubr.f32.mxu0 0.0
      %3391 = vmatmul.mubr.f32.gmra.mrb[0].mxu0 %v424
      %v3392 = vpop.f32.mrb[0].mxu0
      %v3393 = vadd.f32 0.0, %v3392
      %v3394 = vpop.f32.mrb[0].mxu0
      %3395 = vmatprep.mubr.f32.mxu0 0.0
      %3396 = vmatmul.mubr.f32.gmra.mrb[0].mxu0 %v427
      %v3397 = vpop.f32.mrb[0].mxu0
      %v3398 = vadd.f32 0.0, %v3397
      %v3399 = vpop.f32.mrb[0].mxu0
      %3400 = vmatprep.mubr.f32.mxu0 0.0
      %3401 = vmatmul.mubr.f32.gmra.mrb[0].mxu0 %v430
      %v3402 = vpop.f32.mrb[0].mxu0
      %v3403 = vadd.f32 0.0, %v3402
      %v3404 = vpop.f32.mrb[0].mxu0
      %3405 = vdwg.mxu0
      %3406 = vmatprep.subr.mxu0 0.0
      %3407 = vmatpush1.msra.mxu0 %v1823
      %3408 = vmatprep.subr.mxu0 0.0
      %3409 = vmatpush1.msra.mxu0 %v1828
      %3410 = vmatprep.subr.mxu0 0.0
      %3411 = vmatpush1.msra.mxu0 %v1833
      %3412 = vmatprep.subr.mxu0 0.0
      %3413 = vmatpush1.msra.mxu0 0.0
      %3414 = vmatprep.subr.mxu0 0.0
      %3415 = vmatpush1.msra.mxu0 0.0
      %3416 = vmatprep.subr.mxu0 0.0
      %3417 = vmatpush1.msra.mxu0 0.0
      %3418 = vmatprep.subr.mxu0 0.0
      %3419 = vmatpush1.msra.mxu0 0.0
      %3420 = vmatprep.subr.mxu0 0.0
      %3421 = vmatpush1.msra.mxu0 0.0
      %3422 = vmatprep.subr.mxu0 0.0
      %3423 = vmatpush1.msra.mxu0 0.0
      %3424 = vmatprep.subr.mxu0 0.0
      %3425 = vmatpush1.msra.mxu0 0.0
      %3426 = vmatprep.subr.mxu0 0.0
      %3427 = vmatpush1.msra.mxu0 0.0
      %3428 = vmatprep.subr.mxu0 0.0
      %3429 = vmatpush1.msra.mxu0 0.0
      %3430 = vmatprep.subr.mxu0 0.0
      %3431 = vmatpush1.msra.mxu0 0.0
      %3432 = vmatprep.subr.mxu0 0.0
      %3433 = vmatpush1.msra.mxu0 0.0
      %3434 = vmatprep.subr.mxu0 0.0
      %3435 = vmatpush1.msra.mxu0 0.0
      %3436 = vmatprep.subr.mxu0 0.0
      %3437 = vmatpush1.msra.mxu0 0.0
      %3438 = vmatprep.subr.mxu0 0.0
      %3439 = vmatpush1.msra.mxu0 0.0
      %3440 = vmatprep.subr.mxu0 0.0
      %3441 = vmatpush1.msra.mxu0 0.0
      %3442 = vmatprep.subr.mxu0 0.0
      %3443 = vmatpush1.msra.mxu0 0.0
      %3444 = vmatprep.subr.mxu0 0.0
      %3445 = vmatpush1.msra.mxu0 0.0
      %3446 = vmatprep.subr.mxu0 0.0
      %3447 = vmatpush1.msra.mxu0 0.0
      %3448 = vmatprep.subr.mxu0 0.0
      %3449 = vmatpush1.msra.mxu0 0.0
      %3450 = vmatprep.subr.mxu0 0.0
      %3451 = vmatpush1.msra.mxu0 0.0
      %3452 = vmatprep.subr.mxu0 0.0
      %3453 = vmatpush1.msra.mxu0 0.0
      %3454 = vmatprep.subr.mxu0 0.0
      %3455 = vmatpush1.msra.mxu0 0.0
      %3456 = vmatprep.subr.mxu0 0.0
      %3457 = vmatpush1.msra.mxu0 0.0
      %3458 = vmatprep.subr.mxu0 0.0
      %3459 = vmatpush1.msra.mxu0 0.0
      %3460 = vmatprep.subr.mxu0 0.0
      %3461 = vmatpush1.msra.mxu0 0.0
      %3462 = vmatprep.subr.mxu0 0.0
      %3463 = vmatpush1.msra.mxu0 0.0
      %3464 = vmatprep.subr.mxu0 0.0
      %3465 = vmatpush1.msra.mxu0 0.0
      %3466 = vmatprep.subr.mxu0 0.0
      %3467 = vmatpush1.msra.mxu0 0.0
      %3468 = vmatprep.subr.mxu0 0.0
      %3469 = vmatpush1.msra.mxu0 0.0
      %3470 = vmatprep.mubr.f32.mxu0 0.0
      %3471 = vmatmul.mubr.f32.gmra.mrb[0].mxu0 %v433
      %v3472 = vpop.f32.mrb[0].mxu0
      %v3473 = vadd.f32 0.0, %v3472
      %v3474 = vpop.f32.mrb[0].mxu0
      %3475 = vmatprep.mubr.f32.mxu0 0.0
      %3476 = vmatmul.mubr.f32.gmra.mrb[0].mxu0 %v436
      %v3477 = vpop.f32.mrb[0].mxu0
      %v3478 = vadd.f32 0.0, %v3477
      %v3479 = vpop.f32.mrb[0].mxu0
      %3480 = vmatprep.mubr.f32.mxu0 0.0
      %3481 = vmatmul.mubr.f32.gmra.mrb[0].mxu0 %v439
      %v3482 = vpop.f32.mrb[0].mxu0
      %v3483 = vadd.f32 0.0, %v3482
      %v3484 = vpop.f32.mrb[0].mxu0
      %3485 = vdwg.mxu0
      %3486 = vmatprep.subr.mxu0 0.0
      %3487 = vmatpush1.msra.mxu0 %v1838
      %3488 = vmatprep.subr.mxu0 0.0
      %3489 = vmatpush1.msra.mxu0 %v1843
      %3490 = vmatprep.subr.mxu0 0.0
      %3491 = vmatpush1.msra.mxu0 %v1848
      %3492 = vmatprep.subr.mxu0 0.0
      %3493 = vmatpush1.msra.mxu0 0.0
      %3494 = vmatprep.subr.mxu0 0.0
      %3495 = vmatpush1.msra.mxu0 0.0
      %3496 = vmatprep.subr.mxu0 0.0
      %3497 = vmatpush1.msra.mxu0 0.0
      %3498 = vmatprep.subr.mxu0 0.0
      %3499 = vmatpush1.msra.mxu0 0.0
      %3500 = vmatprep.subr.mxu0 0.0
      %3501 = vmatpush1.msra.mxu0 0.0
      %3502 = vmatprep.subr.mxu0 0.0
      %3503 = vmatpush1.msra.mxu0 0.0
      %3504 = vmatprep.subr.mxu0 0.0
      %3505 = vmatpush1.msra.mxu0 0.0
      %3506 = vmatprep.subr.mxu0 0.0
      %3507 = vmatpush1.msra.mxu0 0.0
      %3508 = vmatprep.subr.mxu0 0.0
      %3509 = vmatpush1.msra.mxu0 0.0
      %3510 = vmatprep.subr.mxu0 0.0
      %3511 = vmatpush1.msra.mxu0 0.0
      %3512 = vmatprep.subr.mxu0 0.0
      %3513 = vmatpush1.msra.mxu0 0.0
      %3514 = vmatprep.subr.mxu0 0.0
      %3515 = vmatpush1.msra.mxu0 0.0
      %3516 = vmatprep.subr.mxu0 0.0
      %3517 = vmatpush1.msra.mxu0 0.0
      %3518 = vmatprep.subr.mxu0 0.0
      %3519 = vmatpush1.msra.mxu0 0.0
      %3520 = vmatprep.subr.mxu0 0.0
      %3521 = vmatpush1.msra.mxu0 0.0
      %3522 = vmatprep.subr.mxu0 0.0
      %3523 = vmatpush1.msra.mxu0 0.0
      %3524 = vmatprep.subr.mxu0 0.0
      %3525 = vmatpush1.msra.mxu0 0.0
      %3526 = vmatprep.subr.mxu0 0.0
      %3527 = vmatpush1.msra.mxu0 0.0
      %3528 = vmatprep.subr.mxu0 0.0
      %3529 = vmatpush1.msra.mxu0 0.0
      %3530 = vmatprep.subr.mxu0 0.0
      %3531 = vmatpush1.msra.mxu0 0.0
      %3532 = vmatprep.subr.mxu0 0.0
      %3533 = vmatpush1.msra.mxu0 0.0
      %3534 = vmatprep.subr.mxu0 0.0
      %3535 = vmatpush1.msra.mxu0 0.0
      %3536 = vmatprep.subr.mxu0 0.0
      %3537 = vmatpush1.msra.mxu0 0.0
      %3538 = vmatprep.subr.mxu0 0.0
      %3539 = vmatpush1.msra.mxu0 0.0
      %3540 = vmatprep.subr.mxu0 0.0
      %3541 = vmatpush1.msra.mxu0 0.0
      %3542 = vmatprep.subr.mxu0 0.0
      %3543 = vmatpush1.msra.mxu0 0.0
      %3544 = vmatprep.subr.mxu0 0.0
      %3545 = vmatpush1.msra.mxu0 0.0
      %3546 = vmatprep.subr.mxu0 0.0
      %3547 = vmatpush1.msra.mxu0 0.0
      %3548 = vmatprep.subr.mxu0 0.0
      %3549 = vmatpush1.msra.mxu0 0.0
      %3550 = vmatprep.mubr.f32.mxu0 0.0
      %3551 = vmatmul.mubr.f32.gmra.mrb[0].mxu0 %v442
      %v3552 = vpop.f32.mrb[0].mxu0
      %v3553 = vadd.f32 0.0, %v3552
      %v3554 = vpop.f32.mrb[0].mxu0
      %3555 = vmatprep.mubr.f32.mxu0 0.0
      %3556 = vmatmul.mubr.f32.gmra.mrb[0].mxu0 %v445
      %v3557 = vpop.f32.mrb[0].mxu0
      %v3558 = vadd.f32 0.0, %v3557
      %v3559 = vpop.f32.mrb[0].mxu0
      %3560 = vmatprep.mubr.f32.mxu0 0.0
      %3561 = vmatmul.mubr.f32.gmra.mrb[0].mxu0 %v448
      %v3562 = vpop.f32.mrb[0].mxu0
      %v3563 = vadd.f32 0.0, %v3562
      %v3564 = vpop.f32.mrb[0].mxu0
      %3565 = vdwg.mxu0
      %3566 = vmatprep.subr.mxu0 0.0
      %3567 = vmatpush1.msra.mxu0 %v1853
      %3568 = vmatprep.subr.mxu0 0.0
      %3569 = vmatpush1.msra.mxu0 %v1858
      %3570 = vmatprep.subr.mxu0 0.0
      %3571 = vmatpush1.msra.mxu0 %v1863
      %3572 = vmatprep.subr.mxu0 0.0
      %3573 = vmatpush1.msra.mxu0 0.0
      %3574 = vmatprep.subr.mxu0 0.0
      %3575 = vmatpush1.msra.mxu0 0.0
      %3576 = vmatprep.subr.mxu0 0.0
      %3577 = vmatpush1.msra.mxu0 0.0
      %3578 = vmatprep.subr.mxu0 0.0
      %3579 = vmatpush1.msra.mxu0 0.0
      %3580 = vmatprep.subr.mxu0 0.0
      %3581 = vmatpush1.msra.mxu0 0.0
      %3582 = vmatprep.subr.mxu0 0.0
      %3583 = vmatpush1.msra.mxu0 0.0
      %3584 = vmatprep.subr.mxu0 0.0
      %3585 = vmatpush1.msra.mxu0 0.0
      %3586 = vmatprep.subr.mxu0 0.0
      %3587 = vmatpush1.msra.mxu0 0.0
      %3588 = vmatprep.subr.mxu0 0.0
      %3589 = vmatpush1.msra.mxu0 0.0
      %3590 = vmatprep.subr.mxu0 0.0
      %3591 = vmatpush1.msra.mxu0 0.0
      %3592 = vmatprep.subr.mxu0 0.0
      %3593 = vmatpush1.msra.mxu0 0.0
      %3594 = vmatprep.subr.mxu0 0.0
      %3595 = vmatpush1.msra.mxu0 0.0
      %3596 = vmatprep.subr.mxu0 0.0
      %3597 = vmatpush1.msra.mxu0 0.0
      %3598 = vmatprep.subr.mxu0 0.0
      %3599 = vmatpush1.msra.mxu0 0.0
      %3600 = vmatprep.subr.mxu0 0.0
      %3601 = vmatpush1.msra.mxu0 0.0
      %3602 = vmatprep.subr.mxu0 0.0
      %3603 = vmatpush1.msra.mxu0 0.0
      %3604 = vmatprep.subr.mxu0 0.0
      %3605 = vmatpush1.msra.mxu0 0.0
      %3606 = vmatprep.subr.mxu0 0.0
      %3607 = vmatpush1.msra.mxu0 0.0
      %3608 = vmatprep.subr.mxu0 0.0
      %3609 = vmatpush1.msra.mxu0 0.0
      %3610 = vmatprep.subr.mxu0 0.0
      %3611 = vmatpush1.msra.mxu0 0.0
      %3612 = vmatprep.subr.mxu0 0.0
      %3613 = vmatpush1.msra.mxu0 0.0
      %3614 = vmatprep.subr.mxu0 0.0
      %3615 = vmatpush1.msra.mxu0 0.0
      %3616 = vmatprep.subr.mxu0 0.0
      %3617 = vmatpush1.msra.mxu0 0.0
      %3618 = vmatprep.subr.mxu0 0.0
      %3619 = vmatpush1.msra.mxu0 0.0
      %3620 = vmatprep.subr.mxu0 0.0
      %3621 = vmatpush1.msra.mxu0 0.0
      %3622 = vmatprep.subr.mxu0 0.0
      %3623 = vmatpush1.msra.mxu0 0.0
      %3624 = vmatprep.subr.mxu0 0.0
      %3625 = vmatpush1.msra.mxu0 0.0
      %3626 = vmatprep.subr.mxu0 0.0
      %3627 = vmatpush1.msra.mxu0 0.0
      %3628 = vmatprep.subr.mxu0 0.0
      %3629 = vmatpush1.msra.mxu0 0.0
      %3630 = vmatprep.mubr.f32.mxu0 0.0
      %3631 = vmatmul.mubr.f32.gmra.mrb[0].mxu0 %v451
      %v3632 = vpop.f32.mrb[0].mxu0
      %v3633 = vadd.f32 0.0, %v3632
      %v3634 = vpop.f32.mrb[0].mxu0
      %3635 = vmatprep.mubr.f32.mxu0 0.0
      %3636 = vmatmul.mubr.f32.gmra.mrb[0].mxu0 %v454
      %v3637 = vpop.f32.mrb[0].mxu0
      %v3638 = vadd.f32 0.0, %v3637
      %v3639 = vpop.f32.mrb[0].mxu0
      %3640 = vmatprep.mubr.f32.mxu0 0.0
      %3641 = vmatmul.mubr.f32.gmra.mrb[0].mxu0 %v457
      %v3642 = vpop.f32.mrb[0].mxu0
      %v3643 = vadd.f32 0.0, %v3642
      %v3644 = vpop.f32.mrb[0].mxu0
      %3645 = vdwg.mxu0
      %3646 = vmatprep.subr.mxu0 0.0
      %3647 = vmatpush1.msra.mxu0 %v1868
      %3648 = vmatprep.subr.mxu0 0.0
      %3649 = vmatpush1.msra.mxu0 %v1873
      %3650 = vmatprep.subr.mxu0 0.0
      %3651 = vmatpush1.msra.mxu0 %v1878
      %3652 = vmatprep.subr.mxu0 0.0
      %3653 = vmatpush1.msra.mxu0 0.0
      %3654 = vmatprep.subr.mxu0 0.0
      %3655 = vmatpush1.msra.mxu0 0.0
      %3656 = vmatprep.subr.mxu0 0.0
      %3657 = vmatpush1.msra.mxu0 0.0
      %3658 = vmatprep.subr.mxu0 0.0
      %3659 = vmatpush1.msra.mxu0 0.0
      %3660 = vmatprep.subr.mxu0 0.0
      %3661 = vmatpush1.msra.mxu0 0.0
      %3662 = vmatprep.subr.mxu0 0.0
      %3663 = vmatpush1.msra.mxu0 0.0
      %3664 = vmatprep.subr.mxu0 0.0
      %3665 = vmatpush1.msra.mxu0 0.0
      %3666 = vmatprep.subr.mxu0 0.0
      %3667 = vmatpush1.msra.mxu0 0.0
      %3668 = vmatprep.subr.mxu0 0.0
      %3669 = vmatpush1.msra.mxu0 0.0
      %3670 = vmatprep.subr.mxu0 0.0
      %3671 = vmatpush1.msra.mxu0 0.0
      %3672 = vmatprep.subr.mxu0 0.0
      %3673 = vmatpush1.msra.mxu0 0.0
      %3674 = vmatprep.subr.mxu0 0.0
      %3675 = vmatpush1.msra.mxu0 0.0
      %3676 = vmatprep.subr.mxu0 0.0
      %3677 = vmatpush1.msra.mxu0 0.0
      %3678 = vmatprep.subr.mxu0 0.0
      %3679 = vmatpush1.msra.mxu0 0.0
      %3680 = vmatprep.subr.mxu0 0.0
      %3681 = vmatpush1.msra.mxu0 0.0
      %3682 = vmatprep.subr.mxu0 0.0
      %3683 = vmatpush1.msra.mxu0 0.0
      %3684 = vmatprep.subr.mxu0 0.0
      %3685 = vmatpush1.msra.mxu0 0.0
      %3686 = vmatprep.subr.mxu0 0.0
      %3687 = vmatpush1.msra.mxu0 0.0
      %3688 = vmatprep.subr.mxu0 0.0
      %3689 = vmatpush1.msra.mxu0 0.0
      %3690 = vmatprep.subr.mxu0 0.0
      %3691 = vmatpush1.msra.mxu0 0.0
      %3692 = vmatprep.subr.mxu0 0.0
      %3693 = vmatpush1.msra.mxu0 0.0
      %3694 = vmatprep.subr.mxu0 0.0
      %3695 = vmatpush1.msra.mxu0 0.0
      %3696 = vmatprep.subr.mxu0 0.0
      %3697 = vmatpush1.msra.mxu0 0.0
      %3698 = vmatprep.subr.mxu0 0.0
      %3699 = vmatpush1.msra.mxu0 0.0
      %3700 = vmatprep.subr.mxu0 0.0
      %3701 = vmatpush1.msra.mxu0 0.0
      %3702 = vmatprep.subr.mxu0 0.0
      %3703 = vmatpush1.msra.mxu0 0.0
      %3704 = vmatprep.subr.mxu0 0.0
      %3705 = vmatpush1.msra.mxu0 0.0
      %3706 = vmatprep.subr.mxu0 0.0
      %3707 = vmatpush1.msra.mxu0 0.0
      %3708 = vmatprep.subr.mxu0 0.0
      %3709 = vmatpush1.msra.mxu0 0.0
      %3710 = vmatprep.mubr.f32.mxu0 0.0
      %3711 = vmatmul.mubr.f32.gmra.mrb[0].mxu0 %v460
      %v3712 = vpop.f32.mrb[0].mxu0
      %v3713 = vadd.f32 0.0, %v3712
      %v3714 = vpop.f32.mrb[0].mxu0
      %3715 = vmatprep.mubr.f32.mxu0 0.0
      %3716 = vmatmul.mubr.f32.gmra.mrb[0].mxu0 %v463
      %v3717 = vpop.f32.mrb[0].mxu0
      %v3718 = vadd.f32 0.0, %v3717
      %v3719 = vpop.f32.mrb[0].mxu0
      %3720 = vmatprep.mubr.f32.mxu0 0.0
      %3721 = vmatmul.mubr.f32.gmra.mrb[0].mxu0 %v466
      %v3722 = vpop.f32.mrb[0].mxu0
      %v3723 = vadd.f32 0.0, %v3722
      %v3724 = vpop.f32.mrb[0].mxu0
      %3725 = vdwg.mxu0
      %3726 = vmatprep.subr.mxu0 0.0
      %3727 = vmatpush1.msra.mxu0 %v1883
      %3728 = vmatprep.subr.mxu0 0.0
      %3729 = vmatpush1.msra.mxu0 %v1888
      %3730 = vmatprep.subr.mxu0 0.0
      %3731 = vmatpush1.msra.mxu0 %v1893
      %3732 = vmatprep.subr.mxu0 0.0
      %3733 = vmatpush1.msra.mxu0 0.0
      %3734 = vmatprep.subr.mxu0 0.0
      %3735 = vmatpush1.msra.mxu0 0.0
      %3736 = vmatprep.subr.mxu0 0.0
      %3737 = vmatpush1.msra.mxu0 0.0
      %3738 = vmatprep.subr.mxu0 0.0
      %3739 = vmatpush1.msra.mxu0 0.0
      %3740 = vmatprep.subr.mxu0 0.0
      %3741 = vmatpush1.msra.mxu0 0.0
      %3742 = vmatprep.subr.mxu0 0.0
      %3743 = vmatpush1.msra.mxu0 0.0
      %3744 = vmatprep.subr.mxu0 0.0
      %3745 = vmatpush1.msra.mxu0 0.0
      %3746 = vmatprep.subr.mxu0 0.0
      %3747 = vmatpush1.msra.mxu0 0.0
      %3748 = vmatprep.subr.mxu0 0.0
      %3749 = vmatpush1.msra.mxu0 0.0
      %3750 = vmatprep.subr.mxu0 0.0
      %3751 = vmatpush1.msra.mxu0 0.0
      %3752 = vmatprep.subr.mxu0 0.0
      %3753 = vmatpush1.msra.mxu0 0.0
      %3754 = vmatprep.subr.mxu0 0.0
      %3755 = vmatpush1.msra.mxu0 0.0
      %3756 = vmatprep.subr.mxu0 0.0
      %3757 = vmatpush1.msra.mxu0 0.0
      %3758 = vmatprep.subr.mxu0 0.0
      %3759 = vmatpush1.msra.mxu0 0.0
      %3760 = vmatprep.subr.mxu0 0.0
      %3761 = vmatpush1.msra.mxu0 0.0
      %3762 = vmatprep.subr.mxu0 0.0
      %3763 = vmatpush1.msra.mxu0 0.0
      %3764 = vmatprep.subr.mxu0 0.0
      %3765 = vmatpush1.msra.mxu0 0.0
      %3766 = vmatprep.subr.mxu0 0.0
      %3767 = vmatpush1.msra.mxu0 0.0
      %3768 = vmatprep.subr.mxu0 0.0
      %3769 = vmatpush1.msra.mxu0 0.0
      %3770 = vmatprep.subr.mxu0 0.0
      %3771 = vmatpush1.msra.mxu0 0.0
      %3772 = vmatprep.subr.mxu0 0.0
      %3773 = vmatpush1.msra.mxu0 0.0
      %3774 = vmatprep.subr.mxu0 0.0
      %3775 = vmatpush1.msra.mxu0 0.0
      %3776 = vmatprep.subr.mxu0 0.0
      %3777 = vmatpush1.msra.mxu0 0.0
      %3778 = vmatprep.subr.mxu0 0.0
      %3779 = vmatpush1.msra.mxu0 0.0
      %3780 = vmatprep.subr.mxu0 0.0
      %3781 = vmatpush1.msra.mxu0 0.0
      %3782 = vmatprep.subr.mxu0 0.0
      %3783 = vmatpush1.msra.mxu0 0.0
      %3784 = vmatprep.subr.mxu0 0.0
      %3785 = vmatpush1.msra.mxu0 0.0
      %3786 = vmatprep.subr.mxu0 0.0
      %3787 = vmatpush1.msra.mxu0 0.0
      %3788 = vmatprep.subr.mxu0 0.0
      %3789 = vmatpush1.msra.mxu0 0.0
      %3790 = vmatprep.mubr.f32.mxu0 0.0
      %3791 = vmatmul.mubr.f32.gmra.mrb[0].mxu0 %v469
      %v3792 = vpop.f32.mrb[0].mxu0
      %v3793 = vadd.f32 0.0, %v3792
      %v3794 = vpop.f32.mrb[0].mxu0
      %3795 = vmatprep.mubr.f32.mxu0 0.0
      %3796 = vmatmul.mubr.f32.gmra.mrb[0].mxu0 %v472
      %v3797 = vpop.f32.mrb[0].mxu0
      %v3798 = vadd.f32 0.0, %v3797
      %v3799 = vpop.f32.mrb[0].mxu0
      %3800 = vmatprep.mubr.f32.mxu0 0.0
      %3801 = vmatmul.mubr.f32.gmra.mrb[0].mxu0 %v475
      %v3802 = vpop.f32.mrb[0].mxu0
      %v3803 = vadd.f32 0.0, %v3802
      %v3804 = vpop.f32.mrb[0].mxu0
      %3805 = vdwg.mxu0
      %3806 = vmatprep.subr.mxu0 0.0
      %3807 = vmatpush1.msra.mxu0 %v1898
      %3808 = vmatprep.subr.mxu0 0.0
      %3809 = vmatpush1.msra.mxu0 %v1903
      %3810 = vmatprep.subr.mxu0 0.0
      %3811 = vmatpush1.msra.mxu0 %v1908
      %3812 = vmatprep.subr.mxu0 0.0
      %3813 = vmatpush1.msra.mxu0 0.0
      %3814 = vmatprep.subr.mxu0 0.0
      %3815 = vmatpush1.msra.mxu0 0.0
      %3816 = vmatprep.subr.mxu0 0.0
      %3817 = vmatpush1.msra.mxu0 0.0
      %3818 = vmatprep.subr.mxu0 0.0
      %3819 = vmatpush1.msra.mxu0 0.0
      %3820 = vmatprep.subr.mxu0 0.0
      %3821 = vmatpush1.msra.mxu0 0.0
      %3822 = vmatprep.subr.mxu0 0.0
      %3823 = vmatpush1.msra.mxu0 0.0
      %3824 = vmatprep.subr.mxu0 0.0
      %3825 = vmatpush1.msra.mxu0 0.0
      %3826 = vmatprep.subr.mxu0 0.0
      %3827 = vmatpush1.msra.mxu0 0.0
      %3828 = vmatprep.subr.mxu0 0.0
      %3829 = vmatpush1.msra.mxu0 0.0
      %3830 = vmatprep.subr.mxu0 0.0
      %3831 = vmatpush1.msra.mxu0 0.0
      %3832 = vmatprep.subr.mxu0 0.0
      %3833 = vmatpush1.msra.mxu0 0.0
      %3834 = vmatprep.subr.mxu0 0.0
      %3835 = vmatpush1.msra.mxu0 0.0
      %3836 = vmatprep.subr.mxu0 0.0
      %3837 = vmatpush1.msra.mxu0 0.0
      %3838 = vmatprep.subr.mxu0 0.0
      %3839 = vmatpush1.msra.mxu0 0.0
      %3840 = vmatprep.subr.mxu0 0.0
      %3841 = vmatpush1.msra.mxu0 0.0
      %3842 = vmatprep.subr.mxu0 0.0
      %3843 = vmatpush1.msra.mxu0 0.0
      %3844 = vmatprep.subr.mxu0 0.0
      %3845 = vmatpush1.msra.mxu0 0.0
      %3846 = vmatprep.subr.mxu0 0.0
      %3847 = vmatpush1.msra.mxu0 0.0
      %3848 = vmatprep.subr.mxu0 0.0
      %3849 = vmatpush1.msra.mxu0 0.0
      %3850 = vmatprep.subr.mxu0 0.0
      %3851 = vmatpush1.msra.mxu0 0.0
      %3852 = vmatprep.subr.mxu0 0.0
      %3853 = vmatpush1.msra.mxu0 0.0
      %3854 = vmatprep.subr.mxu0 0.0
      %3855 = vmatpush1.msra.mxu0 0.0
      %3856 = vmatprep.subr.mxu0 0.0
      %3857 = vmatpush1.msra.mxu0 0.0
      %3858 = vmatprep.subr.mxu0 0.0
      %3859 = vmatpush1.msra.mxu0 0.0
      %3860 = vmatprep.subr.mxu0 0.0
      %3861 = vmatpush1.msra.mxu0 0.0
      %3862 = vmatprep.subr.mxu0 0.0
      %3863 = vmatpush1.msra.mxu0 0.0
      %3864 = vmatprep.subr.mxu0 0.0
      %3865 = vmatpush1.msra.mxu0 0.0
      %3866 = vmatprep.subr.mxu0 0.0
      %3867 = vmatpush1.msra.mxu0 0.0
      %3868 = vmatprep.subr.mxu0 0.0
      %3869 = vmatpush1.msra.mxu0 0.0
      %3870 = vmatprep.mubr.f32.mxu0 0.0
      %3871 = vmatmul.mubr.f32.gmra.mrb[0].mxu0 %v478
      %v3872 = vpop.f32.mrb[0].mxu0
      %v3873 = vadd.f32 0.0, %v3872
      %v3874 = vpop.f32.mrb[0].mxu0
      %3875 = vmatprep.mubr.f32.mxu0 0.0
      %3876 = vmatmul.mubr.f32.gmra.mrb[0].mxu0 %v481
      %v3877 = vpop.f32.mrb[0].mxu0
      %v3878 = vadd.f32 0.0, %v3877
      %v3879 = vpop.f32.mrb[0].mxu0
      %3880 = vmatprep.mubr.f32.mxu0 0.0
      %3881 = vmatmul.mubr.f32.gmra.mrb[0].mxu0 %v484
      %v3882 = vpop.f32.mrb[0].mxu0
      %v3883 = vadd.f32 0.0, %v3882
      %v3884 = vpop.f32.mrb[0].mxu0
      %3885 = vdwg.mxu0
      %3886 = vmatprep.subr.mxu0 0.0
      %3887 = vmatpush1.msra.mxu0 %v1913
      %3888 = vmatprep.subr.mxu0 0.0
      %3889 = vmatpush1.msra.mxu0 %v1918
      %3890 = vmatprep.subr.mxu0 0.0
      %3891 = vmatpush1.msra.mxu0 %v1923
      %3892 = vmatprep.subr.mxu0 0.0
      %3893 = vmatpush1.msra.mxu0 0.0
      %3894 = vmatprep.subr.mxu0 0.0
      %3895 = vmatpush1.msra.mxu0 0.0
      %3896 = vmatprep.subr.mxu0 0.0
      %3897 = vmatpush1.msra.mxu0 0.0
      %3898 = vmatprep.subr.mxu0 0.0
      %3899 = vmatpush1.msra.mxu0 0.0
      %3900 = vmatprep.subr.mxu0 0.0
      %3901 = vmatpush1.msra.mxu0 0.0
      %3902 = vmatprep.subr.mxu0 0.0
      %3903 = vmatpush1.msra.mxu0 0.0
      %3904 = vmatprep.subr.mxu0 0.0
      %3905 = vmatpush1.msra.mxu0 0.0
      %3906 = vmatprep.subr.mxu0 0.0
      %3907 = vmatpush1.msra.mxu0 0.0
      %3908 = vmatprep.subr.mxu0 0.0
      %3909 = vmatpush1.msra.mxu0 0.0
      %3910 = vmatprep.subr.mxu0 0.0
      %3911 = vmatpush1.msra.mxu0 0.0
      %3912 = vmatprep.subr.mxu0 0.0
      %3913 = vmatpush1.msra.mxu0 0.0
      %3914 = vmatprep.subr.mxu0 0.0
      %3915 = vmatpush1.msra.mxu0 0.0
      %3916 = vmatprep.subr.mxu0 0.0
      %3917 = vmatpush1.msra.mxu0 0.0
      %3918 = vmatprep.subr.mxu0 0.0
      %3919 = vmatpush1.msra.mxu0 0.0
      %3920 = vmatprep.subr.mxu0 0.0
      %3921 = vmatpush1.msra.mxu0 0.0
      %3922 = vmatprep.subr.mxu0 0.0
      %3923 = vmatpush1.msra.mxu0 0.0
      %3924 = vmatprep.subr.mxu0 0.0
      %3925 = vmatpush1.msra.mxu0 0.0
      %3926 = vmatprep.subr.mxu0 0.0
      %3927 = vmatpush1.msra.mxu0 0.0
      %3928 = vmatprep.subr.mxu0 0.0
      %3929 = vmatpush1.msra.mxu0 0.0
      %3930 = vmatprep.subr.mxu0 0.0
      %3931 = vmatpush1.msra.mxu0 0.0
      %3932 = vmatprep.subr.mxu0 0.0
      %3933 = vmatpush1.msra.mxu0 0.0
      %3934 = vmatprep.subr.mxu0 0.0
      %3935 = vmatpush1.msra.mxu0 0.0
      %3936 = vmatprep.subr.mxu0 0.0
      %3937 = vmatpush1.msra.mxu0 0.0
      %3938 = vmatprep.subr.mxu0 0.0
      %3939 = vmatpush1.msra.mxu0 0.0
      %3940 = vmatprep.subr.mxu0 0.0
      %3941 = vmatpush1.msra.mxu0 0.0
      %3942 = vmatprep.subr.mxu0 0.0
      %3943 = vmatpush1.msra.mxu0 0.0
      %3944 = vmatprep.subr.mxu0 0.0
      %3945 = vmatpush1.msra.mxu0 0.0
      %3946 = vmatprep.subr.mxu0 0.0
      %3947 = vmatpush1.msra.mxu0 0.0
      %3948 = vmatprep.subr.mxu0 0.0
      %3949 = vmatpush1.msra.mxu0 0.0
      %3950 = vmatprep.mubr.f32.mxu0 0.0
      %3951 = vmatmul.mubr.f32.gmra.mrb[0].mxu0 %v487
      %v3952 = vpop.f32.mrb[0].mxu0
      %v3953 = vadd.f32 0.0, %v3952
      %v3954 = vpop.f32.mrb[0].mxu0
      %3955 = vmatprep.mubr.f32.mxu0 0.0
      %3956 = vmatmul.mubr.f32.gmra.mrb[0].mxu0 %v490
      %v3957 = vpop.f32.mrb[0].mxu0
      %v3958 = vadd.f32 0.0, %v3957
      %v3959 = vpop.f32.mrb[0].mxu0
      %3960 = vmatprep.mubr.f32.mxu0 0.0
      %3961 = vmatmul.mubr.f32.gmra.mrb[0].mxu0 %v493
      %v3962 = vpop.f32.mrb[0].mxu0
      %v3963 = vadd.f32 0.0, %v3962
      %v3964 = vpop.f32.mrb[0].mxu0
      %3965 = vdwg.mxu0
      %3966 = vmatprep.subr.mxu0 0.0
      %3967 = vmatpush1.msra.mxu0 %v1928
      %3968 = vmatprep.subr.mxu0 0.0
      %3969 = vmatpush1.msra.mxu0 %v1933
      %3970 = vmatprep.subr.mxu0 0.0
      %3971 = vmatpush1.msra.mxu0 %v1938
      %3972 = vmatprep.subr.mxu0 0.0
      %3973 = vmatpush1.msra.mxu0 0.0
      %3974 = vmatprep.subr.mxu0 0.0
      %3975 = vmatpush1.msra.mxu0 0.0
      %3976 = vmatprep.subr.mxu0 0.0
      %3977 = vmatpush1.msra.mxu0 0.0
      %3978 = vmatprep.subr.mxu0 0.0
      %3979 = vmatpush1.msra.mxu0 0.0
      %3980 = vmatprep.subr.mxu0 0.0
      %3981 = vmatpush1.msra.mxu0 0.0
      %3982 = vmatprep.subr.mxu0 0.0
      %3983 = vmatpush1.msra.mxu0 0.0
      %3984 = vmatprep.subr.mxu0 0.0
      %3985 = vmatpush1.msra.mxu0 0.0
      %3986 = vmatprep.subr.mxu0 0.0
      %3987 = vmatpush1.msra.mxu0 0.0
      %3988 = vmatprep.subr.mxu0 0.0
      %3989 = vmatpush1.msra.mxu0 0.0
      %3990 = vmatprep.subr.mxu0 0.0
      %3991 = vmatpush1.msra.mxu0 0.0
      %3992 = vmatprep.subr.mxu0 0.0
      %3993 = vmatpush1.msra.mxu0 0.0
      %3994 = vmatprep.subr.mxu0 0.0
      %3995 = vmatpush1.msra.mxu0 0.0
      %3996 = vmatprep.subr.mxu0 0.0
      %3997 = vmatpush1.msra.mxu0 0.0
      %3998 = vmatprep.subr.mxu0 0.0
      %3999 = vmatpush1.msra.mxu0 0.0
      %4000 = vmatprep.subr.mxu0 0.0
      %4001 = vmatpush1.msra.mxu0 0.0
      %4002 = vmatprep.subr.mxu0 0.0
      %4003 = vmatpush1.msra.mxu0 0.0
      %4004 = vmatprep.subr.mxu0 0.0
      %4005 = vmatpush1.msra.mxu0 0.0
      %4006 = vmatprep.subr.mxu0 0.0
      %4007 = vmatpush1.msra.mxu0 0.0
      %4008 = vmatprep.subr.mxu0 0.0
      %4009 = vmatpush1.msra.mxu0 0.0
      %4010 = vmatprep.subr.mxu0 0.0
      %4011 = vmatpush1.msra.mxu0 0.0
      %4012 = vmatprep.subr.mxu0 0.0
      %4013 = vmatpush1.msra.mxu0 0.0
      %4014 = vmatprep.subr.mxu0 0.0
      %4015 = vmatpush1.msra.mxu0 0.0
      %4016 = vmatprep.subr.mxu0 0.0
      %4017 = vmatpush1.msra.mxu0 0.0
      %4018 = vmatprep.subr.mxu0 0.0
      %4019 = vmatpush1.msra.mxu0 0.0
      %4020 = vmatprep.subr.mxu0 0.0
      %4021 = vmatpush1.msra.mxu0 0.0
      %4022 = vmatprep.subr.mxu0 0.0
      %4023 = vmatpush1.msra.mxu0 0.0
      %4024 = vmatprep.subr.mxu0 0.0
      %4025 = vmatpush1.msra.mxu0 0.0
      %4026 = vmatprep.subr.mxu0 0.0
      %4027 = vmatpush1.msra.mxu0 0.0
      %4028 = vmatprep.subr.mxu0 0.0
      %4029 = vmatpush1.msra.mxu0 0.0
      %4030 = vmatprep.mubr.f32.mxu0 0.0
      %4031 = vmatmul.mubr.f32.gmra.mrb[0].mxu0 %v496
      %v4032 = vpop.f32.mrb[0].mxu0
      %v4033 = vadd.f32 0.0, %v4032
      %v4034 = vpop.f32.mrb[0].mxu0
      %4035 = vmatprep.mubr.f32.mxu0 0.0
      %4036 = vmatmul.mubr.f32.gmra.mrb[0].mxu0 %v499
      %v4037 = vpop.f32.mrb[0].mxu0
      %v4038 = vadd.f32 0.0, %v4037
      %v4039 = vpop.f32.mrb[0].mxu0
      %4040 = vmatprep.mubr.f32.mxu0 0.0
      %4041 = vmatmul.mubr.f32.gmra.mrb[0].mxu0 %v502
      %v4042 = vpop.f32.mrb[0].mxu0
      %v4043 = vadd.f32 0.0, %v4042
      %v4044 = vpop.f32.mrb[0].mxu0
      %4045 = vdwg.mxu0
      %4046 = vmatprep.subr.mxu0 0.0
      %4047 = vmatpush1.msra.mxu0 %v1943
      %4048 = vmatprep.subr.mxu0 0.0
      %4049 = vmatpush1.msra.mxu0 %v1948
      %4050 = vmatprep.subr.mxu0 0.0
      %4051 = vmatpush1.msra.mxu0 %v1953
      %4052 = vmatprep.subr.mxu0 0.0
      %4053 = vmatpush1.msra.mxu0 0.0
      %4054 = vmatprep.subr.mxu0 0.0
      %4055 = vmatpush1.msra.mxu0 0.0
      %4056 = vmatprep.subr.mxu0 0.0
      %4057 = vmatpush1.msra.mxu0 0.0
      %4058 = vmatprep.subr.mxu0 0.0
      %4059 = vmatpush1.msra.mxu0 0.0
      %4060 = vmatprep.subr.mxu0 0.0
      %4061 = vmatpush1.msra.mxu0 0.0
      %4062 = vmatprep.subr.mxu0 0.0
      %4063 = vmatpush1.msra.mxu0 0.0
      %4064 = vmatprep.subr.mxu0 0.0
      %4065 = vmatpush1.msra.mxu0 0.0
      %4066 = vmatprep.subr.mxu0 0.0
      %4067 = vmatpush1.msra.mxu0 0.0
      %4068 = vmatprep.subr.mxu0 0.0
      %4069 = vmatpush1.msra.mxu0 0.0
      %4070 = vmatprep.subr.mxu0 0.0
      %4071 = vmatpush1.msra.mxu0 0.0
      %4072 = vmatprep.subr.mxu0 0.0
      %4073 = vmatpush1.msra.mxu0 0.0
      %4074 = vmatprep.subr.mxu0 0.0
      %4075 = vmatpush1.msra.mxu0 0.0
      %4076 = vmatprep.subr.mxu0 0.0
      %4077 = vmatpush1.msra.mxu0 0.0
      %4078 = vmatprep.subr.mxu0 0.0
      %4079 = vmatpush1.msra.mxu0 0.0
      %4080 = vmatprep.subr.mxu0 0.0
      %4081 = vmatpush1.msra.mxu0 0.0
      %4082 = vmatprep.subr.mxu0 0.0
      %4083 = vmatpush1.msra.mxu0 0.0
      %4084 = vmatprep.subr.mxu0 0.0
      %4085 = vmatpush1.msra.mxu0 0.0
      %4086 = vmatprep.subr.mxu0 0.0
      %4087 = vmatpush1.msra.mxu0 0.0
      %4088 = vmatprep.subr.mxu0 0.0
      %4089 = vmatpush1.msra.mxu0 0.0
      %4090 = vmatprep.subr.mxu0 0.0
      %4091 = vmatpush1.msra.mxu0 0.0
      %4092 = vmatprep.subr.mxu0 0.0
      %4093 = vmatpush1.msra.mxu0 0.0
      %4094 = vmatprep.subr.mxu0 0.0
      %4095 = vmatpush1.msra.mxu0 0.0
      %4096 = vmatprep.subr.mxu0 0.0
      %4097 = vmatpush1.msra.mxu0 0.0
      %4098 = vmatprep.subr.mxu0 0.0
      %4099 = vmatpush1.msra.mxu0 0.0
      %4100 = vmatprep.subr.mxu0 0.0
      %4101 = vmatpush1.msra.mxu0 0.0
      %4102 = vmatprep.subr.mxu0 0.0
      %4103 = vmatpush1.msra.mxu0 0.0
      %4104 = vmatprep.subr.mxu0 0.0
      %4105 = vmatpush1.msra.mxu0 0.0
      %4106 = vmatprep.subr.mxu0 0.0
      %4107 = vmatpush1.msra.mxu0 0.0
      %4108 = vmatprep.subr.mxu0 0.0
      %4109 = vmatpush1.msra.mxu0 0.0
      %4110 = vmatprep.mubr.f32.mxu0 0.0
      %4111 = vmatmul.mubr.f32.gmra.mrb[0].mxu0 %v505
      %v4112 = vpop.f32.mrb[0].mxu0
      %v4113 = vadd.f32 0.0, %v4112
      %v4114 = vpop.f32.mrb[0].mxu0
      %4115 = vmatprep.mubr.f32.mxu0 0.0
      %4116 = vmatmul.mubr.f32.gmra.mrb[0].mxu0 %v508
      %v4117 = vpop.f32.mrb[0].mxu0
      %v4118 = vadd.f32 0.0, %v4117
      %v4119 = vpop.f32.mrb[0].mxu0
      %4120 = vmatprep.mubr.f32.mxu0 0.0
      %4121 = vmatmul.mubr.f32.gmra.mrb[0].mxu0 %v511
      %v4122 = vpop.f32.mrb[0].mxu0
      %v4123 = vadd.f32 0.0, %v4122
      %v4124 = vpop.f32.mrb[0].mxu0
      %4125 = vdwg.mxu0
      %4126 = vmatprep.subr.mxu0 0.0
      %4127 = vmatpush1.msra.mxu0 %v1958
      %4128 = vmatprep.subr.mxu0 0.0
      %4129 = vmatpush1.msra.mxu0 %v1963
      %4130 = vmatprep.subr.mxu0 0.0
      %4131 = vmatpush1.msra.mxu0 %v1968
      %4132 = vmatprep.subr.mxu0 0.0
      %4133 = vmatpush1.msra.mxu0 0.0
      %4134 = vmatprep.subr.mxu0 0.0
      %4135 = vmatpush1.msra.mxu0 0.0
      %4136 = vmatprep.subr.mxu0 0.0
      %4137 = vmatpush1.msra.mxu0 0.0
      %4138 = vmatprep.subr.mxu0 0.0
      %4139 = vmatpush1.msra.mxu0 0.0
      %4140 = vmatprep.subr.mxu0 0.0
      %4141 = vmatpush1.msra.mxu0 0.0
      %4142 = vmatprep.subr.mxu0 0.0
      %4143 = vmatpush1.msra.mxu0 0.0
      %4144 = vmatprep.subr.mxu0 0.0
      %4145 = vmatpush1.msra.mxu0 0.0
      %4146 = vmatprep.subr.mxu0 0.0
      %4147 = vmatpush1.msra.mxu0 0.0
      %4148 = vmatprep.subr.mxu0 0.0
      %4149 = vmatpush1.msra.mxu0 0.0
      %4150 = vmatprep.subr.mxu0 0.0
      %4151 = vmatpush1.msra.mxu0 0.0
      %4152 = vmatprep.subr.mxu0 0.0
      %4153 = vmatpush1.msra.mxu0 0.0
      %4154 = vmatprep.subr.mxu0 0.0
      %4155 = vmatpush1.msra.mxu0 0.0
      %4156 = vmatprep.subr.mxu0 0.0
      %4157 = vmatpush1.msra.mxu0 0.0
      %4158 = vmatprep.subr.mxu0 0.0
      %4159 = vmatpush1.msra.mxu0 0.0
      %4160 = vmatprep.subr.mxu0 0.0
      %4161 = vmatpush1.msra.mxu0 0.0
      %4162 = vmatprep.subr.mxu0 0.0
      %4163 = vmatpush1.msra.mxu0 0.0
      %4164 = vmatprep.subr.mxu0 0.0
      %4165 = vmatpush1.msra.mxu0 0.0
      %4166 = vmatprep.subr.mxu0 0.0
      %4167 = vmatpush1.msra.mxu0 0.0
      %4168 = vmatprep.subr.mxu0 0.0
      %4169 = vmatpush1.msra.mxu0 0.0
      %4170 = vmatprep.subr.mxu0 0.0
      %4171 = vmatpush1.msra.mxu0 0.0
      %4172 = vmatprep.subr.mxu0 0.0
      %4173 = vmatpush1.msra.mxu0 0.0
      %4174 = vmatprep.subr.mxu0 0.0
      %4175 = vmatpush1.msra.mxu0 0.0
      %4176 = vmatprep.subr.mxu0 0.0
      %4177 = vmatpush1.msra.mxu0 0.0
      %4178 = vmatprep.subr.mxu0 0.0
      %4179 = vmatpush1.msra.mxu0 0.0
      %4180 = vmatprep.subr.mxu0 0.0
      %4181 = vmatpush1.msra.mxu0 0.0
      %4182 = vmatprep.subr.mxu0 0.0
      %4183 = vmatpush1.msra.mxu0 0.0
      %4184 = vmatprep.subr.mxu0 0.0
      %4185 = vmatpush1.msra.mxu0 0.0
      %4186 = vmatprep.subr.mxu0 0.0
      %4187 = vmatpush1.msra.mxu0 0.0
      %4188 = vmatprep.subr.mxu0 0.0
      %4189 = vmatpush1.msra.mxu0 0.0
      %4190 = vmatprep.mubr.f32.mxu0 0.0
      %4191 = vmatmul.mubr.f32.gmra.mrb[0].mxu0 %v514
      %v4192 = vpop.f32.mrb[0].mxu0
      %v4193 = vadd.f32 0.0, %v4192
      %v4194 = vpop.f32.mrb[0].mxu0
      %4195 = vmatprep.mubr.f32.mxu0 0.0
      %4196 = vmatmul.mubr.f32.gmra.mrb[0].mxu0 %v517
      %v4197 = vpop.f32.mrb[0].mxu0
      %v4198 = vadd.f32 0.0, %v4197
      %v4199 = vpop.f32.mrb[0].mxu0
      %4200 = vmatprep.mubr.f32.mxu0 0.0
      %4201 = vmatmul.mubr.f32.gmra.mrb[0].mxu0 %v520
      %v4202 = vpop.f32.mrb[0].mxu0
      %v4203 = vadd.f32 0.0, %v4202
      %v4204 = vpop.f32.mrb[0].mxu0
      %4205 = vdwg.mxu0
      %4206 = vmatprep.subr.mxu0 0.0
      %4207 = vmatpush1.msra.mxu0 %v1973
      %4208 = vmatprep.subr.mxu0 0.0
      %4209 = vmatpush1.msra.mxu0 %v1978
      %4210 = vmatprep.subr.mxu0 0.0
      %4211 = vmatpush1.msra.mxu0 %v1983
      %4212 = vmatprep.subr.mxu0 0.0
      %4213 = vmatpush1.msra.mxu0 0.0
      %4214 = vmatprep.subr.mxu0 0.0
      %4215 = vmatpush1.msra.mxu0 0.0
      %4216 = vmatprep.subr.mxu0 0.0
      %4217 = vmatpush1.msra.mxu0 0.0
      %4218 = vmatprep.subr.mxu0 0.0
      %4219 = vmatpush1.msra.mxu0 0.0
      %4220 = vmatprep.subr.mxu0 0.0
      %4221 = vmatpush1.msra.mxu0 0.0
      %4222 = vmatprep.subr.mxu0 0.0
      %4223 = vmatpush1.msra.mxu0 0.0
      %4224 = vmatprep.subr.mxu0 0.0
      %4225 = vmatpush1.msra.mxu0 0.0
      %4226 = vmatprep.subr.mxu0 0.0
      %4227 = vmatpush1.msra.mxu0 0.0
      %4228 = vmatprep.subr.mxu0 0.0
      %4229 = vmatpush1.msra.mxu0 0.0
      %4230 = vmatprep.subr.mxu0 0.0
      %4231 = vmatpush1.msra.mxu0 0.0
      %4232 = vmatprep.subr.mxu0 0.0
      %4233 = vmatpush1.msra.mxu0 0.0
      %4234 = vmatprep.subr.mxu0 0.0
      %4235 = vmatpush1.msra.mxu0 0.0
      %4236 = vmatprep.subr.mxu0 0.0
      %4237 = vmatpush1.msra.mxu0 0.0
      %4238 = vmatprep.subr.mxu0 0.0
      %4239 = vmatpush1.msra.mxu0 0.0
      %4240 = vmatprep.subr.mxu0 0.0
      %4241 = vmatpush1.msra.mxu0 0.0
      %4242 = vmatprep.subr.mxu0 0.0
      %4243 = vmatpush1.msra.mxu0 0.0
      %4244 = vmatprep.subr.mxu0 0.0
      %4245 = vmatpush1.msra.mxu0 0.0
      %4246 = vmatprep.subr.mxu0 0.0
      %4247 = vmatpush1.msra.mxu0 0.0
      %4248 = vmatprep.subr.mxu0 0.0
      %4249 = vmatpush1.msra.mxu0 0.0
      %4250 = vmatprep.subr.mxu0 0.0
      %4251 = vmatpush1.msra.mxu0 0.0
      %4252 = vmatprep.subr.mxu0 0.0
      %4253 = vmatpush1.msra.mxu0 0.0
      %4254 = vmatprep.subr.mxu0 0.0
      %4255 = vmatpush1.msra.mxu0 0.0
      %4256 = vmatprep.subr.mxu0 0.0
      %4257 = vmatpush1.msra.mxu0 0.0
      %4258 = vmatprep.subr.mxu0 0.0
      %4259 = vmatpush1.msra.mxu0 0.0
      %4260 = vmatprep.subr.mxu0 0.0
      %4261 = vmatpush1.msra.mxu0 0.0
      %4262 = vmatprep.subr.mxu0 0.0
      %4263 = vmatpush1.msra.mxu0 0.0
      %4264 = vmatprep.subr.mxu0 0.0
      %4265 = vmatpush1.msra.mxu0 0.0
      %4266 = vmatprep.subr.mxu0 0.0
      %4267 = vmatpush1.msra.mxu0 0.0
      %4268 = vmatprep.subr.mxu0 0.0
      %4269 = vmatpush1.msra.mxu0 0.0
      %4270 = vmatprep.mubr.f32.mxu0 0.0
      %4271 = vmatmul.mubr.f32.gmra.mrb[0].mxu0 %v523
      %v4272 = vpop.f32.mrb[0].mxu0
      %v4273 = vadd.f32 0.0, %v4272
      %v4274 = vpop.f32.mrb[0].mxu0
      %4275 = vmatprep.mubr.f32.mxu0 0.0
      %4276 = vmatmul.mubr.f32.gmra.mrb[0].mxu0 %v526
      %v4277 = vpop.f32.mrb[0].mxu0
      %v4278 = vadd.f32 0.0, %v4277
      %v4279 = vpop.f32.mrb[0].mxu0
      %4280 = vmatprep.mubr.f32.mxu0 0.0
      %4281 = vmatmul.mubr.f32.gmra.mrb[0].mxu0 %v529
      %v4282 = vpop.f32.mrb[0].mxu0
      %v4283 = vadd.f32 0.0, %v4282
      %v4284 = vpop.f32.mrb[0].mxu0
      %4285 = vdwg.mxu0
      %4286 = vmatprep.subr.mxu0 0.0
      %4287 = vmatpush1.msra.mxu0 %v1988
      %4288 = vmatprep.subr.mxu0 0.0
      %4289 = vmatpush1.msra.mxu0 %v1993
      %4290 = vmatprep.subr.mxu0 0.0
      %4291 = vmatpush1.msra.mxu0 %v1998
      %4292 = vmatprep.subr.mxu0 0.0
      %4293 = vmatpush1.msra.mxu0 0.0
      %4294 = vmatprep.subr.mxu0 0.0
      %4295 = vmatpush1.msra.mxu0 0.0
      %4296 = vmatprep.subr.mxu0 0.0
      %4297 = vmatpush1.msra.mxu0 0.0
      %4298 = vmatprep.subr.mxu0 0.0
      %4299 = vmatpush1.msra.mxu0 0.0
      %4300 = vmatprep.subr.mxu0 0.0
      %4301 = vmatpush1.msra.mxu0 0.0
      %4302 = vmatprep.subr.mxu0 0.0
      %4303 = vmatpush1.msra.mxu0 0.0
      %4304 = vmatprep.subr.mxu0 0.0
      %4305 = vmatpush1.msra.mxu0 0.0
      %4306 = vmatprep.subr.mxu0 0.0
      %4307 = vmatpush1.msra.mxu0 0.0
      %4308 = vmatprep.subr.mxu0 0.0
      %4309 = vmatpush1.msra.mxu0 0.0
      %4310 = vmatprep.subr.mxu0 0.0
      %4311 = vmatpush1.msra.mxu0 0.0
      %4312 = vmatprep.subr.mxu0 0.0
      %4313 = vmatpush1.msra.mxu0 0.0
      %4314 = vmatprep.subr.mxu0 0.0
      %4315 = vmatpush1.msra.mxu0 0.0
      %4316 = vmatprep.subr.mxu0 0.0
      %4317 = vmatpush1.msra.mxu0 0.0
      %4318 = vmatprep.subr.mxu0 0.0
      %4319 = vmatpush1.msra.mxu0 0.0
      %4320 = vmatprep.subr.mxu0 0.0
      %4321 = vmatpush1.msra.mxu0 0.0
      %4322 = vmatprep.subr.mxu0 0.0
      %4323 = vmatpush1.msra.mxu0 0.0
      %4324 = vmatprep.subr.mxu0 0.0
      %4325 = vmatpush1.msra.mxu0 0.0
      %4326 = vmatprep.subr.mxu0 0.0
      %4327 = vmatpush1.msra.mxu0 0.0
      %4328 = vmatprep.subr.mxu0 0.0
      %4329 = vmatpush1.msra.mxu0 0.0
      %4330 = vmatprep.subr.mxu0 0.0
      %4331 = vmatpush1.msra.mxu0 0.0
      %4332 = vmatprep.subr.mxu0 0.0
      %4333 = vmatpush1.msra.mxu0 0.0
      %4334 = vmatprep.subr.mxu0 0.0
      %4335 = vmatpush1.msra.mxu0 0.0
      %4336 = vmatprep.subr.mxu0 0.0
      %4337 = vmatpush1.msra.mxu0 0.0
      %4338 = vmatprep.subr.mxu0 0.0
      %4339 = vmatpush1.msra.mxu0 0.0
      %4340 = vmatprep.subr.mxu0 0.0
      %4341 = vmatpush1.msra.mxu0 0.0
      %4342 = vmatprep.subr.mxu0 0.0
      %4343 = vmatpush1.msra.mxu0 0.0
      %4344 = vmatprep.subr.mxu0 0.0
      %4345 = vmatpush1.msra.mxu0 0.0
      %4346 = vmatprep.subr.mxu0 0.0
      %4347 = vmatpush1.msra.mxu0 0.0
      %4348 = vmatprep.subr.mxu0 0.0
      %4349 = vmatpush1.msra.mxu0 0.0
      %4350 = vmatprep.mubr.f32.mxu0 0.0
      %4351 = vmatmul.mubr.f32.gmra.mrb[0].mxu0 %v532
      %v4352 = vpop.f32.mrb[0].mxu0
      %v4353 = vadd.f32 0.0, %v4352
      %v4354 = vpop.f32.mrb[0].mxu0
      %4355 = vmatprep.mubr.f32.mxu0 0.0
      %4356 = vmatmul.mubr.f32.gmra.mrb[0].mxu0 %v535
      %v4357 = vpop.f32.mrb[0].mxu0
      %v4358 = vadd.f32 0.0, %v4357
      %v4359 = vpop.f32.mrb[0].mxu0
      %4360 = vmatprep.mubr.f32.mxu0 0.0
      %4361 = vmatmul.mubr.f32.gmra.mrb[0].mxu0 %v538
      %v4362 = vpop.f32.mrb[0].mxu0
      %v4363 = vadd.f32 0.0, %v4362
      %v4364 = vpop.f32.mrb[0].mxu0
      %4365 = vdwg.mxu0
      %4366 = vmatprep.subr.mxu0 0.0
      %4367 = vmatpush1.msra.mxu0 %v2003
      %4368 = vmatprep.subr.mxu0 0.0
      %4369 = vmatpush1.msra.mxu0 %v2008
      %4370 = vmatprep.subr.mxu0 0.0
      %4371 = vmatpush1.msra.mxu0 %v2013
      %4372 = vmatprep.subr.mxu0 0.0
      %4373 = vmatpush1.msra.mxu0 0.0
      %4374 = vmatprep.subr.mxu0 0.0
      %4375 = vmatpush1.msra.mxu0 0.0
      %4376 = vmatprep.subr.mxu0 0.0
      %4377 = vmatpush1.msra.mxu0 0.0
      %4378 = vmatprep.subr.mxu0 0.0
      %4379 = vmatpush1.msra.mxu0 0.0
      %4380 = vmatprep.subr.mxu0 0.0
      %4381 = vmatpush1.msra.mxu0 0.0
      %4382 = vmatprep.subr.mxu0 0.0
      %4383 = vmatpush1.msra.mxu0 0.0
      %4384 = vmatprep.subr.mxu0 0.0
      %4385 = vmatpush1.msra.mxu0 0.0
      %4386 = vmatprep.subr.mxu0 0.0
      %4387 = vmatpush1.msra.mxu0 0.0
      %4388 = vmatprep.subr.mxu0 0.0
      %4389 = vmatpush1.msra.mxu0 0.0
      %4390 = vmatprep.subr.mxu0 0.0
      %4391 = vmatpush1.msra.mxu0 0.0
      %4392 = vmatprep.subr.mxu0 0.0
      %4393 = vmatpush1.msra.mxu0 0.0
      %4394 = vmatprep.subr.mxu0 0.0
      %4395 = vmatpush1.msra.mxu0 0.0
      %4396 = vmatprep.subr.mxu0 0.0
      %4397 = vmatpush1.msra.mxu0 0.0
      %4398 = vmatprep.subr.mxu0 0.0
      %4399 = vmatpush1.msra.mxu0 0.0
      %4400 = vmatprep.subr.mxu0 0.0
      %4401 = vmatpush1.msra.mxu0 0.0
      %4402 = vmatprep.subr.mxu0 0.0
      %4403 = vmatpush1.msra.mxu0 0.0
      %4404 = vmatprep.subr.mxu0 0.0
      %4405 = vmatpush1.msra.mxu0 0.0
      %4406 = vmatprep.subr.mxu0 0.0
      %4407 = vmatpush1.msra.mxu0 0.0
      %4408 = vmatprep.subr.mxu0 0.0
      %4409 = vmatpush1.msra.mxu0 0.0
      %4410 = vmatprep.subr.mxu0 0.0
      %4411 = vmatpush1.msra.mxu0 0.0
      %4412 = vmatprep.subr.mxu0 0.0
      %4413 = vmatpush1.msra.mxu0 0.0
      %4414 = vmatprep.subr.mxu0 0.0
      %4415 = vmatpush1.msra.mxu0 0.0
      %4416 = vmatprep.subr.mxu0 0.0
      %4417 = vmatpush1.msra.mxu0 0.0
      %4418 = vmatprep.subr.mxu0 0.0
      %4419 = vmatpush1.msra.mxu0 0.0
      %4420 = vmatprep.subr.mxu0 0.0
      %4421 = vmatpush1.msra.mxu0 0.0
      %4422 = vmatprep.subr.mxu0 0.0
      %4423 = vmatpush1.msra.mxu0 0.0
      %4424 = vmatprep.subr.mxu0 0.0
      %4425 = vmatpush1.msra.mxu0 0.0
      %4426 = vmatprep.subr.mxu0 0.0
      %4427 = vmatpush1.msra.mxu0 0.0
      %4428 = vmatprep.subr.mxu0 0.0
      %4429 = vmatpush1.msra.mxu0 0.0
      %4430 = vmatprep.mubr.f32.mxu0 0.0
      %4431 = vmatmul.mubr.f32.gmra.mrb[0].mxu0 %v541
      %v4432 = vpop.f32.mrb[0].mxu0
      %v4433 = vadd.f32 0.0, %v4432
      %v4434 = vpop.f32.mrb[0].mxu0
      %4435 = vmatprep.mubr.f32.mxu0 0.0
      %4436 = vmatmul.mubr.f32.gmra.mrb[0].mxu0 %v544
      %v4437 = vpop.f32.mrb[0].mxu0
      %v4438 = vadd.f32 0.0, %v4437
      %v4439 = vpop.f32.mrb[0].mxu0
      %4440 = vmatprep.mubr.f32.mxu0 0.0
      %4441 = vmatmul.mubr.f32.gmra.mrb[0].mxu0 %v547
      %v4442 = vpop.f32.mrb[0].mxu0
      %v4443 = vadd.f32 0.0, %v4442
      %v4444 = vpop.f32.mrb[0].mxu0
      %4445 = vdwg.mxu0
      %4446 = vmatprep.subr.mxu0 0.0
      %4447 = vmatpush1.msra.mxu0 %v2018
      %4448 = vmatprep.subr.mxu0 0.0
      %4449 = vmatpush1.msra.mxu0 %v2023
      %4450 = vmatprep.subr.mxu0 0.0
      %4451 = vmatpush1.msra.mxu0 %v2028
      %4452 = vmatprep.subr.mxu0 0.0
      %4453 = vmatpush1.msra.mxu0 0.0
      %4454 = vmatprep.subr.mxu0 0.0
      %4455 = vmatpush1.msra.mxu0 0.0
      %4456 = vmatprep.subr.mxu0 0.0
      %4457 = vmatpush1.msra.mxu0 0.0
      %4458 = vmatprep.subr.mxu0 0.0
      %4459 = vmatpush1.msra.mxu0 0.0
      %4460 = vmatprep.subr.mxu0 0.0
      %4461 = vmatpush1.msra.mxu0 0.0
      %4462 = vmatprep.subr.mxu0 0.0
      %4463 = vmatpush1.msra.mxu0 0.0
      %4464 = vmatprep.subr.mxu0 0.0
      %4465 = vmatpush1.msra.mxu0 0.0
      %4466 = vmatprep.subr.mxu0 0.0
      %4467 = vmatpush1.msra.mxu0 0.0
      %4468 = vmatprep.subr.mxu0 0.0
      %4469 = vmatpush1.msra.mxu0 0.0
      %4470 = vmatprep.subr.mxu0 0.0
      %4471 = vmatpush1.msra.mxu0 0.0
      %4472 = vmatprep.subr.mxu0 0.0
      %4473 = vmatpush1.msra.mxu0 0.0
      %4474 = vmatprep.subr.mxu0 0.0
      %4475 = vmatpush1.msra.mxu0 0.0
      %4476 = vmatprep.subr.mxu0 0.0
      %4477 = vmatpush1.msra.mxu0 0.0
      %4478 = vmatprep.subr.mxu0 0.0
      %4479 = vmatpush1.msra.mxu0 0.0
      %4480 = vmatprep.subr.mxu0 0.0
      %4481 = vmatpush1.msra.mxu0 0.0
      %4482 = vmatprep.subr.mxu0 0.0
      %4483 = vmatpush1.msra.mxu0 0.0
      %4484 = vmatprep.subr.mxu0 0.0
      %4485 = vmatpush1.msra.mxu0 0.0
      %4486 = vmatprep.subr.mxu0 0.0
      %4487 = vmatpush1.msra.mxu0 0.0
      %4488 = vmatprep.subr.mxu0 0.0
      %4489 = vmatpush1.msra.mxu0 0.0
      %4490 = vmatprep.subr.mxu0 0.0
      %4491 = vmatpush1.msra.mxu0 0.0
      %4492 = vmatprep.subr.mxu0 0.0
      %4493 = vmatpush1.msra.mxu0 0.0
      %4494 = vmatprep.subr.mxu0 0.0
      %4495 = vmatpush1.msra.mxu0 0.0
      %4496 = vmatprep.subr.mxu0 0.0
      %4497 = vmatpush1.msra.mxu0 0.0
      %4498 = vmatprep.subr.mxu0 0.0
      %4499 = vmatpush1.msra.mxu0 0.0
      %4500 = vmatprep.subr.mxu0 0.0
      %4501 = vmatpush1.msra.mxu0 0.0
      %4502 = vmatprep.subr.mxu0 0.0
      %4503 = vmatpush1.msra.mxu0 0.0
      %4504 = vmatprep.subr.mxu0 0.0
      %4505 = vmatpush1.msra.mxu0 0.0
      %4506 = vmatprep.subr.mxu0 0.0
      %4507 = vmatpush1.msra.mxu0 0.0
      %4508 = vmatprep.subr.mxu0 0.0
      %4509 = vmatpush1.msra.mxu0 0.0
      %4510 = vmatprep.mubr.f32.mxu0 0.0
      %4511 = vmatmul.mubr.f32.gmra.mrb[0].mxu0 %v550
      %v4512 = vpop.f32.mrb[0].mxu0
      %v4513 = vadd.f32 0.0, %v4512
      %v4514 = vpop.f32.mrb[0].mxu0
      %4515 = vmatprep.mubr.f32.mxu0 0.0
      %4516 = vmatmul.mubr.f32.gmra.mrb[0].mxu0 %v553
      %v4517 = vpop.f32.mrb[0].mxu0
      %v4518 = vadd.f32 0.0, %v4517
      %v4519 = vpop.f32.mrb[0].mxu0
      %4520 = vmatprep.mubr.f32.mxu0 0.0
      %4521 = vmatmul.mubr.f32.gmra.mrb[0].mxu0 %v556
      %v4522 = vpop.f32.mrb[0].mxu0
      %v4523 = vadd.f32 0.0, %v4522
      %v4524 = vpop.f32.mrb[0].mxu0
      %4525 = vdwg.mxu0
      %4526 = vmatprep.subr.mxu0 0.0
      %4527 = vmatpush1.msra.mxu0 %v2033
      %4528 = vmatprep.subr.mxu0 0.0
      %4529 = vmatpush1.msra.mxu0 %v2038
      %4530 = vmatprep.subr.mxu0 0.0
      %4531 = vmatpush1.msra.mxu0 %v2043
      %4532 = vmatprep.subr.mxu0 0.0
      %4533 = vmatpush1.msra.mxu0 0.0
      %4534 = vmatprep.subr.mxu0 0.0
      %4535 = vmatpush1.msra.mxu0 0.0
      %4536 = vmatprep.subr.mxu0 0.0
      %4537 = vmatpush1.msra.mxu0 0.0
      %4538 = vmatprep.subr.mxu0 0.0
      %4539 = vmatpush1.msra.mxu0 0.0
      %4540 = vmatprep.subr.mxu0 0.0
      %4541 = vmatpush1.msra.mxu0 0.0
      %4542 = vmatprep.subr.mxu0 0.0
      %4543 = vmatpush1.msra.mxu0 0.0
      %4544 = vmatprep.subr.mxu0 0.0
      %4545 = vmatpush1.msra.mxu0 0.0
      %4546 = vmatprep.subr.mxu0 0.0
      %4547 = vmatpush1.msra.mxu0 0.0
      %4548 = vmatprep.subr.mxu0 0.0
      %4549 = vmatpush1.msra.mxu0 0.0
      %4550 = vmatprep.subr.mxu0 0.0
      %4551 = vmatpush1.msra.mxu0 0.0
      %4552 = vmatprep.subr.mxu0 0.0
      %4553 = vmatpush1.msra.mxu0 0.0
      %4554 = vmatprep.subr.mxu0 0.0
      %4555 = vmatpush1.msra.mxu0 0.0
      %4556 = vmatprep.subr.mxu0 0.0
      %4557 = vmatpush1.msra.mxu0 0.0
      %4558 = vmatprep.subr.mxu0 0.0
      %4559 = vmatpush1.msra.mxu0 0.0
      %4560 = vmatprep.subr.mxu0 0.0
      %4561 = vmatpush1.msra.mxu0 0.0
      %4562 = vmatprep.subr.mxu0 0.0
      %4563 = vmatpush1.msra.mxu0 0.0
      %4564 = vmatprep.subr.mxu0 0.0
      %4565 = vmatpush1.msra.mxu0 0.0
      %4566 = vmatprep.subr.mxu0 0.0
      %4567 = vmatpush1.msra.mxu0 0.0
      %4568 = vmatprep.subr.mxu0 0.0
      %4569 = vmatpush1.msra.mxu0 0.0
      %4570 = vmatprep.subr.mxu0 0.0
      %4571 = vmatpush1.msra.mxu0 0.0
      %4572 = vmatprep.subr.mxu0 0.0
      %4573 = vmatpush1.msra.mxu0 0.0
      %4574 = vmatprep.subr.mxu0 0.0
      %4575 = vmatpush1.msra.mxu0 0.0
      %4576 = vmatprep.subr.mxu0 0.0
      %4577 = vmatpush1.msra.mxu0 0.0
      %4578 = vmatprep.subr.mxu0 0.0
      %4579 = vmatpush1.msra.mxu0 0.0
      %4580 = vmatprep.subr.mxu0 0.0
      %4581 = vmatpush1.msra.mxu0 0.0
      %4582 = vmatprep.subr.mxu0 0.0
      %4583 = vmatpush1.msra.mxu0 0.0
      %4584 = vmatprep.subr.mxu0 0.0
      %4585 = vmatpush1.msra.mxu0 0.0
      %4586 = vmatprep.subr.mxu0 0.0
      %4587 = vmatpush1.msra.mxu0 0.0
      %4588 = vmatprep.subr.mxu0 0.0
      %4589 = vmatpush1.msra.mxu0 0.0
      %4590 = vmatprep.mubr.f32.mxu0 0.0
      %4591 = vmatmul.mubr.f32.gmra.mrb[0].mxu0 %v559
      %v4592 = vpop.f32.mrb[0].mxu0
      %v4593 = vadd.f32 0.0, %v4592
      %v4594 = vpop.f32.mrb[0].mxu0
      %4595 = vmatprep.mubr.f32.mxu0 0.0
      %4596 = vmatmul.mubr.f32.gmra.mrb[0].mxu0 %v562
      %v4597 = vpop.f32.mrb[0].mxu0
      %v4598 = vadd.f32 0.0, %v4597
      %v4599 = vpop.f32.mrb[0].mxu0
      %4600 = vmatprep.mubr.f32.mxu0 0.0
      %4601 = vmatmul.mubr.f32.gmra.mrb[0].mxu0 %v565
      %v4602 = vpop.f32.mrb[0].mxu0
      %v4603 = vadd.f32 0.0, %v4602
      %v4604 = vpop.f32.mrb[0].mxu0
      %4605 = vdwg.mxu0
      %v4606 = vlaneseq
      %v4607 = vand.u32 %v4606, 127
      %vm4608 = vcmp.ge.s32.totalorder %v4607, 8
      %v4609 = vsel %vm4608, %v2113, 0.0
      %v4610 = vsel %vm4608, %v2118, 0.0
      %v4611 = vsel %vm4608, %v2123, 0.0
      %v4612 = vsel %vm4608, %v2193, 0.0
      %v4613 = vsel %vm4608, %v2198, 0.0
      %v4614 = vsel %vm4608, %v2203, 0.0
      %v4615 = vsel %vm4608, %v2273, 0.0
      %v4616 = vsel %vm4608, %v2278, 0.0
      %v4617 = vsel %vm4608, %v2283, 0.0
      %v4618 = vsel %vm4608, %v2353, 0.0
      %v4619 = vsel %vm4608, %v2358, 0.0
      %v4620 = vsel %vm4608, %v2363, 0.0
      %v4621 = vsel %vm4608, %v2433, 0.0
      %v4622 = vsel %vm4608, %v2438, 0.0
      %v4623 = vsel %vm4608, %v2443, 0.0
      %v4624 = vsel %vm4608, %v2513, 0.0
      %v4625 = vsel %vm4608, %v2518, 0.0
      %v4626 = vsel %vm4608, %v2523, 0.0
      %v4627 = vsel %vm4608, %v2593, 0.0
      %v4628 = vsel %vm4608, %v2598, 0.0
      %v4629 = vsel %vm4608, %v2603, 0.0
      %v4630 = vsel %vm4608, %v2673, 0.0
      %v4631 = vsel %vm4608, %v2678, 0.0
      %v4632 = vsel %vm4608, %v2683, 0.0
      %v4633 = vsel %vm4608, %v2753, 0.0
      %v4634 = vsel %vm4608, %v2758, 0.0
      %v4635 = vsel %vm4608, %v2763, 0.0
      %v4636 = vsel %vm4608, %v2833, 0.0
      %v4637 = vsel %vm4608, %v2838, 0.0
      %v4638 = vsel %vm4608, %v2843, 0.0
      %v4639 = vsel %vm4608, %v2913, 0.0
      %v4640 = vsel %vm4608, %v2918, 0.0
      %v4641 = vsel %vm4608, %v2923, 0.0
      %v4642 = vsel %vm4608, %v2993, 0.0
      %v4643 = vsel %vm4608, %v2998, 0.0
      %v4644 = vsel %vm4608, %v3003, 0.0
      %v4645 = vsel %vm4608, %v3073, 0.0
      %v4646 = vsel %vm4608, %v3078, 0.0
      %v4647 = vsel %vm4608, %v3083, 0.0
      %v4648 = vsel %vm4608, %v3153, 0.0
      %v4649 = vsel %vm4608, %v3158, 0.0
      %v4650 = vsel %vm4608, %v3163, 0.0
      %v4651 = vsel %vm4608, %v3233, 0.0
      %v4652 = vsel %vm4608, %v3238, 0.0
      %v4653 = vsel %vm4608, %v3243, 0.0
      %v4654 = vsel %vm4608, %v3313, 0.0
      %v4655 = vsel %vm4608, %v3318, 0.0
      %v4656 = vsel %vm4608, %v3323, 0.0
      %v4657 = vsel %vm4608, %v3393, 0.0
      %v4658 = vsel %vm4608, %v3398, 0.0
      %v4659 = vsel %vm4608, %v3403, 0.0
      %v4660 = vsel %vm4608, %v3473, 0.0
      %v4661 = vsel %vm4608, %v3478, 0.0
      %v4662 = vsel %vm4608, %v3483, 0.0
      %v4663 = vsel %vm4608, %v3553, 0.0
      %v4664 = vsel %vm4608, %v3558, 0.0
      %v4665 = vsel %vm4608, %v3563, 0.0
      %v4666 = vsel %vm4608, %v3633, 0.0
      %v4667 = vsel %vm4608, %v3638, 0.0
      %v4668 = vsel %vm4608, %v3643, 0.0
      %v4669 = vsel %vm4608, %v3713, 0.0
      %v4670 = vsel %vm4608, %v3718, 0.0
      %v4671 = vsel %vm4608, %v3723, 0.0
      %v4672 = vsel %vm4608, %v3793, 0.0
      %v4673 = vsel %vm4608, %v3798, 0.0
      %v4674 = vsel %vm4608, %v3803, 0.0
      %v4675 = vsel %vm4608, %v3873, 0.0
      %v4676 = vsel %vm4608, %v3878, 0.0
      %v4677 = vsel %vm4608, %v3883, 0.0
      %v4678 = vsel %vm4608, %v3953, 0.0
      %v4679 = vsel %vm4608, %v3958, 0.0
      %v4680 = vsel %vm4608, %v3963, 0.0
      %v4681 = vsel %vm4608, %v4033, 0.0
      %v4682 = vsel %vm4608, %v4038, 0.0
      %v4683 = vsel %vm4608, %v4043, 0.0
      %v4684 = vsel %vm4608, %v4113, 0.0
      %v4685 = vsel %vm4608, %v4118, 0.0
      %v4686 = vsel %vm4608, %v4123, 0.0
      %v4687 = vsel %vm4608, %v4193, 0.0
      %v4688 = vsel %vm4608, %v4198, 0.0
      %v4689 = vsel %vm4608, %v4203, 0.0
      %v4690 = vsel %vm4608, %v4273, 0.0
      %v4691 = vsel %vm4608, %v4278, 0.0
      %v4692 = vsel %vm4608, %v4283, 0.0
      %v4693 = vsel %vm4608, %v4353, 0.0
      %v4694 = vsel %vm4608, %v4358, 0.0
      %v4695 = vsel %vm4608, %v4363, 0.0
      %v4696 = vsel %vm4608, %v4433, 0.0
      %v4697 = vsel %vm4608, %v4438, 0.0
      %v4698 = vsel %vm4608, %v4443, 0.0
      %v4699 = vsel %vm4608, %v4513, 0.0
      %v4700 = vsel %vm4608, %v4518, 0.0
      %v4701 = vsel %vm4608, %v4523, 0.0
      %v4702 = vsel %vm4608, %v4593, 0.0
      %v4703 = vsel %vm4608, %v4598, 0.0
      %v4704 = vsel %vm4608, %v4603, 0.0
      %v4705 = vmul.f32 %v4609, 1.442695
      %v4706 = vpow.pop %v4705
      %v4707 = vmul.f32 %v4610, 1.442695
      %v4708 = vpow.pop %v4707
      %v4709 = vmul.f32 %v4611, 1.442695
      %v4710 = vpow.pop %v4709
      %v4711 = vmul.f32 %v4612, 1.442695
      %v4712 = vpow.pop %v4711
      %v4713 = vmul.f32 %v4613, 1.442695
      %v4714 = vpow.pop %v4713
      %v4715 = vmul.f32 %v4614, 1.442695
      %v4716 = vpow.pop %v4715
      %v4717 = vmul.f32 %v4615, 1.442695
      %v4718 = vpow.pop %v4717
      %v4719 = vmul.f32 %v4616, 1.442695
      %v4720 = vpow.pop %v4719
      %v4721 = vmul.f32 %v4617, 1.442695
      %v4722 = vpow.pop %v4721
      %v4723 = vmul.f32 %v4618, 1.442695
      %v4724 = vpow.pop %v4723
      %v4725 = vmul.f32 %v4619, 1.442695
      %v4726 = vpow.pop %v4725
      %v4727 = vmul.f32 %v4620, 1.442695
      %v4728 = vpow.pop %v4727
      %v4729 = vmul.f32 %v4621, 1.442695
      %v4730 = vpow.pop %v4729
      %v4731 = vmul.f32 %v4622, 1.442695
      %v4732 = vpow.pop %v4731
      %v4733 = vmul.f32 %v4623, 1.442695
      %v4734 = vpow.pop %v4733
      %v4735 = vmul.f32 %v4624, 1.442695
      %v4736 = vpow.pop %v4735
      %v4737 = vmul.f32 %v4625, 1.442695
      %v4738 = vpow.pop %v4737
      %v4739 = vmul.f32 %v4626, 1.442695
      %v4740 = vpow.pop %v4739
      %v4741 = vmul.f32 %v4627, 1.442695
      %v4742 = vpow.pop %v4741
      %v4743 = vmul.f32 %v4628, 1.442695
      %v4744 = vpow.pop %v4743
      %v4745 = vmul.f32 %v4629, 1.442695
      %v4746 = vpow.pop %v4745
      %v4747 = vmul.f32 %v4630, 1.442695
      %v4748 = vpow.pop %v4747
      %v4749 = vmul.f32 %v4631, 1.442695
      %v4750 = vpow.pop %v4749
      %v4751 = vmul.f32 %v4632, 1.442695
      %v4752 = vpow.pop %v4751
      %v4753 = vmul.f32 %v4633, 1.442695
      %v4754 = vpow.pop %v4753
      %v4755 = vmul.f32 %v4634, 1.442695
      %v4756 = vpow.pop %v4755
      %v4757 = vmul.f32 %v4635, 1.442695
      %v4758 = vpow.pop %v4757
      %v4759 = vmul.f32 %v4636, 1.442695
      %v4760 = vpow.pop %v4759
      %v4761 = vmul.f32 %v4637, 1.442695
      %v4762 = vpow.pop %v4761
      %v4763 = vmul.f32 %v4638, 1.442695
      %v4764 = vpow.pop %v4763
      %v4765 = vmul.f32 %v4639, 1.442695
      %v4766 = vpow.pop %v4765
      %v4767 = vmul.f32 %v4640, 1.442695
      %v4768 = vpow.pop %v4767
      %v4769 = vmul.f32 %v4641, 1.442695
      %v4770 = vpow.pop %v4769
      %v4771 = vmul.f32 %v4642, 1.442695
      %v4772 = vpow.pop %v4771
      %v4773 = vmul.f32 %v4643, 1.442695
      %v4774 = vpow.pop %v4773
      %v4775 = vmul.f32 %v4644, 1.442695
      %v4776 = vpow.pop %v4775
      %v4777 = vmul.f32 %v4645, 1.442695
      %v4778 = vpow.pop %v4777
      %v4779 = vmul.f32 %v4646, 1.442695
      %v4780 = vpow.pop %v4779
      %v4781 = vmul.f32 %v4647, 1.442695
      %v4782 = vpow.pop %v4781
      %v4783 = vmul.f32 %v4648, 1.442695
      %v4784 = vpow.pop %v4783
      %v4785 = vmul.f32 %v4649, 1.442695
      %v4786 = vpow.pop %v4785
      %v4787 = vmul.f32 %v4650, 1.442695
      %v4788 = vpow.pop %v4787
      %v4789 = vmul.f32 %v4651, 1.442695
      %v4790 = vpow.pop %v4789
      %v4791 = vmul.f32 %v4652, 1.442695
      %v4792 = vpow.pop %v4791
      %v4793 = vmul.f32 %v4653, 1.442695
      %v4794 = vpow.pop %v4793
      %v4795 = vmul.f32 %v4654, 1.442695
      %v4796 = vpow.pop %v4795
      %v4797 = vmul.f32 %v4655, 1.442695
      %v4798 = vpow.pop %v4797
      %v4799 = vmul.f32 %v4656, 1.442695
      %v4800 = vpow.pop %v4799
      %v4801 = vmul.f32 %v4657, 1.442695
      %v4802 = vpow.pop %v4801
      %v4803 = vmul.f32 %v4658, 1.442695
      %v4804 = vpow.pop %v4803
      %v4805 = vmul.f32 %v4659, 1.442695
      %v4806 = vpow.pop %v4805
      %v4807 = vmul.f32 %v4660, 1.442695
      %v4808 = vpow.pop %v4807
      %v4809 = vmul.f32 %v4661, 1.442695
      %v4810 = vpow.pop %v4809
      %v4811 = vmul.f32 %v4662, 1.442695
      %v4812 = vpow.pop %v4811
      %v4813 = vmul.f32 %v4663, 1.442695
      %v4814 = vpow.pop %v4813
      %v4815 = vmul.f32 %v4664, 1.442695
      %v4816 = vpow.pop %v4815
      %v4817 = vmul.f32 %v4665, 1.442695
      %v4818 = vpow.pop %v4817
      %v4819 = vmul.f32 %v4666, 1.442695
      %v4820 = vpow.pop %v4819
      %v4821 = vmul.f32 %v4667, 1.442695
      %v4822 = vpow.pop %v4821
      %v4823 = vmul.f32 %v4668, 1.442695
      %v4824 = vpow.pop %v4823
      %v4825 = vmul.f32 %v4669, 1.442695
      %v4826 = vpow.pop %v4825
      %v4827 = vmul.f32 %v4670, 1.442695
      %v4828 = vpow.pop %v4827
      %v4829 = vmul.f32 %v4671, 1.442695
      %v4830 = vpow.pop %v4829
      %v4831 = vmul.f32 %v4672, 1.442695
      %v4832 = vpow.pop %v4831
      %v4833 = vmul.f32 %v4673, 1.442695
      %v4834 = vpow.pop %v4833
      %v4835 = vmul.f32 %v4674, 1.442695
      %v4836 = vpow.pop %v4835
      %v4837 = vmul.f32 %v4675, 1.442695
      %v4838 = vpow.pop %v4837
      %v4839 = vmul.f32 %v4676, 1.442695
      %v4840 = vpow.pop %v4839
      %v4841 = vmul.f32 %v4677, 1.442695
      %v4842 = vpow.pop %v4841
      %v4843 = vmul.f32 %v4678, 1.442695
      %v4844 = vpow.pop %v4843
      %v4845 = vmul.f32 %v4679, 1.442695
      %v4846 = vpow.pop %v4845
      %v4847 = vmul.f32 %v4680, 1.442695
      %v4848 = vpow.pop %v4847
      %v4849 = vmul.f32 %v4681, 1.442695
      %v4850 = vpow.pop %v4849
      %v4851 = vmul.f32 %v4682, 1.442695
      %v4852 = vpow.pop %v4851
      %v4853 = vmul.f32 %v4683, 1.442695
      %v4854 = vpow.pop %v4853
      %v4855 = vmul.f32 %v4684, 1.442695
      %v4856 = vpow.pop %v4855
      %v4857 = vmul.f32 %v4685, 1.442695
      %v4858 = vpow.pop %v4857
      %v4859 = vmul.f32 %v4686, 1.442695
      %v4860 = vpow.pop %v4859
      %v4861 = vmul.f32 %v4687, 1.442695
      %v4862 = vpow.pop %v4861
      %v4863 = vmul.f32 %v4688, 1.442695
      %v4864 = vpow.pop %v4863
      %v4865 = vmul.f32 %v4689, 1.442695
      %v4866 = vpow.pop %v4865
      %v4867 = vmul.f32 %v4690, 1.442695
      %v4868 = vpow.pop %v4867
      %v4869 = vmul.f32 %v4691, 1.442695
      %v4870 = vpow.pop %v4869
      %v4871 = vmul.f32 %v4692, 1.442695
      %v4872 = vpow.pop %v4871
      %v4873 = vmul.f32 %v4693, 1.442695
      %v4874 = vpow.pop %v4873
      %v4875 = vmul.f32 %v4694, 1.442695
      %v4876 = vpow.pop %v4875
      %v4877 = vmul.f32 %v4695, 1.442695
      %v4878 = vpow.pop %v4877
      %v4879 = vmul.f32 %v4696, 1.442695
      %v4880 = vpow.pop %v4879
      %v4881 = vmul.f32 %v4697, 1.442695
      %v4882 = vpow.pop %v4881
      %v4883 = vmul.f32 %v4698, 1.442695
      %v4884 = vpow.pop %v4883
      %v4885 = vmul.f32 %v4699, 1.442695
      %v4886 = vpow.pop %v4885
      %v4887 = vmul.f32 %v4700, 1.442695
      %v4888 = vpow.pop %v4887
      %v4889 = vmul.f32 %v4701, 1.442695
      %v4890 = vpow.pop %v4889
      %v4891 = vmul.f32 %v4702, 1.442695
      %v4892 = vpow.pop %v4891
      %v4893 = vmul.f32 %v4703, 1.442695
      %v4894 = vpow.pop %v4893
      %v4895 = vmul.f32 %v4704, 1.442695
      %v4896 = vpow.pop %v4895
      %v4897 = vsel %vm4608, %v4706, %v2113
      %v4898 = vsel %vm4608, %v4708, %v2118
      %v4899 = vsel %vm4608, %v4710, %v2123
      %v4900 = vsel %vm4608, %v4712, %v2193
      %v4901 = vsel %vm4608, %v4714, %v2198
      %v4902 = vsel %vm4608, %v4716, %v2203
      %v4903 = vsel %vm4608, %v4718, %v2273
      %v4904 = vsel %vm4608, %v4720, %v2278
      %v4905 = vsel %vm4608, %v4722, %v2283
      %v4906 = vsel %vm4608, %v4724, %v2353
      %v4907 = vsel %vm4608, %v4726, %v2358
      %v4908 = vsel %vm4608, %v4728, %v2363
      %v4909 = vsel %vm4608, %v4730, %v2433
      %v4910 = vsel %vm4608, %v4732, %v2438
      %v4911 = vsel %vm4608, %v4734, %v2443
      %v4912 = vsel %vm4608, %v4736, %v2513
      %v4913 = vsel %vm4608, %v4738, %v2518
      %v4914 = vsel %vm4608, %v4740, %v2523
      %v4915 = vsel %vm4608, %v4742, %v2593
      %v4916 = vsel %vm4608, %v4744, %v2598
      %v4917 = vsel %vm4608, %v4746, %v2603
      %v4918 = vsel %vm4608, %v4748, %v2673
      %v4919 = vsel %vm4608, %v4750, %v2678
      %v4920 = vsel %vm4608, %v4752, %v2683
      %v4921 = vsel %vm4608, %v4754, %v2753
      %v4922 = vsel %vm4608, %v4756, %v2758
      %v4923 = vsel %vm4608, %v4758, %v2763
      %v4924 = vsel %vm4608, %v4760, %v2833
      %v4925 = vsel %vm4608, %v4762, %v2838
      %v4926 = vsel %vm4608, %v4764, %v2843
      %v4927 = vsel %vm4608, %v4766, %v2913
      %v4928 = vsel %vm4608, %v4768, %v2918
      %v4929 = vsel %vm4608, %v4770, %v2923
      %v4930 = vsel %vm4608, %v4772, %v2993
      %v4931 = vsel %vm4608, %v4774, %v2998
      %v4932 = vsel %vm4608, %v4776, %v3003
      %v4933 = vsel %vm4608, %v4778, %v3073
      %v4934 = vsel %vm4608, %v4780, %v3078
      %v4935 = vsel %vm4608, %v4782, %v3083
      %v4936 = vsel %vm4608, %v4784, %v3153
      %v4937 = vsel %vm4608, %v4786, %v3158
      %v4938 = vsel %vm4608, %v4788, %v3163
      %v4939 = vsel %vm4608, %v4790, %v3233
      %v4940 = vsel %vm4608, %v4792, %v3238
      %v4941 = vsel %vm4608, %v4794, %v3243
      %v4942 = vsel %vm4608, %v4796, %v3313
      %v4943 = vsel %vm4608, %v4798, %v3318
      %v4944 = vsel %vm4608, %v4800, %v3323
      %v4945 = vsel %vm4608, %v4802, %v3393
      %v4946 = vsel %vm4608, %v4804, %v3398
      %v4947 = vsel %vm4608, %v4806, %v3403
      %v4948 = vsel %vm4608, %v4808, %v3473
      %v4949 = vsel %vm4608, %v4810, %v3478
      %v4950 = vsel %vm4608, %v4812, %v3483
      %v4951 = vsel %vm4608, %v4814, %v3553
      %v4952 = vsel %vm4608, %v4816, %v3558
      %v4953 = vsel %vm4608, %v4818, %v3563
      %v4954 = vsel %vm4608, %v4820, %v3633
      %v4955 = vsel %vm4608, %v4822, %v3638
      %v4956 = vsel %vm4608, %v4824, %v3643
      %v4957 = vsel %vm4608, %v4826, %v3713
      %v4958 = vsel %vm4608, %v4828, %v3718
      %v4959 = vsel %vm4608, %v4830, %v3723
      %v4960 = vsel %vm4608, %v4832, %v3793
      %v4961 = vsel %vm4608, %v4834, %v3798
      %v4962 = vsel %vm4608, %v4836, %v3803
      %v4963 = vsel %vm4608, %v4838, %v3873
      %v4964 = vsel %vm4608, %v4840, %v3878
      %v4965 = vsel %vm4608, %v4842, %v3883
      %v4966 = vsel %vm4608, %v4844, %v3953
      %v4967 = vsel %vm4608, %v4846, %v3958
      %v4968 = vsel %vm4608, %v4848, %v3963
      %v4969 = vsel %vm4608, %v4850, %v4033
      %v4970 = vsel %vm4608, %v4852, %v4038
      %v4971 = vsel %vm4608, %v4854, %v4043
      %v4972 = vsel %vm4608, %v4856, %v4113
      %v4973 = vsel %vm4608, %v4858, %v4118
      %v4974 = vsel %vm4608, %v4860, %v4123
      %v4975 = vsel %vm4608, %v4862, %v4193
      %v4976 = vsel %vm4608, %v4864, %v4198
      %v4977 = vsel %vm4608, %v4866, %v4203
      %v4978 = vsel %vm4608, %v4868, %v4273
      %v4979 = vsel %vm4608, %v4870, %v4278
      %v4980 = vsel %vm4608, %v4872, %v4283
      %v4981 = vsel %vm4608, %v4874, %v4353
      %v4982 = vsel %vm4608, %v4876, %v4358
      %v4983 = vsel %vm4608, %v4878, %v4363
      %v4984 = vsel %vm4608, %v4880, %v4433
      %v4985 = vsel %vm4608, %v4882, %v4438
      %v4986 = vsel %vm4608, %v4884, %v4443
      %v4987 = vsel %vm4608, %v4886, %v4513
      %v4988 = vsel %vm4608, %v4888, %v4518
      %v4989 = vsel %vm4608, %v4890, %v4523
      %v4990 = vsel %vm4608, %v4892, %v4593
      %v4991 = vsel %vm4608, %v4894, %v4598
      %v4992 = vsel %vm4608, %v4896, %v4603
      %vm4993 = vcmask 130048
      %4994 = vst.msk [vmem:[%s177] sm:$0xff] %vm4993, %v4897
      %4995 = vst.msk [vmem:[%s177 + $0x8] sm:$0xff] %vm4993, %v4898
      %4996 = vst.msk [vmem:[%s177 + $0x10] sm:$0xff] %vm4993, %v4899
      %4997 = vst.msk [vmem:[%s177 + $0x18] sm:$0xff] %vm4993, %v4900
      %4998 = vst.msk [vmem:[%s177 + $0x20] sm:$0xff] %vm4993, %v4901
      %4999 = vst.msk [vmem:[%s177 + $0x28] sm:$0xff] %vm4993, %v4902
      %5000 = vst.msk [vmem:[%s177 + $0x30] sm:$0xff] %vm4993, %v4903
      %5001 = vst.msk [vmem:[%s177 + $0x38] sm:$0xff] %vm4993, %v4904
      %5002 = vst.msk [vmem:[%s177 + $0x40] sm:$0xff] %vm4993, %v4905
      %5003 = vst.msk [vmem:[%s177 + $0x48] sm:$0xff] %vm4993, %v4906
      %5004 = vst.msk [vmem:[%s177 + $0x50] sm:$0xff] %vm4993, %v4907
      %5005 = vst.msk [vmem:[%s177 + $0x58] sm:$0xff] %vm4993, %v4908
      %5006 = vst.msk [vmem:[%s177 + $0x60] sm:$0xff] %vm4993, %v4909
      %5007 = vst.msk [vmem:[%s177 + $0x68] sm:$0xff] %vm4993, %v4910
      %5008 = vst.msk [vmem:[%s177 + $0x70] sm:$0xff] %vm4993, %v4911
      %5009 = vst.msk [vmem:[%s177 + $0x78] sm:$0xff] %vm4993, %v4912
      %5010 = vst.msk [vmem:[%s177 + $0x80] sm:$0xff] %vm4993, %v4913
      %5011 = vst.msk [vmem:[%s177 + $0x88] sm:$0xff] %vm4993, %v4914
      %5012 = vst.msk [vmem:[%s177 + $0x90] sm:$0xff] %vm4993, %v4915
      %5013 = vst.msk [vmem:[%s177 + $0x98] sm:$0xff] %vm4993, %v4916
      %5014 = vst.msk [vmem:[%s177 + $0xa0] sm:$0xff] %vm4993, %v4917
      %5015 = vst.msk [vmem:[%s177 + $0xa8] sm:$0xff] %vm4993, %v4918
      %5016 = vst.msk [vmem:[%s177 + $0xb0] sm:$0xff] %vm4993, %v4919
      %5017 = vst.msk [vmem:[%s177 + $0xb8] sm:$0xff] %vm4993, %v4920
      %5018 = vst.msk [vmem:[%s177 + $0xc0] sm:$0xff] %vm4993, %v4921
      %5019 = vst.msk [vmem:[%s177 + $0xc8] sm:$0xff] %vm4993, %v4922
      %5020 = vst.msk [vmem:[%s177 + $0xd0] sm:$0xff] %vm4993, %v4923
      %5021 = vst.msk [vmem:[%s177 + $0xd8] sm:$0xff] %vm4993, %v4924
      %5022 = vst.msk [vmem:[%s177 + $0xe0] sm:$0xff] %vm4993, %v4925
      %5023 = vst.msk [vmem:[%s177 + $0xe8] sm:$0xff] %vm4993, %v4926
      %5024 = vst.msk [vmem:[%s177 + $0xf0] sm:$0xff] %vm4993, %v4927
      %5025 = vst.msk [vmem:[%s177 + $0xf8] sm:$0xff] %vm4993, %v4928
      %5026 = vst.msk [vmem:[%s177 + $0x100] sm:$0xff] %vm4993, %v4929
      %5027 = vst.msk [vmem:[%s177 + $0x108] sm:$0xff] %vm4993, %v4930
      %5028 = vst.msk [vmem:[%s177 + $0x110] sm:$0xff] %vm4993, %v4931
      %5029 = vst.msk [vmem:[%s177 + $0x118] sm:$0xff] %vm4993, %v4932
      %5030 = vst.msk [vmem:[%s177 + $0x120] sm:$0xff] %vm4993, %v4933
      %5031 = vst.msk [vmem:[%s177 + $0x128] sm:$0xff] %vm4993, %v4934
      %5032 = vst.msk [vmem:[%s177 + $0x130] sm:$0xff] %vm4993, %v4935
      %5033 = vst.msk [vmem:[%s177 + $0x138] sm:$0xff] %vm4993, %v4936
      %5034 = vst.msk [vmem:[%s177 + $0x140] sm:$0xff] %vm4993, %v4937
      %5035 = vst.msk [vmem:[%s177 + $0x148] sm:$0xff] %vm4993, %v4938
      %5036 = vst.msk [vmem:[%s177 + $0x150] sm:$0xff] %vm4993, %v4939
      %5037 = vst.msk [vmem:[%s177 + $0x158] sm:$0xff] %vm4993, %v4940
      %5038 = vst.msk [vmem:[%s177 + $0x160] sm:$0xff] %vm4993, %v4941
      %5039 = vst.msk [vmem:[%s177 + $0x168] sm:$0xff] %vm4993, %v4942
      %5040 = vst.msk [vmem:[%s177 + $0x170] sm:$0xff] %vm4993, %v4943
      %5041 = vst.msk [vmem:[%s177 + $0x178] sm:$0xff] %vm4993, %v4944
      %5042 = vst.msk [vmem:[%s177 + $0x180] sm:$0xff] %vm4993, %v4945
      %5043 = vst.msk [vmem:[%s177 + $0x188] sm:$0xff] %vm4993, %v4946
      %5044 = vst.msk [vmem:[%s177 + $0x190] sm:$0xff] %vm4993, %v4947
      %5045 = vst.msk [vmem:[%s177 + $0x198] sm:$0xff] %vm4993, %v4948
      %5046 = vst.msk [vmem:[%s177 + $0x1a0] sm:$0xff] %vm4993, %v4949
      %5047 = vst.msk [vmem:[%s177 + $0x1a8] sm:$0xff] %vm4993, %v4950
      %5048 = vst.msk [vmem:[%s177 + $0x1b0] sm:$0xff] %vm4993, %v4951
      %5049 = vst.msk [vmem:[%s177 + $0x1b8] sm:$0xff] %vm4993, %v4952
      %5050 = vst.msk [vmem:[%s177 + $0x1c0] sm:$0xff] %vm4993, %v4953
      %5051 = vst.msk [vmem:[%s177 + $0x1c8] sm:$0xff] %vm4993, %v4954
      %5052 = vst.msk [vmem:[%s177 + $0x1d0] sm:$0xff] %vm4993, %v4955
      %5053 = vst.msk [vmem:[%s177 + $0x1d8] sm:$0xff] %vm4993, %v4956
      %5054 = vst.msk [vmem:[%s177 + $0x1e0] sm:$0xff] %vm4993, %v4957
      %5055 = vst.msk [vmem:[%s177 + $0x1e8] sm:$0xff] %vm4993, %v4958
      %5056 = vst.msk [vmem:[%s177 + $0x1f0] sm:$0xff] %vm4993, %v4959
      %5057 = vst.msk [vmem:[%s177 + $0x1f8] sm:$0xff] %vm4993, %v4960
      %5058 = vst.msk [vmem:[%s177 + $0x200] sm:$0xff] %vm4993, %v4961
      %5059 = vst.msk [vmem:[%s177 + $0x208] sm:$0xff] %vm4993, %v4962
      %5060 = vst.msk [vmem:[%s177 + $0x210] sm:$0xff] %vm4993, %v4963
      %5061 = vst.msk [vmem:[%s177 + $0x218] sm:$0xff] %vm4993, %v4964
      %5062 = vst.msk [vmem:[%s177 + $0x220] sm:$0xff] %vm4993, %v4965
      %5063 = vst.msk [vmem:[%s177 + $0x228] sm:$0xff] %vm4993, %v4966
      %5064 = vst.msk [vmem:[%s177 + $0x230] sm:$0xff] %vm4993, %v4967
      %5065 = vst.msk [vmem:[%s177 + $0x238] sm:$0xff] %vm4993, %v4968
      %5066 = vst.msk [vmem:[%s177 + $0x240] sm:$0xff] %vm4993, %v4969
      %5067 = vst.msk [vmem:[%s177 + $0x248] sm:$0xff] %vm4993, %v4970
      %5068 = vst.msk [vmem:[%s177 + $0x250] sm:$0xff] %vm4993, %v4971
      %5069 = vst.msk [vmem:[%s177 + $0x258] sm:$0xff] %vm4993, %v4972
      %5070 = vst.msk [vmem:[%s177 + $0x260] sm:$0xff] %vm4993, %v4973
      %5071 = vst.msk [vmem:[%s177 + $0x268] sm:$0xff] %vm4993, %v4974
      %5072 = vst.msk [vmem:[%s177 + $0x270] sm:$0xff] %vm4993, %v4975
      %5073 = vst.msk [vmem:[%s177 + $0x278] sm:$0xff] %vm4993, %v4976
      %5074 = vst.msk [vmem:[%s177 + $0x280] sm:$0xff] %vm4993, %v4977
      %5075 = vst.msk [vmem:[%s177 + $0x288] sm:$0xff] %vm4993, %v4978
      %5076 = vst.msk [vmem:[%s177 + $0x290] sm:$0xff] %vm4993, %v4979
      %5077 = vst.msk [vmem:[%s177 + $0x298] sm:$0xff] %vm4993, %v4980
      %5078 = vst.msk [vmem:[%s177 + $0x2a0] sm:$0xff] %vm4993, %v4981
      %5079 = vst.msk [vmem:[%s177 + $0x2a8] sm:$0xff] %vm4993, %v4982
      %5080 = vst.msk [vmem:[%s177 + $0x2b0] sm:$0xff] %vm4993, %v4983
      %5081 = vst.msk [vmem:[%s177 + $0x2b8] sm:$0xff] %vm4993, %v4984
      %5082 = vst.msk [vmem:[%s177 + $0x2c0] sm:$0xff] %vm4993, %v4985
      %5083 = vst.msk [vmem:[%s177 + $0x2c8] sm:$0xff] %vm4993, %v4986
      %5084 = vst.msk [vmem:[%s177 + $0x2d0] sm:$0xff] %vm4993, %v4987
      %5085 = vst.msk [vmem:[%s177 + $0x2d8] sm:$0xff] %vm4993, %v4988
      %5086 = vst.msk [vmem:[%s177 + $0x2e0] sm:$0xff] %vm4993, %v4989
      %5087 = vst.msk [vmem:[%s177 + $0x2e8] sm:$0xff] %vm4993, %v4990
      %5088 = vst.msk [vmem:[%s177 + $0x2f0] sm:$0xff] %vm4993, %v4991
      %5089 = vst.msk [vmem:[%s177 + $0x2f8] sm:$0xff] %vm4993, %v4992
      %s5090 = smul.u32 32, %s14
      %p5091 = scmp.lt.s32.totalorder %s5090, 63
      %s5092 = scalar_select %p5091, %s5090, 63
      %s5093 = smul.addr %s5092, 3
      %s5094 = smul.addr %s5093, 8
      %s5095 = scalar_lea.vmem %s3, %s5094
      // Predicated region
      $region33: #{tpu_custom_call.1} parent=31 // pred_check
        %p5096 = pneg %p100
      $region34: #{tpu_custom_call.1} parent=31 // pred_check_branch
        %5098 = sbr.rel (%p5096) target = $region36
      $region35: #{tpu_custom_call.1} parent=31 // pred_region
        %s5099 = smul.u32 32, %s14
      $region36: #{tpu_custom_call.1} parent=31 // pred_fallthru
        _
    $region32: #{tpu_custom_call.1} parent=5 // pred_fallthru
      _
    %p5100 = scmp.le.s32.totalorder 2, %s9
    // Predicated region
    $region37: #{tpu_custom_call.1} parent=5 // pred_check
      %p5101 = pneg %p5100
    $region38: #{tpu_custom_call.1} parent=5 // pred_check_branch
      %5103 = sbr.rel (%p5101) target = $region40
    $region39: #{tpu_custom_call.1} parent=5 // pred_region
      %s5104 = ssub.s32 %s9, 2
      // Predicated region
      $region41: #{tpu_custom_call.1} parent=39 // pred_check
        %p5105 = pneg %p106
      $region42: #{tpu_custom_call.1} parent=39 // pred_check_branch
        %5107 = sbr.rel (%p5105) target = $region44
      $region43: #{tpu_custom_call.1} parent=39 // pred_region
        %s5108 = smul.u32 32, %s15
        %p5109 = scmp.lt.s32.totalorder %s5108, 63
        %s5110 = scalar_select %p5109, %s5108, 63
        %s5111 = smul.addr %s5110, 3
        %s5112 = smul.addr %s5111, 8
        %s5113 = scalar_lea.vmem %s3, %s5112
      $region44: #{tpu_custom_call.1} parent=39 // pred_fallthru
        _
    $region40: #{tpu_custom_call.1} parent=5 // pred_fallthru
      _
  $region6: #{tpu_custom_call.1} parent=0 // loop_footer
    %s13 = sadd.s32 1, %s9
  $region7: #{tpu_custom_call.1} parent=0 // loop_footer_branch
    %8 = sbr.rel target = $region3
  $region8: #{tpu_custom_call.1} parent=0 // loop_exit
    _

</llo_original>
